<compile_context>
chip_gen: v7x
topology: tpu7x:2x2x1
jax: 0.10.0
libtpu: 0.0.40
codegen_flags: <defaults>
</compile_context>

<pallas_src>
import functools
import numpy as np
import jax
import jax.numpy as jnp
from jax.experimental import pallas as pl
from jax.experimental.pallas import tpu as pltpu


# ------------------------------ fused kernel --------------------------------

def _conv3net_kernel(x_ref, w1_ref, b1_ref, s1_ref, w2_ref, b2_ref, s2_ref,
                     w3_ref, b3_ref, fc1_w_ref, fc1_b_ref, clf_w_ref, clf_b_ref,
                     o_ref,
                     y1_ref, p1_ref, y2_ref, p2_ref, y3_ref,
                     *, geom):
    f32 = jnp.float32
    W0, Wp1, Wp2, H3, W3 = geom      # flat-row width of each stage + final spatial size

    def conv3x3(slab, Win, L, w_ref, b_ref, dst_ref):
        # slab(off, size) -> (size, Cin) chunk of the flat (Hin*Win, Cin) source.
        # Output row p = i*Win + j is the valid conv at (i, j) whenever j < Win-2;
        # the remaining rows are harmless wrap-around garbage dropped by the
        # pooling / flatten selectors downstream.
        taps = [slab(dh * Win + dw, L) for dh in range(3) for dw in range(3)]
        patch = jnp.concatenate(taps, axis=1)                          # (L, 9*Cin)
        y = jnp.dot(patch, w_ref[...], preferred_element_type=f32) + b_ref[...]
        dst_ref[...] = jnp.maximum(y, 0.0)                             # conv+bias+ReLU

    def maxpool2x2(y_ref, Win, sel_ref, dst_ref):
        # h[p] = max over the 2x2 window whose top-left flat index is p.
        Lh = sel_ref.shape[1]
        h = jnp.maximum(
            jnp.maximum(y_ref[pl.ds(0, Lh), :], y_ref[pl.ds(1, Lh), :]),
            jnp.maximum(y_ref[pl.ds(Win, Lh), :], y_ref[pl.ds(Win + 1, Lh), :]))
        # Host-built one-hot selector picks the stride-2, in-bounds windows and
        # repacks them densely -> (Hp*Wp, C).
        dst_ref[...] = jnp.dot(sel_ref[...], h, preferred_element_type=f32)

    # conv1 + relu -> y1, pool1 -> p1
    L1 = y1_ref.shape[0]
    conv3x3(lambda o, L: x_ref[0, pl.ds(o, L), :], W0, L1, w1_ref, b1_ref, y1_ref)
    maxpool2x2(y1_ref, W0, s1_ref, p1_ref)

    # conv2 + relu -> y2, pool2 -> p2
    L2 = y2_ref.shape[0]
    conv3x3(lambda o, L: p1_ref[pl.ds(o, L), :], Wp1, L2, w2_ref, b2_ref, y2_ref)
    maxpool2x2(y2_ref, Wp1, s2_ref, p2_ref)

    # conv3 + relu -> y3 (no pooling)
    L3 = y3_ref.shape[0]
    conv3x3(lambda o, L: p2_ref[pl.ds(o, L), :], Wp2, L3, w3_ref, b3_ref, y3_ref)

    # Flatten conv3's valid rows in (h, w, c) order; fc1 weights were permuted
    # on the host so this matches torch's (c, h, w) Flatten exactly.
    pieces = [y3_ref[pl.ds(i * Wp2 + j, 1), :] for i in range(H3) for j in range(W3)]
    flat = pieces[0] if len(pieces) == 1 else jnp.concatenate(pieces, axis=1)
    hid = jnp.maximum(
        jnp.dot(flat, fc1_w_ref[...], preferred_element_type=f32) + fc1_b_ref[...],
        0.0)                                                           # (1, 64)
    o_ref[0] = (jnp.dot(hid, clf_w_ref[...], preferred_element_type=f32)
                + clf_b_ref[...])                                      # (1, n_pad)


# ----------------------------- host-side wrapper -----------------------------

@functools.partial(jax.jit, static_argnums=(2,))
def conv3net_forward(kparams, x_nchw, n_out):
    """Fused Conv3Net forward. x_nchw: (N, C, H, W) -> logits (N, n_out)."""
    x = jnp.transpose(x_nchw, (0, 2, 3, 1)).astype(jnp.float32)       # NCHW -> NHWC
    N, H, W, Cin = x.shape
    xf = x.reshape(N, H * W, Cin)                                     # flat spatial

    kp = kparams
    C1 = kp["w1"].shape[1]
    C2 = kp["w3"].shape[1]
    n_pad = kp["clf_w"].shape[1]

    Ho1, Wo1 = H - 2, W - 2            # conv1
    Hp1, Wp1 = Ho1 // 2, Wo1 // 2      # pool1
    Ho2, Wo2 = Hp1 - 2, Wp1 - 2        # conv2
    Hp2, Wp2 = Ho2 // 2, Wo2 // 2      # pool2
    H3, W3 = Hp2 - 2, Wp2 - 2          # conv3
    L1 = (Ho1 - 1) * W + Wo1           # flat conv-output lengths (incl. garbage cols)
    L2 = (Ho2 - 1) * Wp1 + Wo2
    L3 = (H3 - 1) * Wp2 + W3

    kernel = functools.partial(_conv3net_kernel, geom=(W, Wp1, Wp2, H3, W3))

    def full2d(a):
        return pl.BlockSpec(a.shape, lambda n: (0, 0))

    out_pad = pl.pallas_call(
        kernel,
        out_shape=jax.ShapeDtypeStruct((N, 1, n_pad), jnp.float32),
        grid=(N,),
        in_specs=[
            pl.BlockSpec((1, H * W, Cin), lambda n: (n, 0, 0)),
            full2d(kp["w1"]), full2d(kp["b1"]), full2d(kp["s1"]),
            full2d(kp["w2"]), full2d(kp["b2"]), full2d(kp["s2"]),
            full2d(kp["w3"]), full2d(kp["b3"]),
            full2d(kp["fc1_w"]), full2d(kp["fc1_b"]),
            full2d(kp["clf_w"]), full2d(kp["clf_b"]),
        ],
        out_specs=pl.BlockSpec((1, 1, n_pad), lambda n: (n, 0, 0)),
        scratch_shapes=[
            pltpu.VMEM((L1, C1), jnp.float32),            # conv1 activations (flat)
            pltpu.VMEM((Hp1 * Wp1, C1), jnp.float32),     # pooled conv1
            pltpu.VMEM((L2, C2), jnp.float32),            # conv2 activations (flat)
            pltpu.VMEM((Hp2 * Wp2, C2), jnp.float32),     # pooled conv2
            pltpu.VMEM((L3, C2), jnp.float32),            # conv3 activations (flat)
        ],
        compiler_params=pltpu.CompilerParams(
            dimension_semantics=("parallel",)),           # batch shards across TCs (v7x)
    )(xf, kp["w1"], kp["b1"], kp["s1"], kp["w2"], kp["b2"], kp["s2"],
      kp["w3"], kp["b3"], kp["fc1_w"], kp["fc1_b"], kp["clf_w"], kp["clf_b"])

    return out_pad[:, 0, :n_out]                          # drop the lane padding


# ------------------------- parameters & preparation --------------------------

def init_params(key, input_dim, in_channels, channels, n_out):
    c2 = channels * 2
    d = input_dim - 2        # conv1 (3x3 valid)
    d = d // 2               # maxpool 2x2
    d = d - 2                # conv2
    d = d // 2               # maxpool 2x2
    d = d - 2                # conv3
    feat_dim = d * d * c2    # == size_of_dim_out(input_dim)**2 * (channels*2)

    ks = jax.random.split(key, 10)

    def winit(k, shape, fan_in):
        return (jax.random.normal(k, shape, jnp.float32) / np.sqrt(fan_in)).astype(jnp.float32)

    return {
        # conv weights stored as (kh, kw, Cin, Cout) for the NHWC kernels
        "conv1_w": winit(ks[0], (3, 3, in_channels, channels), 9 * in_channels),
        "conv1_b": winit(ks[1], (channels,), 9 * in_channels),
        "conv2_w": winit(ks[2], (3, 3, channels, c2), 9 * channels),
        "conv2_b": winit(ks[3], (c2,), 9 * channels),
        "conv3_w": winit(ks[4], (3, 3, c2, c2), 9 * c2),
        "conv3_b": winit(ks[5], (c2,), 9 * c2),
        # fc weights stored pre-transposed: (in_features, out_features),
        # rows in torch Flatten (c, h, w) order
        "fc1_wT": winit(ks[6], (feat_dim, 64), feat_dim),
        "fc1_b":  winit(ks[7], (64,), feat_dim),
        "clf_wT": winit(ks[8], (64, n_out), 64),
        "clf_b":  winit(ks[9], (n_out,), 64),
    }


def prepare_kernel_params(params, input_dim):
    """One-time host-side repack into the layouts the fused kernel consumes:
    flattened conv weights, per-layer pooling selector matrices, (h,w,c)-ordered
    fc1 rows and a lane-padded classifier."""
    c2 = params["conv3_w"].shape[-1]
    feat_dim, n_hidden = params["fc1_wT"].shape
    n_out = params["clf_wT"].shape[1]
    n_pad = ((n_out + 127) // 128) * 128               # lane-dense output width

    H = W = input_dim
    Ho1, Wo1 = H - 2, W - 2
    Hp1, Wp1 = Ho1 // 2, Wo1 // 2
    Ho2, Wo2 = Hp1 - 2, Wp1 - 2
    Hp2, Wp2 = Ho2 // 2, Wo2 // 2
    H3, W3 = Hp2 - 2, Wp2 - 2
    assert feat_dim == H3 * W3 * c2, "fc1 size inconsistent with input_dim"

    def flat(w):   # (3, 3, Cin, Cout) -> (9*Cin, Cout), row order = (dh, dw, cin)
        return jnp.asarray(w).reshape(-1, w.shape[-1])

    def pool_selector(Ho, Wo, Win):
        # One-hot matrix selecting the flat index of each valid 2x2 window max.
        Hp, Wp = Ho // 2, Wo // 2
        L = (Ho - 1) * Win + Wo
        Lh = L - Win - 1
        sel = np.zeros((Hp * Wp, Lh), np.float32)
        for ip in range(Hp):
            for jp in range(Wp):
                sel[ip * Wp + jp, 2 * ip * Win + 2 * jp] = 1.0
        return jnp.asarray(sel)

    # torch flatten order is (c, h, w); the kernel reads features in (h, w, c)
    # order, so permute fc1 rows once here (zero runtime cost).
    fc1 = params["fc1_wT"].reshape(c2, H3, W3, n_hidden)
    fc1 = jnp.transpose(fc1, (1, 2, 0, 3)).reshape(feat_dim, n_hidden)

    clf_w = jnp.pad(params["clf_wT"], ((0, 0), (0, n_pad - n_out)))
    clf_b = jnp.pad(params["clf_b"], (0, n_pad - n_out)).reshape(1, n_pad)

    return {
        "w1": flat(params["conv1_w"]), "b1": params["conv1_b"].reshape(1, -1),
        "s1": pool_selector(Ho1, Wo1, W),
        "w2": flat(params["conv2_w"]), "b2": params["conv2_b"].reshape(1, -1),
        "s2": pool_selector(Ho2, Wo2, Wp1),
        "w3": flat(params["conv3_w"]), "b3": params["conv3_b"].reshape(1, -1),
        "fc1_w": fc1, "fc1_b": params["fc1_b"].reshape(1, -1),
        "clf_w": clf_w, "clf_b": clf_b,
    }


# ------------------------------ plain-JAX reference --------------------------

def reference_forward(params, x_nchw):
    x = jnp.transpose(x_nchw, (0, 2, 3, 1)).astype(jnp.float32)

    def conv(x, w, b):
        y = jax.lax.conv_general_dilated(
            x, w, window_strides=(1, 1), padding="VALID",
            dimension_numbers=("NHWC", "HWIO", "NHWC"))
        return jnp.maximum(y + b, 0.0)

    def pool(x):
        return jax.lax.reduce_window(x, -jnp.inf, jax.lax.max,
                                     (1, 2, 2, 1), (1, 2, 2, 1), "VALID")

    h = pool(conv(x, params["conv1_w"], params["conv1_b"]))
    h = pool(conv(h, params["conv2_w"], params["conv2_b"]))
    h = conv(h, params["conv3_w"], params["conv3_b"])
    feat = jnp.transpose(h, (0, 3, 1, 2)).reshape(h.shape[0], -1)   # torch Flatten
    hid = jnp.maximum(feat @ params["fc1_wT"] + params["fc1_b"], 0.0)
    return hid @ params["clf_wT"] + params["clf_b"]


# ----------------------------------- main ------------------------------------

if __name__ == "__main__":
    # small shapes consistent with the module (N, in_channels, input_dim, input_dim);
    # input_dim >= 18 is needed for a positive spatial size after the three convs.
    N, in_channels, input_dim = 2, 3, 22
    channels, n_out = 8, 10

    key = jax.random.PRNGKey(0)
    k_x, k_p = jax.random.split(key)
    params = init_params(k_p, input_dim, in_channels, channels, n_out)
    kparams = prepare_kernel_params(params, input_dim)
    x = jax.random.normal(k_x, (N, in_channels, input_dim, input_dim), dtype=jnp.float32)

    out = conv3net_forward(kparams, x, n_out)
    out = jax.block_until_ready(out)
    assert out.shape == (N, n_out)

    ref = jax.block_until_ready(reference_forward(params, x))
    np.testing.assert_allclose(np.asarray(out), np.asarray(ref), rtol=2e-4, atol=2e-4)

    # TODO(synk): criterion (CrossEntropyLoss) path of forward(return_loss=True) is
    # not implemented; forward() with return_loss=False only returns the logits.
    print("KERNEL_OK")
</pallas_src>

<mosaic_0001>
module attributes {stable_mosaic.version = 11 : i64} {
  func.func @_conv3net_kernel(%arg0: i32, %arg1: memref<1x484x3xf32, #tpu.memory_space<vmem>>, %arg2: memref<27x8xf32, #tpu.memory_space<vmem>>, %arg3: memref<1x8xf32, #tpu.memory_space<vmem>>, %arg4: memref<100x415xf32, #tpu.memory_space<vmem>>, %arg5: memref<72x16xf32, #tpu.memory_space<vmem>>, %arg6: memref<1x16xf32, #tpu.memory_space<vmem>>, %arg7: memref<16x67xf32, #tpu.memory_space<vmem>>, %arg8: memref<144x16xf32, #tpu.memory_space<vmem>>, %arg9: memref<1x16xf32, #tpu.memory_space<vmem>>, %arg10: memref<64x64xf32, #tpu.memory_space<vmem>>, %arg11: memref<1x64xf32, #tpu.memory_space<vmem>>, %arg12: memref<64x128xf32, #tpu.memory_space<vmem>>, %arg13: memref<1x128xf32, #tpu.memory_space<vmem>>, %arg14: memref<1x1x128xf32, #tpu.memory_space<vmem>>, %arg15: memref<438x8xf32, #tpu.memory_space<vmem>>, %arg16: memref<100x8xf32, #tpu.memory_space<vmem>>, %arg17: memref<78x16xf32, #tpu.memory_space<vmem>>, %arg18: memref<16x16xf32, #tpu.memory_space<vmem>>, %arg19: memref<6x16xf32, #tpu.memory_space<vmem>>) attributes {dimension_semantics = [#tpu.dimension_semantics<parallel>], iteration_bounds = array<i64: 2>, scalar_prefetch = 0 : i64, scratch_operands = 5 : i64, tpu.core_type = #tpu.core_type<tc>, window_params = [{transform_indices = @transform_0, window_bounds = array<i64: 1, 484, 3>}, {pipeline_mode = #tpu.pipeline_mode<synchronous>, transform_indices = @transform_1, window_bounds = array<i64: 27, 8>}, {pipeline_mode = #tpu.pipeline_mode<synchronous>, transform_indices = @transform_2, window_bounds = array<i64: 1, 8>}, {pipeline_mode = #tpu.pipeline_mode<synchronous>, transform_indices = @transform_3, window_bounds = array<i64: 100, 415>}, {pipeline_mode = #tpu.pipeline_mode<synchronous>, transform_indices = @transform_4, window_bounds = array<i64: 72, 16>}, {pipeline_mode = #tpu.pipeline_mode<synchronous>, transform_indices = @transform_5, window_bounds = array<i64: 1, 16>}, {pipeline_mode = #tpu.pipeline_mode<synchronous>, transform_indices = @transform_6, window_bounds = array<i64: 16, 67>}, {pipeline_mode = #tpu.pipeline_mode<synchronous>, transform_indices = @transform_7, window_bounds = array<i64: 144, 16>}, {pipeline_mode = #tpu.pipeline_mode<synchronous>, transform_indices = @transform_8, window_bounds = array<i64: 1, 16>}, {pipeline_mode = #tpu.pipeline_mode<synchronous>, transform_indices = @transform_9, window_bounds = array<i64: 64, 64>}, {pipeline_mode = #tpu.pipeline_mode<synchronous>, transform_indices = @transform_10, window_bounds = array<i64: 1, 64>}, {pipeline_mode = #tpu.pipeline_mode<synchronous>, transform_indices = @transform_11, window_bounds = array<i64: 64, 128>}, {pipeline_mode = #tpu.pipeline_mode<synchronous>, transform_indices = @transform_12, window_bounds = array<i64: 1, 128>}, {transform_indices = @transform_13, window_bounds = array<i64: 1, 1, 128>}]} {
    %c0 = arith.constant 0 : index
    %c0_0 = arith.constant 0 : index
    %c0_1 = arith.constant 0 : index
    %0 = vector.load %arg1[%c0, %c0_0, %c0_1] : memref<1x484x3xf32, #tpu.memory_space<vmem>>, vector<1x438x3xf32>
    %1 = vector.shape_cast %0 : vector<1x438x3xf32> to vector<438x3xf32>
    %c0_2 = arith.constant 0 : index
    %c1 = arith.constant 1 : index
    %c0_3 = arith.constant 0 : index
    %2 = vector.load %arg1[%c0_2, %c1, %c0_3] : memref<1x484x3xf32, #tpu.memory_space<vmem>>, vector<1x438x3xf32>
    %3 = vector.shape_cast %2 : vector<1x438x3xf32> to vector<438x3xf32>
    %c0_4 = arith.constant 0 : index
    %c2 = arith.constant 2 : index
    %c0_5 = arith.constant 0 : index
    %4 = vector.load %arg1[%c0_4, %c2, %c0_5] : memref<1x484x3xf32, #tpu.memory_space<vmem>>, vector<1x438x3xf32>
    %5 = vector.shape_cast %4 : vector<1x438x3xf32> to vector<438x3xf32>
    %c0_6 = arith.constant 0 : index
    %c22 = arith.constant 22 : index
    %c0_7 = arith.constant 0 : index
    %6 = vector.load %arg1[%c0_6, %c22, %c0_7] : memref<1x484x3xf32, #tpu.memory_space<vmem>>, vector<1x438x3xf32>
    %7 = vector.shape_cast %6 : vector<1x438x3xf32> to vector<438x3xf32>
    %c0_8 = arith.constant 0 : index
    %c23 = arith.constant 23 : index
    %c0_9 = arith.constant 0 : index
    %8 = vector.load %arg1[%c0_8, %c23, %c0_9] : memref<1x484x3xf32, #tpu.memory_space<vmem>>, vector<1x438x3xf32>
    %9 = vector.shape_cast %8 : vector<1x438x3xf32> to vector<438x3xf32>
    %c0_10 = arith.constant 0 : index
    %c24 = arith.constant 24 : index
    %c0_11 = arith.constant 0 : index
    %10 = vector.load %arg1[%c0_10, %c24, %c0_11] : memref<1x484x3xf32, #tpu.memory_space<vmem>>, vector<1x438x3xf32>
    %11 = vector.shape_cast %10 : vector<1x438x3xf32> to vector<438x3xf32>
    %c0_12 = arith.constant 0 : index
    %c44 = arith.constant 44 : index
    %c0_13 = arith.constant 0 : index
    %12 = vector.load %arg1[%c0_12, %c44, %c0_13] : memref<1x484x3xf32, #tpu.memory_space<vmem>>, vector<1x438x3xf32>
    %13 = vector.shape_cast %12 : vector<1x438x3xf32> to vector<438x3xf32>
    %c0_14 = arith.constant 0 : index
    %c45 = arith.constant 45 : index
    %c0_15 = arith.constant 0 : index
    %14 = vector.load %arg1[%c0_14, %c45, %c0_15] : memref<1x484x3xf32, #tpu.memory_space<vmem>>, vector<1x438x3xf32>
    %15 = vector.shape_cast %14 : vector<1x438x3xf32> to vector<438x3xf32>
    %c0_16 = arith.constant 0 : index
    %c46 = arith.constant 46 : index
    %c0_17 = arith.constant 0 : index
    %16 = vector.load %arg1[%c0_16, %c46, %c0_17] : memref<1x484x3xf32, #tpu.memory_space<vmem>>, vector<1x438x3xf32>
    %17 = vector.shape_cast %16 : vector<1x438x3xf32> to vector<438x3xf32>
    %18 = tpu.concatenate %1, %3, %5, %7, %9, %11, %13, %15, %17 in 1 : vector<438x3xf32>, vector<438x3xf32>, vector<438x3xf32>, vector<438x3xf32>, vector<438x3xf32>, vector<438x3xf32>, vector<438x3xf32>, vector<438x3xf32>, vector<438x3xf32> -> vector<438x27xf32>
    %c0_18 = arith.constant 0 : index
    %c0_19 = arith.constant 0 : index
    %19 = vector.load %arg2[%c0_18, %c0_19] : memref<27x8xf32, #tpu.memory_space<vmem>>, vector<27x8xf32>
    %cst = arith.constant dense<0.000000e+00> : vector<438x8xf32>
    %20 = tpu.matmul %18, %19, %cst {dimension_numbers = #tpu.dot_dimension_numbers<[1], [0], [0], [1], [0, 0, 1, 1], [], []>} : vector<438x27xf32>, vector<27x8xf32>, vector<438x8xf32> -> vector<438x8xf32>
    %c0_20 = arith.constant 0 : index
    %c0_21 = arith.constant 0 : index
    %21 = vector.load %arg3[%c0_20, %c0_21] : memref<1x8xf32, #tpu.memory_space<vmem>>, vector<1x8xf32>
    %22 = vector.broadcast %21 : vector<1x8xf32> to vector<438x8xf32>
    %23 = arith.addf %20, %22 : vector<438x8xf32>
    %cst_22 = arith.constant 0.000000e+00 : f32
    %24 = vector.broadcast %cst_22 : f32 to vector<438x8xf32>
    %25 = arith.maximumf %23, %24 : vector<438x8xf32>
    %c0_23 = arith.constant 0 : index
    %c0_24 = arith.constant 0 : index
    %26 = vector.load %arg15[%c0_23, %c0_24] : memref<438x8xf32, #tpu.memory_space<vmem>>, vector<438x8xf32>
    tpu.vector_store %arg15[%c0_23, %c0_24], %25 {strides = array<i32>} : memref<438x8xf32, #tpu.memory_space<vmem>>, vector<438x8xf32>,
    %c0_25 = arith.constant 0 : index
    %c0_26 = arith.constant 0 : index
    %27 = vector.load %arg15[%c0_25, %c0_26] : memref<438x8xf32, #tpu.memory_space<vmem>>, vector<415x8xf32>
    %c1_27 = arith.constant 1 : index
    %c0_28 = arith.constant 0 : index
    %28 = vector.load %arg15[%c1_27, %c0_28] : memref<438x8xf32, #tpu.memory_space<vmem>>, vector<415x8xf32>
    %29 = arith.maximumf %27, %28 : vector<415x8xf32>
    %c22_29 = arith.constant 22 : index
    %c0_30 = arith.constant 0 : index
    %30 = vector.load %arg15[%c22_29, %c0_30] : memref<438x8xf32, #tpu.memory_space<vmem>>, vector<415x8xf32>
    %c23_31 = arith.constant 23 : index
    %c0_32 = arith.constant 0 : index
    %31 = vector.load %arg15[%c23_31, %c0_32] : memref<438x8xf32, #tpu.memory_space<vmem>>, vector<415x8xf32>
    %32 = arith.maximumf %30, %31 : vector<415x8xf32>
    %33 = arith.maximumf %29, %32 : vector<415x8xf32>
    %c0_33 = arith.constant 0 : index
    %c0_34 = arith.constant 0 : index
    %34 = vector.load %arg4[%c0_33, %c0_34] : memref<100x415xf32, #tpu.memory_space<vmem>>, vector<100x415xf32>
    %cst_35 = arith.constant dense<0.000000e+00> : vector<100x8xf32>
    %35 = tpu.matmul %34, %33, %cst_35 {dimension_numbers = #tpu.dot_dimension_numbers<[1], [0], [0], [1], [0, 0, 1, 1], [], []>} : vector<100x415xf32>, vector<415x8xf32>, vector<100x8xf32> -> vector<100x8xf32>
    %c0_36 = arith.constant 0 : index
    %c0_37 = arith.constant 0 : index
    %36 = vector.load %arg16[%c0_36, %c0_37] : memref<100x8xf32, #tpu.memory_space<vmem>>, vector<100x8xf32>
    tpu.vector_store %arg16[%c0_36, %c0_37], %35 {strides = array<i32>} : memref<100x8xf32, #tpu.memory_space<vmem>>, vector<100x8xf32>,
    %c0_38 = arith.constant 0 : index
    %c0_39 = arith.constant 0 : index
    %37 = vector.load %arg16[%c0_38, %c0_39] : memref<100x8xf32, #tpu.memory_space<vmem>>, vector<78x8xf32>
    %c1_40 = arith.constant 1 : index
    %c0_41 = arith.constant 0 : index
    %38 = vector.load %arg16[%c1_40, %c0_41] : memref<100x8xf32, #tpu.memory_space<vmem>>, vector<78x8xf32>
    %c2_42 = arith.constant 2 : index
    %c0_43 = arith.constant 0 : index
    %39 = vector.load %arg16[%c2_42, %c0_43] : memref<100x8xf32, #tpu.memory_space<vmem>>, vector<78x8xf32>
    %c10 = arith.constant 10 : index
    %c0_44 = arith.constant 0 : index
    %40 = vector.load %arg16[%c10, %c0_44] : memref<100x8xf32, #tpu.memory_space<vmem>>, vector<78x8xf32>
    %c11 = arith.constant 11 : index
    %c0_45 = arith.constant 0 : index
    %41 = vector.load %arg16[%c11, %c0_45] : memref<100x8xf32, #tpu.memory_space<vmem>>, vector<78x8xf32>
    %c12 = arith.constant 12 : index
    %c0_46 = arith.constant 0 : index
    %42 = vector.load %arg16[%c12, %c0_46] : memref<100x8xf32, #tpu.memory_space<vmem>>, vector<78x8xf32>
    %c20 = arith.constant 20 : index
    %c0_47 = arith.constant 0 : index
    %43 = vector.load %arg16[%c20, %c0_47] : memref<100x8xf32, #tpu.memory_space<vmem>>, vector<78x8xf32>
    %c21 = arith.constant 21 : index
    %c0_48 = arith.constant 0 : index
    %44 = vector.load %arg16[%c21, %c0_48] : memref<100x8xf32, #tpu.memory_space<vmem>>, vector<78x8xf32>
    %c22_49 = arith.constant 22 : index
    %c0_50 = arith.constant 0 : index
    %45 = vector.load %arg16[%c22_49, %c0_50] : memref<100x8xf32, #tpu.memory_space<vmem>>, vector<78x8xf32>
    %46 = tpu.concatenate %37, %38, %39, %40, %41, %42, %43, %44, %45 in 1 : vector<78x8xf32>, vector<78x8xf32>, vector<78x8xf32>, vector<78x8xf32>, vector<78x8xf32>, vector<78x8xf32>, vector<78x8xf32>, vector<78x8xf32>, vector<78x8xf32> -> vector<78x72xf32>
    %c0_51 = arith.constant 0 : index
    %c0_52 = arith.constant 0 : index
    %47 = vector.load %arg5[%c0_51, %c0_52] : memref<72x16xf32, #tpu.memory_space<vmem>>, vector<72x16xf32>
    %cst_53 = arith.constant dense<0.000000e+00> : vector<78x16xf32>
    %48 = tpu.matmul %46, %47, %cst_53 {dimension_numbers = #tpu.dot_dimension_numbers<[1], [0], [0], [1], [0, 0, 1, 1], [], []>} : vector<78x72xf32>, vector<72x16xf32>, vector<78x16xf32> -> vector<78x16xf32>
    %c0_54 = arith.constant 0 : index
    %c0_55 = arith.constant 0 : index
    %49 = vector.load %arg6[%c0_54, %c0_55] : memref<1x16xf32, #tpu.memory_space<vmem>>, vector<1x16xf32>
    %50 = vector.broadcast %49 : vector<1x16xf32> to vector<78x16xf32>
    %51 = arith.addf %48, %50 : vector<78x16xf32>
    %cst_56 = arith.constant 0.000000e+00 : f32
    %52 = vector.broadcast %cst_56 : f32 to vector<78x16xf32>
    %53 = arith.maximumf %51, %52 : vector<78x16xf32>
    %c0_57 = arith.constant 0 : index
    %c0_58 = arith.constant 0 : index
    %54 = vector.load %arg17[%c0_57, %c0_58] : memref<78x16xf32, #tpu.memory_space<vmem>>, vector<78x16xf32>
    tpu.vector_store %arg17[%c0_57, %c0_58], %53 {strides = array<i32>} : memref<78x16xf32, #tpu.memory_space<vmem>>, vector<78x16xf32>,
    %c0_59 = arith.constant 0 : index
    %c0_60 = arith.constant 0 : index
    %55 = vector.load %arg17[%c0_59, %c0_60] : memref<78x16xf32, #tpu.memory_space<vmem>>, vector<67x16xf32>
    %c1_61 = arith.constant 1 : index
    %c0_62 = arith.constant 0 : index
    %56 = vector.load %arg17[%c1_61, %c0_62] : memref<78x16xf32, #tpu.memory_space<vmem>>, vector<67x16xf32>
    %57 = arith.maximumf %55, %56 : vector<67x16xf32>
    %c10_63 = arith.constant 10 : index
    %c0_64 = arith.constant 0 : index
    %58 = vector.load %arg17[%c10_63, %c0_64] : memref<78x16xf32, #tpu.memory_space<vmem>>, vector<67x16xf32>
    %c11_65 = arith.constant 11 : index
    %c0_66 = arith.constant 0 : index
    %59 = vector.load %arg17[%c11_65, %c0_66] : memref<78x16xf32, #tpu.memory_space<vmem>>, vector<67x16xf32>
    %60 = arith.maximumf %58, %59 : vector<67x16xf32>
    %61 = arith.maximumf %57, %60 : vector<67x16xf32>
    %c0_67 = arith.constant 0 : index
    %c0_68 = arith.constant 0 : index
    %62 = vector.load %arg7[%c0_67, %c0_68] : memref<16x67xf32, #tpu.memory_space<vmem>>, vector<16x67xf32>
    %cst_69 = arith.constant dense<0.000000e+00> : vector<16x16xf32>
    %63 = tpu.matmul %62, %61, %cst_69 {dimension_numbers = #tpu.dot_dimension_numbers<[1], [0], [0], [1], [0, 0, 1, 1], [], []>} : vector<16x67xf32>, vector<67x16xf32>, vector<16x16xf32> -> vector<16x16xf32>
    %c0_70 = arith.constant 0 : index
    %c0_71 = arith.constant 0 : index
    %64 = vector.load %arg18[%c0_70, %c0_71] : memref<16x16xf32, #tpu.memory_space<vmem>>, vector<16x16xf32>
    tpu.vector_store %arg18[%c0_70, %c0_71], %63 {strides = array<i32>} : memref<16x16xf32, #tpu.memory_space<vmem>>, vector<16x16xf32>,
    %c0_72 = arith.constant 0 : index
    %c0_73 = arith.constant 0 : index
    %65 = vector.load %arg18[%c0_72, %c0_73] : memref<16x16xf32, #tpu.memory_space<vmem>>, vector<6x16xf32>
    %c1_74 = arith.constant 1 : index
    %c0_75 = arith.constant 0 : index
    %66 = vector.load %arg18[%c1_74, %c0_75] : memref<16x16xf32, #tpu.memory_space<vmem>>, vector<6x16xf32>
    %c2_76 = arith.constant 2 : index
    %c0_77 = arith.constant 0 : index
    %67 = vector.load %arg18[%c2_76, %c0_77] : memref<16x16xf32, #tpu.memory_space<vmem>>, vector<6x16xf32>
    %c4 = arith.constant 4 : index
    %c0_78 = arith.constant 0 : index
    %68 = vector.load %arg18[%c4, %c0_78] : memref<16x16xf32, #tpu.memory_space<vmem>>, vector<6x16xf32>
    %c5 = arith.constant 5 : index
    %c0_79 = arith.constant 0 : index
    %69 = vector.load %arg18[%c5, %c0_79] : memref<16x16xf32, #tpu.memory_space<vmem>>, vector<6x16xf32>
    %c6 = arith.constant 6 : index
    %c0_80 = arith.constant 0 : index
    %70 = vector.load %arg18[%c6, %c0_80] : memref<16x16xf32, #tpu.memory_space<vmem>>, vector<6x16xf32>
    %c8 = arith.constant 8 : index
    %c0_81 = arith.constant 0 : index
    %71 = vector.load %arg18[%c8, %c0_81] : memref<16x16xf32, #tpu.memory_space<vmem>>, vector<6x16xf32>
    %c9 = arith.constant 9 : index
    %c0_82 = arith.constant 0 : index
    %72 = vector.load %arg18[%c9, %c0_82] : memref<16x16xf32, #tpu.memory_space<vmem>>, vector<6x16xf32>
    %c10_83 = arith.constant 10 : index
    %c0_84 = arith.constant 0 : index
    %73 = vector.load %arg18[%c10_83, %c0_84] : memref<16x16xf32, #tpu.memory_space<vmem>>, vector<6x16xf32>
    %74 = tpu.concatenate %65, %66, %67, %68, %69, %70, %71, %72, %73 in 1 : vector<6x16xf32>, vector<6x16xf32>, vector<6x16xf32>, vector<6x16xf32>, vector<6x16xf32>, vector<6x16xf32>, vector<6x16xf32>, vector<6x16xf32>, vector<6x16xf32> -> vector<6x144xf32>
    %c0_85 = arith.constant 0 : index
    %c0_86 = arith.constant 0 : index
    %75 = vector.load %arg8[%c0_85, %c0_86] : memref<144x16xf32, #tpu.memory_space<vmem>>, vector<144x16xf32>
    %cst_87 = arith.constant dense<0.000000e+00> : vector<6x16xf32>
    %76 = tpu.matmul %74, %75, %cst_87 {dimension_numbers = #tpu.dot_dimension_numbers<[1], [0], [0], [1], [0, 0, 1, 1], [], []>} : vector<6x144xf32>, vector<144x16xf32>, vector<6x16xf32> -> vector<6x16xf32>
    %c0_88 = arith.constant 0 : index
    %c0_89 = arith.constant 0 : index
    %77 = vector.load %arg9[%c0_88, %c0_89] : memref<1x16xf32, #tpu.memory_space<vmem>>, vector<1x16xf32>
    %78 = vector.broadcast %77 : vector<1x16xf32> to vector<6x16xf32>
    %79 = arith.addf %76, %78 : vector<6x16xf32>
    %cst_90 = arith.constant 0.000000e+00 : f32
    %80 = vector.broadcast %cst_90 : f32 to vector<6x16xf32>
    %81 = arith.maximumf %79, %80 : vector<6x16xf32>
    %c0_91 = arith.constant 0 : index
    %c0_92 = arith.constant 0 : index
    %82 = vector.load %arg19[%c0_91, %c0_92] : memref<6x16xf32, #tpu.memory_space<vmem>>, vector<6x16xf32>
    tpu.vector_store %arg19[%c0_91, %c0_92], %81 {strides = array<i32>} : memref<6x16xf32, #tpu.memory_space<vmem>>, vector<6x16xf32>,
    %c0_93 = arith.constant 0 : index
    %c0_94 = arith.constant 0 : index
    %83 = vector.load %arg19[%c0_93, %c0_94] : memref<6x16xf32, #tpu.memory_space<vmem>>, vector<1x16xf32>
    %c1_95 = arith.constant 1 : index
    %c0_96 = arith.constant 0 : index
    %84 = vector.load %arg19[%c1_95, %c0_96] : memref<6x16xf32, #tpu.memory_space<vmem>>, vector<1x16xf32>
    %c4_97 = arith.constant 4 : index
    %c0_98 = arith.constant 0 : index
    %85 = vector.load %arg19[%c4_97, %c0_98] : memref<6x16xf32, #tpu.memory_space<vmem>>, vector<1x16xf32>
    %c5_99 = arith.constant 5 : index
    %c0_100 = arith.constant 0 : index
    %86 = vector.load %arg19[%c5_99, %c0_100] : memref<6x16xf32, #tpu.memory_space<vmem>>, vector<1x16xf32>
    %87 = tpu.concatenate %83, %84, %85, %86 in 1 : vector<1x16xf32>, vector<1x16xf32>, vector<1x16xf32>, vector<1x16xf32> -> vector<1x64xf32>
    %c0_101 = arith.constant 0 : index
    %c0_102 = arith.constant 0 : index
    %88 = vector.load %arg10[%c0_101, %c0_102] : memref<64x64xf32, #tpu.memory_space<vmem>>, vector<64x64xf32>
    %cst_103 = arith.constant dense<0.000000e+00> : vector<1x64xf32>
    %89 = tpu.matmul %87, %88, %cst_103 {dimension_numbers = #tpu.dot_dimension_numbers<[1], [0], [0], [1], [0, 0, 1, 1], [], []>} : vector<1x64xf32>, vector<64x64xf32>, vector<1x64xf32> -> vector<1x64xf32>
    %c0_104 = arith.constant 0 : index
    %c0_105 = arith.constant 0 : index
    %90 = vector.load %arg11[%c0_104, %c0_105] : memref<1x64xf32, #tpu.memory_space<vmem>>, vector<1x64xf32>
    %91 = arith.addf %89, %90 : vector<1x64xf32>
    %cst_106 = arith.constant 0.000000e+00 : f32
    %92 = vector.broadcast %cst_106 : f32 to vector<1x64xf32>
    %93 = arith.maximumf %91, %92 : vector<1x64xf32>
    %c0_107 = arith.constant 0 : index
    %c0_108 = arith.constant 0 : index
    %94 = vector.load %arg12[%c0_107, %c0_108] : memref<64x128xf32, #tpu.memory_space<vmem>>, vector<64x128xf32>
    %cst_109 = arith.constant dense<0.000000e+00> : vector<1x128xf32>
    %95 = tpu.matmul %93, %94, %cst_109 {dimension_numbers = #tpu.dot_dimension_numbers<[1], [0], [0], [1], [0, 0, 1, 1], [], []>} : vector<1x64xf32>, vector<64x128xf32>, vector<1x128xf32> -> vector<1x128xf32>
    %c0_110 = arith.constant 0 : index
    %c0_111 = arith.constant 0 : index
    %96 = vector.load %arg13[%c0_110, %c0_111] : memref<1x128xf32, #tpu.memory_space<vmem>>, vector<1x128xf32>
    %97 = arith.addf %95, %96 : vector<1x128xf32>
    %c0_112 = arith.constant 0 : index
    %c0_113 = arith.constant 0 : index
    %c0_114 = arith.constant 0 : index
    %98 = vector.load %arg14[%c0_112, %c0_113, %c0_114] : memref<1x1x128xf32, #tpu.memory_space<vmem>>, vector<1x1x128xf32>
    %99 = vector.shape_cast %98 : vector<1x1x128xf32> to vector<1x128xf32>
    %100 = vector.shape_cast %97 : vector<1x128xf32> to vector<1x1x128xf32>
    tpu.vector_store %arg14[%c0_112, %c0_113, %c0_114], %100 {strides = array<i32>} : memref<1x1x128xf32, #tpu.memory_space<vmem>>, vector<1x1x128xf32>,
    return
  }
  func.func @transform_0(%arg0: i32) -> (i32, i32, i32) {
    %c0_i32 = arith.constant 0 : i32
    %c0_i32_0 = arith.constant 0 : i32
    %c0_i32_1 = arith.constant 0 : i32
    return %arg0, %c0_i32, %c0_i32_0 : i32, i32, i32
  }
  func.func @transform_1(%arg0: i32) -> (i32, i32) {
    %c0_i32 = arith.constant 0 : i32
    %c0_i32_0 = arith.constant 0 : i32
    %c0_i32_1 = arith.constant 0 : i32
    return %c0_i32, %c0_i32_0 : i32, i32
  }
  func.func @transform_2(%arg0: i32) -> (i32, i32) {
    %c0_i32 = arith.constant 0 : i32
    %c0_i32_0 = arith.constant 0 : i32
    %c0_i32_1 = arith.constant 0 : i32
    return %c0_i32, %c0_i32_0 : i32, i32
  }
  func.func @transform_3(%arg0: i32) -> (i32, i32) {
    %c0_i32 = arith.constant 0 : i32
    %c0_i32_0 = arith.constant 0 : i32
    %c0_i32_1 = arith.constant 0 : i32
    return %c0_i32, %c0_i32_0 : i32, i32
  }
  func.func @transform_4(%arg0: i32) -> (i32, i32) {
    %c0_i32 = arith.constant 0 : i32
    %c0_i32_0 = arith.constant 0 : i32
    %c0_i32_1 = arith.constant 0 : i32
    return %c0_i32, %c0_i32_0 : i32, i32
  }
  func.func @transform_5(%arg0: i32) -> (i32, i32) {
    %c0_i32 = arith.constant 0 : i32
    %c0_i32_0 = arith.constant 0 : i32
    %c0_i32_1 = arith.constant 0 : i32
    return %c0_i32, %c0_i32_0 : i32, i32
  }
  func.func @transform_6(%arg0: i32) -> (i32, i32) {
    %c0_i32 = arith.constant 0 : i32
    %c0_i32_0 = arith.constant 0 : i32
    %c0_i32_1 = arith.constant 0 : i32
    return %c0_i32, %c0_i32_0 : i32, i32
  }
  func.func @transform_7(%arg0: i32) -> (i32, i32) {
    %c0_i32 = arith.constant 0 : i32
    %c0_i32_0 = arith.constant 0 : i32
    %c0_i32_1 = arith.constant 0 : i32
    return %c0_i32, %c0_i32_0 : i32, i32
  }
  func.func @transform_8(%arg0: i32) -> (i32, i32) {
    %c0_i32 = arith.constant 0 : i32
    %c0_i32_0 = arith.constant 0 : i32
    %c0_i32_1 = arith.constant 0 : i32
    return %c0_i32, %c0_i32_0 : i32, i32
  }
  func.func @transform_9(%arg0: i32) -> (i32, i32) {
    %c0_i32 = arith.constant 0 : i32
    %c0_i32_0 = arith.constant 0 : i32
    %c0_i32_1 = arith.constant 0 : i32
    return %c0_i32, %c0_i32_0 : i32, i32
  }
  func.func @transform_10(%arg0: i32) -> (i32, i32) {
    %c0_i32 = arith.constant 0 : i32
    %c0_i32_0 = arith.constant 0 : i32
    %c0_i32_1 = arith.constant 0 : i32
    return %c0_i32, %c0_i32_0 : i32, i32
  }
  func.func @transform_11(%arg0: i32) -> (i32, i32) {
    %c0_i32 = arith.constant 0 : i32
    %c0_i32_0 = arith.constant 0 : i32
    %c0_i32_1 = arith.constant 0 : i32
    return %c0_i32, %c0_i32_0 : i32, i32
  }
  func.func @transform_12(%arg0: i32) -> (i32, i32) {
    %c0_i32 = arith.constant 0 : i32
    %c0_i32_0 = arith.constant 0 : i32
    %c0_i32_1 = arith.constant 0 : i32
    return %c0_i32, %c0_i32_0 : i32, i32
  }
  func.func @transform_13(%arg0: i32) -> (i32, i32, i32) {
    %c0_i32 = arith.constant 0 : i32
    %c0_i32_0 = arith.constant 0 : i32
    %c0_i32_1 = arith.constant 0 : i32
    return %arg0, %c0_i32, %c0_i32_0 : i32, i32, i32
  }
}

</mosaic_0001>

<llo_original>
// kernel: conv3net_forward.1
$region0: #{conv3net_forward.1}
  #allocation0 [shape = 'u32[]', space=smem, size = 0x4, offset = 0x4, fixed_abs, tag = 'smem constant byte address 0x4 - core index']
  #allocation1 [shape = 'u32[144,128]{1,0:T(1,128)}', space=vmem, size = 0x12000, scoped, tag = 'internal scratch']
  #allocation2 [shape = 'f32[438,8]{1,0:T(8,128)}', space=vmem, size = 0x37000, scoped, tag = 'scratch operand']
  #allocation3 [shape = 'f32[100,8]{1,0:T(8,128)}', space=vmem, size = 0xd000, scoped, tag = 'scratch operand']
  #allocation4 [shape = 'f32[78,16]{1,0:T(8,128)}', space=vmem, size = 0xa000, scoped, tag = 'scratch operand']
  #allocation5 [shape = 'f32[16,16]{1,0:T(8,128)}', space=vmem, size = 0x2000, scoped, tag = 'scratch operand']
  #allocation6 [shape = 'f32[6,16]{1,0:T(8,128)}', space=vmem, size = 0x1000, scoped, tag = 'scratch operand']
  %s0 = inlined_call_operand.vmem [shape: f32[2,484,3], index: 0, kind: input, shape index: {}]
  %s1 = inlined_call_operand.vmem [shape: f32[27,8], index: 1, kind: input, shape index: {}]
  %s2 = inlined_call_operand.vmem [shape: f32[1,8], index: 2, kind: input, shape index: {}]
  %s3 = inlined_call_operand.vmem [shape: f32[100,415], index: 3, kind: input, shape index: {}]
  %s4 = inlined_call_operand.vmem [shape: f32[72,16], index: 4, kind: input, shape index: {}]
  %s5 = inlined_call_operand.vmem [shape: f32[1,16], index: 5, kind: input, shape index: {}]
  %s6 = inlined_call_operand.vmem [shape: f32[16,67], index: 6, kind: input, shape index: {}]
  %s7 = inlined_call_operand.vmem [shape: f32[144,16], index: 7, kind: input, shape index: {}]
  %s8 = inlined_call_operand.vmem [shape: f32[1,16], index: 8, kind: input, shape index: {}]
  %s9 = inlined_call_operand.vmem [shape: f32[64,64], index: 9, kind: input, shape index: {}]
  %s10 = inlined_call_operand.vmem [shape: f32[1,64], index: 10, kind: input, shape index: {}]
  %s11 = inlined_call_operand.vmem [shape: f32[64,128], index: 11, kind: input, shape index: {}]
  %s12 = inlined_call_operand.vmem [shape: f32[1,128], index: 12, kind: input, shape index: {}]
  %s13 = inlined_call_operand.hbm [shape: f32[2,1,128], index: 13, kind: output, shape index: {}]
  %s14 = sld [smem:[#allocation0]]
  $region85: #{conv3net_forward.1} parent=0
    _
  %s16 = ssub.s32 1, %s14
  %s17 = scalar_select 0, %s16, %s14
  $region1: #{conv3net_forward.1} parent=0
    #allocation7 [shape = 'u8[1024]{0}', space=vmem, size = 0x400, scoped, tag = 'output window, operand 0']
    #allocation8 [shape = 's32[2]{0}', space=sflag, size = 0x8, scoped, tag = 'scoped memory for conv3net_forward.1']
    %18 = vsyncpa [#allocation8], 0
    %s19 = scalar_lea.sflag [#allocation8], 1
    %20 = vsyncpa %s19, 0
    loop: start=0, step=1, limit=4
    $region2: #{conv3net_forward.1} parent=1 // loop_pre_header
      _
    $region3: #{conv3net_forward.1} parent=1 // loop_header
      %s22 = sphi 0, %s26
      %p23 = scmp.ge.s32.totalorder %s22, 4
      %s32 = sphi 0, %s34
      %s35 = sphi 0, %s32
      %s36 = sphi 0, %s35
      %s52 = sphi 0, %s36
      %s56 = sphi 0, %s56
      %s58 = sphi 0, %s56
      %s59 = sphi 0, %s58
      %s73 = sphi 0, %s59
      %s77 = sphi 0, %s77
      %s79 = sphi 0, %s77
      %s80 = sphi 0, %s79
      %s94 = sphi 0, %s80
      %s98 = sphi 0, %s98
      %s100 = sphi 0, %s98
      %s101 = sphi 0, %s100
      %s115 = sphi 0, %s101
      %s119 = sphi 0, %s119
      %s121 = sphi 0, %s119
      %s122 = sphi 0, %s121
      %s136 = sphi 0, %s122
      %s140 = sphi 0, %s140
      %s142 = sphi 0, %s140
      %s143 = sphi 0, %s142
      %s157 = sphi 0, %s143
      %s161 = sphi 0, %s161
      %s163 = sphi 0, %s161
      %s164 = sphi 0, %s163
      %s178 = sphi 0, %s164
      %s182 = sphi 0, %s182
      %s184 = sphi 0, %s182
      %s185 = sphi 0, %s184
      %s199 = sphi 0, %s185
      %s203 = sphi 0, %s203
      %s205 = sphi 0, %s203
      %s206 = sphi 0, %s205
      %s220 = sphi 0, %s206
      %s224 = sphi 0, %s224
      %s226 = sphi 0, %s224
      %s227 = sphi 0, %s226
      %s241 = sphi 0, %s227
      %s245 = sphi 0, %s245
      %s247 = sphi 0, %s245
      %s248 = sphi 0, %s247
      %s262 = sphi 0, %s248
      %s266 = sphi 0, %s266
      %s268 = sphi 0, %s266
      %s269 = sphi 0, %s268
      %s283 = sphi 0, %s269
      %s287 = sphi 0, %s287
      %s289 = sphi 0, %s287
      %s290 = sphi 0, %s289
      %s304 = sphi 0, %s290
      %s310 = sphi 0, %s312
      %s313 = sphi 0, %s310
      %s314 = sphi 0, %s313
      %s330 = sphi 0, %s314
    $region4: #{conv3net_forward.1} parent=1 // loop_header_branch
      %25 = sbr.rel (%p23) target = $region8
    $region5: #{conv3net_forward.1} parent=1 // loop_body
      %s27 = ssub.s32 %s22, 1
      %s28 = ssub.s32 %s22, 2
      %s29 = sadd.s32 %s22, 1
      %s30 = ssub.s32 %s22, %s29
      %p31 = scmp.eq.s32.totalorder %s30, 0
      %s33 = sadd.s32 %s32, 1
      %s34 = scalar_select %p31, %s32, %s33
      %p37 = pneg %p31
      %p38 = scmp.eq.s32.totalorder %s22, 1
      %p39 = por %p37, %p38
      %p40 = scmp.ne.s32.totalorder %s32, %s35
      %p41 = scmp.eq.s32.totalorder %s22, 0
      %p42 = por %p40, %p41
      %p43 = scmp.ne.s32.totalorder %s32, %s35
      %p44 = scmp.eq.s32.totalorder %s27, 1
      %p45 = por %p43, %p44
      %p46 = scmp.ne.s32.totalorder %s35, %s36
      %p47 = scmp.eq.s32.totalorder %s27, 0
      %p48 = por %p46, %p47
      %p49 = scmp.ne.s32.totalorder %s35, %s36
      %p50 = scmp.eq.s32.totalorder %s28, 1
      %p51 = por %p49, %p50
      %p53 = scmp.ne.s32.totalorder %s36, %s52
      %p54 = scmp.eq.s32.totalorder %s28, 0
      %p55 = por %p53, %p54
      %s57 = sadd.s32 %s56, 1
      %p60 = scmp.eq.s32.totalorder %s22, 1
      %p61 = scmp.ne.s32.totalorder %s56, %s58
      %p62 = scmp.eq.s32.totalorder %s22, 0
      %p63 = por %p61, %p62
      %p64 = scmp.ne.s32.totalorder %s56, %s58
      %p65 = scmp.eq.s32.totalorder %s27, 1
      %p66 = por %p64, %p65
      %p67 = scmp.ne.s32.totalorder %s58, %s59
      %p68 = scmp.eq.s32.totalorder %s27, 0
      %p69 = por %p67, %p68
      %p70 = scmp.ne.s32.totalorder %s58, %s59
      %p71 = scmp.eq.s32.totalorder %s28, 1
      %p72 = por %p70, %p71
      %p74 = scmp.ne.s32.totalorder %s59, %s73
      %p75 = scmp.eq.s32.totalorder %s28, 0
      %p76 = por %p74, %p75
      %s78 = sadd.s32 %s77, 1
      %p81 = scmp.eq.s32.totalorder %s22, 1
      %p82 = scmp.ne.s32.totalorder %s77, %s79
      %p83 = scmp.eq.s32.totalorder %s22, 0
      %p84 = por %p82, %p83
      %p85 = scmp.ne.s32.totalorder %s77, %s79
      %p86 = scmp.eq.s32.totalorder %s27, 1
      %p87 = por %p85, %p86
      %p88 = scmp.ne.s32.totalorder %s79, %s80
      %p89 = scmp.eq.s32.totalorder %s27, 0
      %p90 = por %p88, %p89
      %p91 = scmp.ne.s32.totalorder %s79, %s80
      %p92 = scmp.eq.s32.totalorder %s28, 1
      %p93 = por %p91, %p92
      %p95 = scmp.ne.s32.totalorder %s80, %s94
      %p96 = scmp.eq.s32.totalorder %s28, 0
      %p97 = por %p95, %p96
      %s99 = sadd.s32 %s98, 1
      %p102 = scmp.eq.s32.totalorder %s22, 1
      %p103 = scmp.ne.s32.totalorder %s98, %s100
      %p104 = scmp.eq.s32.totalorder %s22, 0
      %p105 = por %p103, %p104
      %p106 = scmp.ne.s32.totalorder %s98, %s100
      %p107 = scmp.eq.s32.totalorder %s27, 1
      %p108 = por %p106, %p107
      %p109 = scmp.ne.s32.totalorder %s100, %s101
      %p110 = scmp.eq.s32.totalorder %s27, 0
      %p111 = por %p109, %p110
      %p112 = scmp.ne.s32.totalorder %s100, %s101
      %p113 = scmp.eq.s32.totalorder %s28, 1
      %p114 = por %p112, %p113
      %p116 = scmp.ne.s32.totalorder %s101, %s115
      %p117 = scmp.eq.s32.totalorder %s28, 0
      %p118 = por %p116, %p117
      %s120 = sadd.s32 %s119, 1
      %p123 = scmp.eq.s32.totalorder %s22, 1
      %p124 = scmp.ne.s32.totalorder %s119, %s121
      %p125 = scmp.eq.s32.totalorder %s22, 0
      %p126 = por %p124, %p125
      %p127 = scmp.ne.s32.totalorder %s119, %s121
      %p128 = scmp.eq.s32.totalorder %s27, 1
      %p129 = por %p127, %p128
      %p130 = scmp.ne.s32.totalorder %s121, %s122
      %p131 = scmp.eq.s32.totalorder %s27, 0
      %p132 = por %p130, %p131
      %p133 = scmp.ne.s32.totalorder %s121, %s122
      %p134 = scmp.eq.s32.totalorder %s28, 1
      %p135 = por %p133, %p134
      %p137 = scmp.ne.s32.totalorder %s122, %s136
      %p138 = scmp.eq.s32.totalorder %s28, 0
      %p139 = por %p137, %p138
      %s141 = sadd.s32 %s140, 1
      %p144 = scmp.eq.s32.totalorder %s22, 1
      %p145 = scmp.ne.s32.totalorder %s140, %s142
      %p146 = scmp.eq.s32.totalorder %s22, 0
      %p147 = por %p145, %p146
      %p148 = scmp.ne.s32.totalorder %s140, %s142
      %p149 = scmp.eq.s32.totalorder %s27, 1
      %p150 = por %p148, %p149
      %p151 = scmp.ne.s32.totalorder %s142, %s143
      %p152 = scmp.eq.s32.totalorder %s27, 0
      %p153 = por %p151, %p152
      %p154 = scmp.ne.s32.totalorder %s142, %s143
      %p155 = scmp.eq.s32.totalorder %s28, 1
      %p156 = por %p154, %p155
      %p158 = scmp.ne.s32.totalorder %s143, %s157
      %p159 = scmp.eq.s32.totalorder %s28, 0
      %p160 = por %p158, %p159
      %s162 = sadd.s32 %s161, 1
      %p165 = scmp.eq.s32.totalorder %s22, 1
      %p166 = scmp.ne.s32.totalorder %s161, %s163
      %p167 = scmp.eq.s32.totalorder %s22, 0
      %p168 = por %p166, %p167
      %p169 = scmp.ne.s32.totalorder %s161, %s163
      %p170 = scmp.eq.s32.totalorder %s27, 1
      %p171 = por %p169, %p170
      %p172 = scmp.ne.s32.totalorder %s163, %s164
      %p173 = scmp.eq.s32.totalorder %s27, 0
      %p174 = por %p172, %p173
      %p175 = scmp.ne.s32.totalorder %s163, %s164
      %p176 = scmp.eq.s32.totalorder %s28, 1
      %p177 = por %p175, %p176
      %p179 = scmp.ne.s32.totalorder %s164, %s178
      %p180 = scmp.eq.s32.totalorder %s28, 0
      %p181 = por %p179, %p180
      %s183 = sadd.s32 %s182, 1
      %p186 = scmp.eq.s32.totalorder %s22, 1
      %p187 = scmp.ne.s32.totalorder %s182, %s184
      %p188 = scmp.eq.s32.totalorder %s22, 0
      %p189 = por %p187, %p188
      %p190 = scmp.ne.s32.totalorder %s182, %s184
      %p191 = scmp.eq.s32.totalorder %s27, 1
      %p192 = por %p190, %p191
      %p193 = scmp.ne.s32.totalorder %s184, %s185
      %p194 = scmp.eq.s32.totalorder %s27, 0
      %p195 = por %p193, %p194
      %p196 = scmp.ne.s32.totalorder %s184, %s185
      %p197 = scmp.eq.s32.totalorder %s28, 1
      %p198 = por %p196, %p197
      %p200 = scmp.ne.s32.totalorder %s185, %s199
      %p201 = scmp.eq.s32.totalorder %s28, 0
      %p202 = por %p200, %p201
      %s204 = sadd.s32 %s203, 1
      %p207 = scmp.eq.s32.totalorder %s22, 1
      %p208 = scmp.ne.s32.totalorder %s203, %s205
      %p209 = scmp.eq.s32.totalorder %s22, 0
      %p210 = por %p208, %p209
      %p211 = scmp.ne.s32.totalorder %s203, %s205
      %p212 = scmp.eq.s32.totalorder %s27, 1
      %p213 = por %p211, %p212
      %p214 = scmp.ne.s32.totalorder %s205, %s206
      %p215 = scmp.eq.s32.totalorder %s27, 0
      %p216 = por %p214, %p215
      %p217 = scmp.ne.s32.totalorder %s205, %s206
      %p218 = scmp.eq.s32.totalorder %s28, 1
      %p219 = por %p217, %p218
      %p221 = scmp.ne.s32.totalorder %s206, %s220
      %p222 = scmp.eq.s32.totalorder %s28, 0
      %p223 = por %p221, %p222
      %s225 = sadd.s32 %s224, 1
      %p228 = scmp.eq.s32.totalorder %s22, 1
      %p229 = scmp.ne.s32.totalorder %s224, %s226
      %p230 = scmp.eq.s32.totalorder %s22, 0
      %p231 = por %p229, %p230
      %p232 = scmp.ne.s32.totalorder %s224, %s226
      %p233 = scmp.eq.s32.totalorder %s27, 1
      %p234 = por %p232, %p233
      %p235 = scmp.ne.s32.totalorder %s226, %s227
      %p236 = scmp.eq.s32.totalorder %s27, 0
      %p237 = por %p235, %p236
      %p238 = scmp.ne.s32.totalorder %s226, %s227
      %p239 = scmp.eq.s32.totalorder %s28, 1
      %p240 = por %p238, %p239
      %p242 = scmp.ne.s32.totalorder %s227, %s241
      %p243 = scmp.eq.s32.totalorder %s28, 0
      %p244 = por %p242, %p243
      %s246 = sadd.s32 %s245, 1
      %p249 = scmp.eq.s32.totalorder %s22, 1
      %p250 = scmp.ne.s32.totalorder %s245, %s247
      %p251 = scmp.eq.s32.totalorder %s22, 0
      %p252 = por %p250, %p251
      %p253 = scmp.ne.s32.totalorder %s245, %s247
      %p254 = scmp.eq.s32.totalorder %s27, 1
      %p255 = por %p253, %p254
      %p256 = scmp.ne.s32.totalorder %s247, %s248
      %p257 = scmp.eq.s32.totalorder %s27, 0
      %p258 = por %p256, %p257
      %p259 = scmp.ne.s32.totalorder %s247, %s248
      %p260 = scmp.eq.s32.totalorder %s28, 1
      %p261 = por %p259, %p260
      %p263 = scmp.ne.s32.totalorder %s248, %s262
      %p264 = scmp.eq.s32.totalorder %s28, 0
      %p265 = por %p263, %p264
      %s267 = sadd.s32 %s266, 1
      %p270 = scmp.eq.s32.totalorder %s22, 1
      %p271 = scmp.ne.s32.totalorder %s266, %s268
      %p272 = scmp.eq.s32.totalorder %s22, 0
      %p273 = por %p271, %p272
      %p274 = scmp.ne.s32.totalorder %s266, %s268
      %p275 = scmp.eq.s32.totalorder %s27, 1
      %p276 = por %p274, %p275
      %p277 = scmp.ne.s32.totalorder %s268, %s269
      %p278 = scmp.eq.s32.totalorder %s27, 0
      %p279 = por %p277, %p278
      %p280 = scmp.ne.s32.totalorder %s268, %s269
      %p281 = scmp.eq.s32.totalorder %s28, 1
      %p282 = por %p280, %p281
      %p284 = scmp.ne.s32.totalorder %s269, %s283
      %p285 = scmp.eq.s32.totalorder %s28, 0
      %p286 = por %p284, %p285
      %s288 = sadd.s32 %s287, 1
      %p291 = scmp.eq.s32.totalorder %s22, 1
      %p292 = scmp.ne.s32.totalorder %s287, %s289
      %p293 = scmp.eq.s32.totalorder %s22, 0
      %p294 = por %p292, %p293
      %p295 = scmp.ne.s32.totalorder %s287, %s289
      %p296 = scmp.eq.s32.totalorder %s27, 1
      %p297 = por %p295, %p296
      %p298 = scmp.ne.s32.totalorder %s289, %s290
      %p299 = scmp.eq.s32.totalorder %s27, 0
      %p300 = por %p298, %p299
      %p301 = scmp.ne.s32.totalorder %s289, %s290
      %p302 = scmp.eq.s32.totalorder %s28, 1
      %p303 = por %p301, %p302
      %p305 = scmp.ne.s32.totalorder %s290, %s304
      %p306 = scmp.eq.s32.totalorder %s28, 0
      %p307 = por %p305, %p306
      %s308 = ssub.s32 %s22, %s29
      %p309 = scmp.eq.s32.totalorder %s308, 0
      %s311 = sadd.s32 %s310, 1
      %s312 = scalar_select %p309, %s310, %s311
      %p315 = pneg %p309
      %p316 = scmp.eq.s32.totalorder %s22, 1
      %p317 = por %p315, %p316
      %p318 = scmp.ne.s32.totalorder %s310, %s313
      %p319 = scmp.eq.s32.totalorder %s22, 0
      %p320 = por %p318, %p319
      %p321 = scmp.ne.s32.totalorder %s310, %s313
      %p322 = scmp.eq.s32.totalorder %s27, 1
      %p323 = por %p321, %p322
      %p324 = scmp.ne.s32.totalorder %s313, %s314
      %p325 = scmp.eq.s32.totalorder %s27, 0
      %p326 = por %p324, %p325
      %p327 = scmp.ne.s32.totalorder %s313, %s314
      %p328 = scmp.eq.s32.totalorder %s28, 1
      %p329 = por %p327, %p328
      %p331 = scmp.ne.s32.totalorder %s314, %s330
      %p332 = scmp.eq.s32.totalorder %s28, 0
      %p333 = por %p331, %p332
      %p334 = scmp.le.s32.totalorder 1, %s22
      %p335 = scmp.lt.s32.totalorder %s22, 3
      %p336 = pnand %p334, %p335
      %p337 = pneg %p336
      // Predicated region
      $region9: #{conv3net_forward.1} parent=5 // pred_check
        _
      $region10: #{conv3net_forward.1} parent=5 // pred_check_branch
        %339 = sbr.rel (%p336) target = $region12
      $region11: #{conv3net_forward.1} parent=5 // pred_region
        %s340 = ssub.s32 %s22, 1
        // Predicated region
        $region13: #{conv3net_forward.1} parent=11 // pred_check
          %p341 = pneg %p69
        $region14: #{conv3net_forward.1} parent=11 // pred_check_branch
          %343 = sbr.rel (%p341) target = $region16
        $region15: #{conv3net_forward.1} parent=11 // pred_region
          _
        $region16: #{conv3net_forward.1} parent=11 // pred_fallthru
          _
        // Predicated region
        $region17: #{conv3net_forward.1} parent=11 // pred_check
          %p344 = pneg %p90
        $region18: #{conv3net_forward.1} parent=11 // pred_check_branch
          %346 = sbr.rel (%p344) target = $region20
        $region19: #{conv3net_forward.1} parent=11 // pred_region
          _
        $region20: #{conv3net_forward.1} parent=11 // pred_fallthru
          _
        // Predicated region
        $region21: #{conv3net_forward.1} parent=11 // pred_check
          %p347 = pneg %p111
        $region22: #{conv3net_forward.1} parent=11 // pred_check_branch
          %349 = sbr.rel (%p347) target = $region24
        $region23: #{conv3net_forward.1} parent=11 // pred_region
          _
        $region24: #{conv3net_forward.1} parent=11 // pred_fallthru
          _
        // Predicated region
        $region25: #{conv3net_forward.1} parent=11 // pred_check
          %p350 = pneg %p132
        $region26: #{conv3net_forward.1} parent=11 // pred_check_branch
          %352 = sbr.rel (%p350) target = $region28
        $region27: #{conv3net_forward.1} parent=11 // pred_region
          _
        $region28: #{conv3net_forward.1} parent=11 // pred_fallthru
          _
        // Predicated region
        $region29: #{conv3net_forward.1} parent=11 // pred_check
          %p353 = pneg %p153
        $region30: #{conv3net_forward.1} parent=11 // pred_check_branch
          %355 = sbr.rel (%p353) target = $region32
        $region31: #{conv3net_forward.1} parent=11 // pred_region
          _
        $region32: #{conv3net_forward.1} parent=11 // pred_fallthru
          _
        // Predicated region
        $region33: #{conv3net_forward.1} parent=11 // pred_check
          %p356 = pneg %p174
        $region34: #{conv3net_forward.1} parent=11 // pred_check_branch
          %358 = sbr.rel (%p356) target = $region36
        $region35: #{conv3net_forward.1} parent=11 // pred_region
          _
        $region36: #{conv3net_forward.1} parent=11 // pred_fallthru
          _
        // Predicated region
        $region37: #{conv3net_forward.1} parent=11 // pred_check
          %p359 = pneg %p195
        $region38: #{conv3net_forward.1} parent=11 // pred_check_branch
          %361 = sbr.rel (%p359) target = $region40
        $region39: #{conv3net_forward.1} parent=11 // pred_region
          _
        $region40: #{conv3net_forward.1} parent=11 // pred_fallthru
          _
        // Predicated region
        $region41: #{conv3net_forward.1} parent=11 // pred_check
          %p362 = pneg %p216
        $region42: #{conv3net_forward.1} parent=11 // pred_check_branch
          %364 = sbr.rel (%p362) target = $region44
        $region43: #{conv3net_forward.1} parent=11 // pred_region
          _
        $region44: #{conv3net_forward.1} parent=11 // pred_fallthru
          _
        // Predicated region
        $region45: #{conv3net_forward.1} parent=11 // pred_check
          %p365 = pneg %p237
        $region46: #{conv3net_forward.1} parent=11 // pred_check_branch
          %367 = sbr.rel (%p365) target = $region48
        $region47: #{conv3net_forward.1} parent=11 // pred_region
          _
        $region48: #{conv3net_forward.1} parent=11 // pred_fallthru
          _
        // Predicated region
        $region49: #{conv3net_forward.1} parent=11 // pred_check
          %p368 = pneg %p258
        $region50: #{conv3net_forward.1} parent=11 // pred_check_branch
          %370 = sbr.rel (%p368) target = $region52
        $region51: #{conv3net_forward.1} parent=11 // pred_region
          _
        $region52: #{conv3net_forward.1} parent=11 // pred_fallthru
          _
        // Predicated region
        $region53: #{conv3net_forward.1} parent=11 // pred_check
          %p371 = pneg %p279
        $region54: #{conv3net_forward.1} parent=11 // pred_check_branch
          %373 = sbr.rel (%p371) target = $region56
        $region55: #{conv3net_forward.1} parent=11 // pred_region
          _
        $region56: #{conv3net_forward.1} parent=11 // pred_fallthru
          _
        // Predicated region
        $region57: #{conv3net_forward.1} parent=11 // pred_check
          %p374 = pneg %p300
        $region58: #{conv3net_forward.1} parent=11 // pred_check_branch
          %376 = sbr.rel (%p374) target = $region60
        $region59: #{conv3net_forward.1} parent=11 // pred_region
          _
        $region60: #{conv3net_forward.1} parent=11 // pred_fallthru
          _
      $region12: #{conv3net_forward.1} parent=5 // pred_fallthru
        _
      %p377 = scmp.lt.s32.totalorder %s22, 2
      // Predicated region
      $region61: #{conv3net_forward.1} parent=5 // pred_check
        %p378 = pneg %p377
      $region62: #{conv3net_forward.1} parent=5 // pred_check_branch
        %380 = sbr.rel (%p378) target = $region64
      $region63: #{conv3net_forward.1} parent=5 // pred_region
        // Predicated region
        $region65: #{conv3net_forward.1} parent=63 // pred_check
          %p381 = pneg %p42
        $region66: #{conv3net_forward.1} parent=63 // pred_check_branch
          %383 = sbr.rel (%p381) target = $region68
        $region67: #{conv3net_forward.1} parent=63 // pred_region
          %p384 = scmp.lt.s32.totalorder %s22, 1
          %s385 = scalar_select %p384, %s22, 1
          %s386 = smul.addr %s385, 61
          %s387 = smul.addr %s386, 8
          %s388 = scalar_lea.vmem %s0, %s387
        $region68: #{conv3net_forward.1} parent=63 // pred_fallthru
          _
      $region64: #{conv3net_forward.1} parent=5 // pred_fallthru
        _
      %p389 = scmp.le.s32.totalorder 1, %s22
      %p390 = scmp.lt.s32.totalorder %s22, 3
      %p391 = pnand %p389, %p390
      %p392 = pneg %p391
      // Predicated region
      $region69: #{conv3net_forward.1} parent=5 // pred_check
        _
      $region70: #{conv3net_forward.1} parent=5 // pred_check_branch
        %394 = sbr.rel (%p391) target = $region72
      $region71: #{conv3net_forward.1} parent=5 // pred_region
        %s395 = ssub.s32 %s22, 1
        %p396 = scmp.lt.s32.totalorder %s27, 1
        %s397 = scalar_select %p396, %s27, 1
        %s398 = smul.addr %s397, 61
        %s399 = smul.addr %s398, 8
        %s400 = scalar_lea.vmem %s0, %s399
        %p401 = pneg %p48
        %p402 = pneg %p45
        %p403 = pneg %p69
        %p404 = pneg %p66
        %p405 = pneg %p90
        %p406 = pneg %p87
        %p407 = pneg %p111
        %p408 = pneg %p108
        %p409 = pneg %p132
        %p410 = pneg %p129
        %p411 = pneg %p153
        %p412 = pneg %p150
        %p413 = pneg %p174
        %p414 = pneg %p171
        %p415 = pneg %p195
        %p416 = pneg %p192
        %p417 = pneg %p216
        %p418 = pneg %p213
        %p419 = pneg %p237
        %p420 = pneg %p234
        %p421 = pneg %p258
        %p422 = pneg %p255
        %p423 = pneg %p279
        %p424 = pneg %p276
        %p425 = pneg %p300
        %p426 = pneg %p297
        %p427 = pneg %p326
        %p428 = pneg %p323
        %s429 = sand.u32 %s313, 1
        %s430 = scalar_lea.sflag [#allocation8], %s429
        %s431 = sand.u32 %s313, 1
        %s432 = scalar_lea.vmem [#allocation7], %s431
        %p433 = scmp.lt.s32.totalorder %s27, 1
        %s434 = scalar_select %p433, %s27, 1
        %s435 = smul.addr %s434, 61
        %s436 = smul.addr %s435, 8
        %s437 = scalar_lea.vmem %s0, %s436
        %v438 = vld [vmem:[%s437] sm:$0xff]
        %v439 = vld [vmem:[%s437 + $0x8] sm:$0xff]
        %v440 = vld [vmem:[%s437 + $0x10] sm:$0xff]
        %v441 = vld [vmem:[%s437 + $0x18] sm:$0xff]
        %v442 = vld [vmem:[%s437 + $0x20] sm:$0xff]
        %v443 = vld [vmem:[%s437 + $0x28] sm:$0xff]
        %v444 = vld [vmem:[%s437 + $0x30] sm:$0xff]
        %v445 = vld [vmem:[%s437 + $0x38] sm:$0xff]
        %v446 = vld [vmem:[%s437 + $0x40] sm:$0xff]
        %v447 = vld [vmem:[%s437 + $0x48] sm:$0xff]
        %v448 = vld [vmem:[%s437 + $0x50] sm:$0xff]
        %v449 = vld [vmem:[%s437 + $0x58] sm:$0xff]
        %v450 = vld [vmem:[%s437 + $0x60] sm:$0xff]
        %v451 = vld [vmem:[%s437 + $0x68] sm:$0xff]
        %v452 = vld [vmem:[%s437 + $0x70] sm:$0xff]
        %v453 = vld [vmem:[%s437 + $0x78] sm:$0xff]
        %v454 = vld [vmem:[%s437 + $0x80] sm:$0xff]
        %v455 = vld [vmem:[%s437 + $0x88] sm:$0xff]
        %v456 = vld [vmem:[%s437 + $0x90] sm:$0xff]
        %v457 = vld [vmem:[%s437 + $0x98] sm:$0xff]
        %v458 = vld [vmem:[%s437 + $0xa0] sm:$0xff]
        %v459 = vld [vmem:[%s437 + $0xa8] sm:$0xff]
        %v460 = vld [vmem:[%s437 + $0xb0] sm:$0xff]
        %v461 = vld [vmem:[%s437 + $0xb8] sm:$0xff]
        %v462 = vld [vmem:[%s437 + $0xc0] sm:$0xff]
        %v463 = vld [vmem:[%s437 + $0xc8] sm:$0xff]
        %v464 = vld [vmem:[%s437 + $0xd0] sm:$0xff]
        %v465 = vld [vmem:[%s437 + $0xd8] sm:$0xff]
        %v466 = vld [vmem:[%s437 + $0xe0] sm:$0xff]
        %v467 = vld [vmem:[%s437 + $0xe8] sm:$0xff]
        %v468 = vld [vmem:[%s437 + $0xf0] sm:$0xff]
        %v469 = vld [vmem:[%s437 + $0xf8] sm:$0xff]
        %v470 = vld [vmem:[%s437 + $0x100] sm:$0xff]
        %v471 = vld [vmem:[%s437 + $0x108] sm:$0xff]
        %v472 = vld [vmem:[%s437 + $0x110] sm:$0xff]
        %v473 = vld [vmem:[%s437 + $0x118] sm:$0xff]
        %v474 = vld [vmem:[%s437 + $0x120] sm:$0xff]
        %v475 = vld [vmem:[%s437 + $0x128] sm:$0xff]
        %v476 = vld [vmem:[%s437 + $0x130] sm:$0xff]
        %v477 = vld [vmem:[%s437 + $0x138] sm:$0xff]
        %v478 = vld [vmem:[%s437 + $0x140] sm:$0xff]
        %v479 = vld [vmem:[%s437 + $0x148] sm:$0xff]
        %v480 = vld [vmem:[%s437 + $0x150] sm:$0xff]
        %v481 = vld [vmem:[%s437 + $0x158] sm:$0xff]
        %v482 = vld [vmem:[%s437 + $0x160] sm:$0xff]
        %v483 = vld [vmem:[%s437 + $0x168] sm:$0xff]
        %v484 = vld [vmem:[%s437 + $0x170] sm:$0xff]
        %v485 = vld [vmem:[%s437 + $0x178] sm:$0xff]
        %v486 = vld [vmem:[%s437 + $0x180] sm:$0xff]
        %v487 = vld [vmem:[%s437 + $0x188] sm:$0xff]
        %v488 = vld [vmem:[%s437 + $0x190] sm:$0xff]
        %v489 = vld [vmem:[%s437 + $0x198] sm:$0xff]
        %v490 = vld [vmem:[%s437 + $0x1a0] sm:$0xff]
        %v491 = vld [vmem:[%s437 + $0x1a8] sm:$0xff]
        %v492 = vld [vmem:[%s437 + $0x1b0] sm:$0x3f]
        %v493 = vld [vmem:[%s437 + $0x1] sm:$0xff]
        %v494 = vld [vmem:[%s437 + $0x9] sm:$0xff]
        %v495 = vld [vmem:[%s437 + $0x11] sm:$0xff]
        %v496 = vld [vmem:[%s437 + $0x19] sm:$0xff]
        %v497 = vld [vmem:[%s437 + $0x21] sm:$0xff]
        %v498 = vld [vmem:[%s437 + $0x29] sm:$0xff]
        %v499 = vld [vmem:[%s437 + $0x31] sm:$0xff]
        %v500 = vld [vmem:[%s437 + $0x39] sm:$0xff]
        %v501 = vld [vmem:[%s437 + $0x41] sm:$0xff]
        %v502 = vld [vmem:[%s437 + $0x49] sm:$0xff]
        %v503 = vld [vmem:[%s437 + $0x51] sm:$0xff]
        %v504 = vld [vmem:[%s437 + $0x59] sm:$0xff]
        %v505 = vld [vmem:[%s437 + $0x61] sm:$0xff]
        %v506 = vld [vmem:[%s437 + $0x69] sm:$0xff]
        %v507 = vld [vmem:[%s437 + $0x71] sm:$0xff]
        %v508 = vld [vmem:[%s437 + $0x79] sm:$0xff]
        %v509 = vld [vmem:[%s437 + $0x81] sm:$0xff]
        %v510 = vld [vmem:[%s437 + $0x89] sm:$0xff]
        %v511 = vld [vmem:[%s437 + $0x91] sm:$0xff]
        %v512 = vld [vmem:[%s437 + $0x99] sm:$0xff]
        %v513 = vld [vmem:[%s437 + $0xa1] sm:$0xff]
        %v514 = vld [vmem:[%s437 + $0xa9] sm:$0xff]
        %v515 = vld [vmem:[%s437 + $0xb1] sm:$0xff]
        %v516 = vld [vmem:[%s437 + $0xb9] sm:$0xff]
        %v517 = vld [vmem:[%s437 + $0xc1] sm:$0xff]
        %v518 = vld [vmem:[%s437 + $0xc9] sm:$0xff]
        %v519 = vld [vmem:[%s437 + $0xd1] sm:$0xff]
        %v520 = vld [vmem:[%s437 + $0xd9] sm:$0xff]
        %v521 = vld [vmem:[%s437 + $0xe1] sm:$0xff]
        %v522 = vld [vmem:[%s437 + $0xe9] sm:$0xff]
        %v523 = vld [vmem:[%s437 + $0xf1] sm:$0xff]
        %v524 = vld [vmem:[%s437 + $0xf9] sm:$0xff]
        %v525 = vld [vmem:[%s437 + $0x101] sm:$0xff]
        %v526 = vld [vmem:[%s437 + $0x109] sm:$0xff]
        %v527 = vld [vmem:[%s437 + $0x111] sm:$0xff]
        %v528 = vld [vmem:[%s437 + $0x119] sm:$0xff]
        %v529 = vld [vmem:[%s437 + $0x121] sm:$0xff]
        %v530 = vld [vmem:[%s437 + $0x129] sm:$0xff]
        %v531 = vld [vmem:[%s437 + $0x131] sm:$0xff]
        %v532 = vld [vmem:[%s437 + $0x139] sm:$0xff]
        %v533 = vld [vmem:[%s437 + $0x141] sm:$0xff]
        %v534 = vld [vmem:[%s437 + $0x149] sm:$0xff]
        %v535 = vld [vmem:[%s437 + $0x151] sm:$0xff]
        %v536 = vld [vmem:[%s437 + $0x159] sm:$0xff]
        %v537 = vld [vmem:[%s437 + $0x161] sm:$0xff]
        %v538 = vld [vmem:[%s437 + $0x169] sm:$0xff]
        %v539 = vld [vmem:[%s437 + $0x171] sm:$0xff]
        %v540 = vld [vmem:[%s437 + $0x179] sm:$0xff]
        %v541 = vld [vmem:[%s437 + $0x181] sm:$0xff]
        %v542 = vld [vmem:[%s437 + $0x189] sm:$0xff]
        %v543 = vld [vmem:[%s437 + $0x191] sm:$0xff]
        %v544 = vld [vmem:[%s437 + $0x199] sm:$0xff]
        %v545 = vld [vmem:[%s437 + $0x1a1] sm:$0xff]
        %v546 = vld [vmem:[%s437 + $0x1a9] sm:$0xff]
        %v547 = vld [vmem:[%s437 + $0x1b1] sm:$0x3f]
        %v548 = vld [vmem:[%s437 + $0x2] sm:$0xff]
        %v549 = vld [vmem:[%s437 + $0xa] sm:$0xff]
        %v550 = vld [vmem:[%s437 + $0x12] sm:$0xff]
        %v551 = vld [vmem:[%s437 + $0x1a] sm:$0xff]
        %v552 = vld [vmem:[%s437 + $0x22] sm:$0xff]
        %v553 = vld [vmem:[%s437 + $0x2a] sm:$0xff]
        %v554 = vld [vmem:[%s437 + $0x32] sm:$0xff]
        %v555 = vld [vmem:[%s437 + $0x3a] sm:$0xff]
        %v556 = vld [vmem:[%s437 + $0x42] sm:$0xff]
        %v557 = vld [vmem:[%s437 + $0x4a] sm:$0xff]
        %v558 = vld [vmem:[%s437 + $0x52] sm:$0xff]
        %v559 = vld [vmem:[%s437 + $0x5a] sm:$0xff]
        %v560 = vld [vmem:[%s437 + $0x62] sm:$0xff]
        %v561 = vld [vmem:[%s437 + $0x6a] sm:$0xff]
        %v562 = vld [vmem:[%s437 + $0x72] sm:$0xff]
        %v563 = vld [vmem:[%s437 + $0x7a] sm:$0xff]
        %v564 = vld [vmem:[%s437 + $0x82] sm:$0xff]
        %v565 = vld [vmem:[%s437 + $0x8a] sm:$0xff]
        %v566 = vld [vmem:[%s437 + $0x92] sm:$0xff]
        %v567 = vld [vmem:[%s437 + $0x9a] sm:$0xff]
        %v568 = vld [vmem:[%s437 + $0xa2] sm:$0xff]
        %v569 = vld [vmem:[%s437 + $0xaa] sm:$0xff]
        %v570 = vld [vmem:[%s437 + $0xb2] sm:$0xff]
        %v571 = vld [vmem:[%s437 + $0xba] sm:$0xff]
        %v572 = vld [vmem:[%s437 + $0xc2] sm:$0xff]
        %v573 = vld [vmem:[%s437 + $0xca] sm:$0xff]
        %v574 = vld [vmem:[%s437 + $0xd2] sm:$0xff]
        %v575 = vld [vmem:[%s437 + $0xda] sm:$0xff]
        %v576 = vld [vmem:[%s437 + $0xe2] sm:$0xff]
        %v577 = vld [vmem:[%s437 + $0xea] sm:$0xff]
        %v578 = vld [vmem:[%s437 + $0xf2] sm:$0xff]
        %v579 = vld [vmem:[%s437 + $0xfa] sm:$0xff]
        %v580 = vld [vmem:[%s437 + $0x102] sm:$0xff]
        %v581 = vld [vmem:[%s437 + $0x10a] sm:$0xff]
        %v582 = vld [vmem:[%s437 + $0x112] sm:$0xff]
        %v583 = vld [vmem:[%s437 + $0x11a] sm:$0xff]
        %v584 = vld [vmem:[%s437 + $0x122] sm:$0xff]
        %v585 = vld [vmem:[%s437 + $0x12a] sm:$0xff]
        %v586 = vld [vmem:[%s437 + $0x132] sm:$0xff]
        %v587 = vld [vmem:[%s437 + $0x13a] sm:$0xff]
        %v588 = vld [vmem:[%s437 + $0x142] sm:$0xff]
        %v589 = vld [vmem:[%s437 + $0x14a] sm:$0xff]
        %v590 = vld [vmem:[%s437 + $0x152] sm:$0xff]
        %v591 = vld [vmem:[%s437 + $0x15a] sm:$0xff]
        %v592 = vld [vmem:[%s437 + $0x162] sm:$0xff]
        %v593 = vld [vmem:[%s437 + $0x16a] sm:$0xff]
        %v594 = vld [vmem:[%s437 + $0x172] sm:$0xff]
        %v595 = vld [vmem:[%s437 + $0x17a] sm:$0xff]
        %v596 = vld [vmem:[%s437 + $0x182] sm:$0xff]
        %v597 = vld [vmem:[%s437 + $0x18a] sm:$0xff]
        %v598 = vld [vmem:[%s437 + $0x192] sm:$0xff]
        %v599 = vld [vmem:[%s437 + $0x19a] sm:$0xff]
        %v600 = vld [vmem:[%s437 + $0x1a2] sm:$0xff]
        %v601 = vld [vmem:[%s437 + $0x1aa] sm:$0xff]
        %v602 = vld [vmem:[%s437 + $0x1b2] sm:$0x3f]
        %v603 = vld [vmem:[%s437 + $0x16] sm:$0xff]
        %v604 = vld [vmem:[%s437 + $0x1e] sm:$0xff]
        %v605 = vld [vmem:[%s437 + $0x26] sm:$0xff]
        %v606 = vld [vmem:[%s437 + $0x2e] sm:$0xff]
        %v607 = vld [vmem:[%s437 + $0x36] sm:$0xff]
        %v608 = vld [vmem:[%s437 + $0x3e] sm:$0xff]
        %v609 = vld [vmem:[%s437 + $0x46] sm:$0xff]
        %v610 = vld [vmem:[%s437 + $0x4e] sm:$0xff]
        %v611 = vld [vmem:[%s437 + $0x56] sm:$0xff]
        %v612 = vld [vmem:[%s437 + $0x5e] sm:$0xff]
        %v613 = vld [vmem:[%s437 + $0x66] sm:$0xff]
        %v614 = vld [vmem:[%s437 + $0x6e] sm:$0xff]
        %v615 = vld [vmem:[%s437 + $0x76] sm:$0xff]
        %v616 = vld [vmem:[%s437 + $0x7e] sm:$0xff]
        %v617 = vld [vmem:[%s437 + $0x86] sm:$0xff]
        %v618 = vld [vmem:[%s437 + $0x8e] sm:$0xff]
        %v619 = vld [vmem:[%s437 + $0x96] sm:$0xff]
        %v620 = vld [vmem:[%s437 + $0x9e] sm:$0xff]
        %v621 = vld [vmem:[%s437 + $0xa6] sm:$0xff]
        %v622 = vld [vmem:[%s437 + $0xae] sm:$0xff]
        %v623 = vld [vmem:[%s437 + $0xb6] sm:$0xff]
        %v624 = vld [vmem:[%s437 + $0xbe] sm:$0xff]
        %v625 = vld [vmem:[%s437 + $0xc6] sm:$0xff]
        %v626 = vld [vmem:[%s437 + $0xce] sm:$0xff]
        %v627 = vld [vmem:[%s437 + $0xd6] sm:$0xff]
        %v628 = vld [vmem:[%s437 + $0xde] sm:$0xff]
        %v629 = vld [vmem:[%s437 + $0xe6] sm:$0xff]
        %v630 = vld [vmem:[%s437 + $0xee] sm:$0xff]
        %v631 = vld [vmem:[%s437 + $0xf6] sm:$0xff]
        %v632 = vld [vmem:[%s437 + $0xfe] sm:$0xff]
        %v633 = vld [vmem:[%s437 + $0x106] sm:$0xff]
        %v634 = vld [vmem:[%s437 + $0x10e] sm:$0xff]
        %v635 = vld [vmem:[%s437 + $0x116] sm:$0xff]
        %v636 = vld [vmem:[%s437 + $0x11e] sm:$0xff]
        %v637 = vld [vmem:[%s437 + $0x126] sm:$0xff]
        %v638 = vld [vmem:[%s437 + $0x12e] sm:$0xff]
        %v639 = vld [vmem:[%s437 + $0x136] sm:$0xff]
        %v640 = vld [vmem:[%s437 + $0x13e] sm:$0xff]
        %v641 = vld [vmem:[%s437 + $0x146] sm:$0xff]
        %v642 = vld [vmem:[%s437 + $0x14e] sm:$0xff]
        %v643 = vld [vmem:[%s437 + $0x156] sm:$0xff]
        %v644 = vld [vmem:[%s437 + $0x15e] sm:$0xff]
        %v645 = vld [vmem:[%s437 + $0x166] sm:$0xff]
        %v646 = vld [vmem:[%s437 + $0x16e] sm:$0xff]
        %v647 = vld [vmem:[%s437 + $0x176] sm:$0xff]
        %v648 = vld [vmem:[%s437 + $0x17e] sm:$0xff]
        %v649 = vld [vmem:[%s437 + $0x186] sm:$0xff]
        %v650 = vld [vmem:[%s437 + $0x18e] sm:$0xff]
        %v651 = vld [vmem:[%s437 + $0x196] sm:$0xff]
        %v652 = vld [vmem:[%s437 + $0x19e] sm:$0xff]
        %v653 = vld [vmem:[%s437 + $0x1a6] sm:$0xff]
        %v654 = vld [vmem:[%s437 + $0x1ae] sm:$0xff]
        %v655 = vld [vmem:[%s437 + $0x1b6] sm:$0xff]
        %v656 = vld [vmem:[%s437 + $0x1be] sm:$0xff]
        %v657 = vld [vmem:[%s437 + $0x1c6] sm:$0x3f]
        %v658 = vld [vmem:[%s437 + $0x17] sm:$0xff]
        %v659 = vld [vmem:[%s437 + $0x1f] sm:$0xff]
        %v660 = vld [vmem:[%s437 + $0x27] sm:$0xff]
        %v661 = vld [vmem:[%s437 + $0x2f] sm:$0xff]
        %v662 = vld [vmem:[%s437 + $0x37] sm:$0xff]
        %v663 = vld [vmem:[%s437 + $0x3f] sm:$0xff]
        %v664 = vld [vmem:[%s437 + $0x47] sm:$0xff]
        %v665 = vld [vmem:[%s437 + $0x4f] sm:$0xff]
        %v666 = vld [vmem:[%s437 + $0x57] sm:$0xff]
        %v667 = vld [vmem:[%s437 + $0x5f] sm:$0xff]
        %v668 = vld [vmem:[%s437 + $0x67] sm:$0xff]
        %v669 = vld [vmem:[%s437 + $0x6f] sm:$0xff]
        %v670 = vld [vmem:[%s437 + $0x77] sm:$0xff]
        %v671 = vld [vmem:[%s437 + $0x7f] sm:$0xff]
        %v672 = vld [vmem:[%s437 + $0x87] sm:$0xff]
        %v673 = vld [vmem:[%s437 + $0x8f] sm:$0xff]
        %v674 = vld [vmem:[%s437 + $0x97] sm:$0xff]
        %v675 = vld [vmem:[%s437 + $0x9f] sm:$0xff]
        %v676 = vld [vmem:[%s437 + $0xa7] sm:$0xff]
        %v677 = vld [vmem:[%s437 + $0xaf] sm:$0xff]
        %v678 = vld [vmem:[%s437 + $0xb7] sm:$0xff]
        %v679 = vld [vmem:[%s437 + $0xbf] sm:$0xff]
        %v680 = vld [vmem:[%s437 + $0xc7] sm:$0xff]
        %v681 = vld [vmem:[%s437 + $0xcf] sm:$0xff]
        %v682 = vld [vmem:[%s437 + $0xd7] sm:$0xff]
        %v683 = vld [vmem:[%s437 + $0xdf] sm:$0xff]
        %v684 = vld [vmem:[%s437 + $0xe7] sm:$0xff]
        %v685 = vld [vmem:[%s437 + $0xef] sm:$0xff]
        %v686 = vld [vmem:[%s437 + $0xf7] sm:$0xff]
        %v687 = vld [vmem:[%s437 + $0xff] sm:$0xff]
        %v688 = vld [vmem:[%s437 + $0x107] sm:$0xff]
        %v689 = vld [vmem:[%s437 + $0x10f] sm:$0xff]
        %v690 = vld [vmem:[%s437 + $0x117] sm:$0xff]
        %v691 = vld [vmem:[%s437 + $0x11f] sm:$0xff]
        %v692 = vld [vmem:[%s437 + $0x127] sm:$0xff]
        %v693 = vld [vmem:[%s437 + $0x12f] sm:$0xff]
        %v694 = vld [vmem:[%s437 + $0x137] sm:$0xff]
        %v695 = vld [vmem:[%s437 + $0x13f] sm:$0xff]
        %v696 = vld [vmem:[%s437 + $0x147] sm:$0xff]
        %v697 = vld [vmem:[%s437 + $0x14f] sm:$0xff]
        %v698 = vld [vmem:[%s437 + $0x157] sm:$0xff]
        %v699 = vld [vmem:[%s437 + $0x15f] sm:$0xff]
        %v700 = vld [vmem:[%s437 + $0x167] sm:$0xff]
        %v701 = vld [vmem:[%s437 + $0x16f] sm:$0xff]
        %v702 = vld [vmem:[%s437 + $0x177] sm:$0xff]
        %v703 = vld [vmem:[%s437 + $0x17f] sm:$0xff]
        %v704 = vld [vmem:[%s437 + $0x187] sm:$0xff]
        %v705 = vld [vmem:[%s437 + $0x18f] sm:$0xff]
        %v706 = vld [vmem:[%s437 + $0x197] sm:$0xff]
        %v707 = vld [vmem:[%s437 + $0x19f] sm:$0xff]
        %v708 = vld [vmem:[%s437 + $0x1a7] sm:$0xff]
        %v709 = vld [vmem:[%s437 + $0x1af] sm:$0xff]
        %v710 = vld [vmem:[%s437 + $0x1b7] sm:$0xff]
        %v711 = vld [vmem:[%s437 + $0x1bf] sm:$0xff]
        %v712 = vld [vmem:[%s437 + $0x1c7] sm:$0x3f]
        %v713 = vld [vmem:[%s437 + $0x1b0] sm:$0xff]
        %v714 = vld [vmem:[%s437 + $0x1b8] sm:$0xff]
        %v715 = vld [vmem:[%s437 + $0x1c0] sm:$0xff]
        %v716 = vld [vmem:[%s437 + $0x1c8] sm:$0x3f]
        %v717 = vld [vmem:[%s437 + $0x2c] sm:$0xff]
        %v718 = vld [vmem:[%s437 + $0x34] sm:$0xff]
        %v719 = vld [vmem:[%s437 + $0x3c] sm:$0xff]
        %v720 = vld [vmem:[%s437 + $0x44] sm:$0xff]
        %v721 = vld [vmem:[%s437 + $0x4c] sm:$0xff]
        %v722 = vld [vmem:[%s437 + $0x54] sm:$0xff]
        %v723 = vld [vmem:[%s437 + $0x5c] sm:$0xff]
        %v724 = vld [vmem:[%s437 + $0x64] sm:$0xff]
        %v725 = vld [vmem:[%s437 + $0x6c] sm:$0xff]
        %v726 = vld [vmem:[%s437 + $0x74] sm:$0xff]
        %v727 = vld [vmem:[%s437 + $0x7c] sm:$0xff]
        %v728 = vld [vmem:[%s437 + $0x84] sm:$0xff]
        %v729 = vld [vmem:[%s437 + $0x8c] sm:$0xff]
        %v730 = vld [vmem:[%s437 + $0x94] sm:$0xff]
        %v731 = vld [vmem:[%s437 + $0x9c] sm:$0xff]
        %v732 = vld [vmem:[%s437 + $0xa4] sm:$0xff]
        %v733 = vld [vmem:[%s437 + $0xac] sm:$0xff]
        %v734 = vld [vmem:[%s437 + $0xb4] sm:$0xff]
        %v735 = vld [vmem:[%s437 + $0xbc] sm:$0xff]
        %v736 = vld [vmem:[%s437 + $0xc4] sm:$0xff]
        %v737 = vld [vmem:[%s437 + $0xcc] sm:$0xff]
        %v738 = vld [vmem:[%s437 + $0xd4] sm:$0xff]
        %v739 = vld [vmem:[%s437 + $0xdc] sm:$0xff]
        %v740 = vld [vmem:[%s437 + $0xe4] sm:$0xff]
        %v741 = vld [vmem:[%s437 + $0xec] sm:$0xff]
        %v742 = vld [vmem:[%s437 + $0xf4] sm:$0xff]
        %v743 = vld [vmem:[%s437 + $0xfc] sm:$0xff]
        %v744 = vld [vmem:[%s437 + $0x104] sm:$0xff]
        %v745 = vld [vmem:[%s437 + $0x10c] sm:$0xff]
        %v746 = vld [vmem:[%s437 + $0x114] sm:$0xff]
        %v747 = vld [vmem:[%s437 + $0x11c] sm:$0xff]
        %v748 = vld [vmem:[%s437 + $0x124] sm:$0xff]
        %v749 = vld [vmem:[%s437 + $0x12c] sm:$0xff]
        %v750 = vld [vmem:[%s437 + $0x134] sm:$0xff]
        %v751 = vld [vmem:[%s437 + $0x13c] sm:$0xff]
        %v752 = vld [vmem:[%s437 + $0x144] sm:$0xff]
        %v753 = vld [vmem:[%s437 + $0x14c] sm:$0xff]
        %v754 = vld [vmem:[%s437 + $0x154] sm:$0xff]
        %v755 = vld [vmem:[%s437 + $0x15c] sm:$0xff]
        %v756 = vld [vmem:[%s437 + $0x164] sm:$0xff]
        %v757 = vld [vmem:[%s437 + $0x16c] sm:$0xff]
        %v758 = vld [vmem:[%s437 + $0x174] sm:$0xff]
        %v759 = vld [vmem:[%s437 + $0x17c] sm:$0xff]
        %v760 = vld [vmem:[%s437 + $0x184] sm:$0xff]
        %v761 = vld [vmem:[%s437 + $0x18c] sm:$0xff]
        %v762 = vld [vmem:[%s437 + $0x194] sm:$0xff]
        %v763 = vld [vmem:[%s437 + $0x19c] sm:$0xff]
        %v764 = vld [vmem:[%s437 + $0x1a4] sm:$0xff]
        %v765 = vld [vmem:[%s437 + $0x1ac] sm:$0xff]
        %v766 = vld [vmem:[%s437 + $0x1b4] sm:$0xff]
        %v767 = vld [vmem:[%s437 + $0x1bc] sm:$0xff]
        %v768 = vld [vmem:[%s437 + $0x1c4] sm:$0xff]
        %v769 = vld [vmem:[%s437 + $0x1cc] sm:$0xff]
        %v770 = vld [vmem:[%s437 + $0x1d4] sm:$0xff]
        %v771 = vld [vmem:[%s437 + $0x1dc] sm:$0x3f]
        %v772 = vld [vmem:[%s437 + $0x2d] sm:$0xff]
        %v773 = vld [vmem:[%s437 + $0x35] sm:$0xff]
        %v774 = vld [vmem:[%s437 + $0x3d] sm:$0xff]
        %v775 = vld [vmem:[%s437 + $0x45] sm:$0xff]
        %v776 = vld [vmem:[%s437 + $0x4d] sm:$0xff]
        %v777 = vld [vmem:[%s437 + $0x55] sm:$0xff]
        %v778 = vld [vmem:[%s437 + $0x5d] sm:$0xff]
        %v779 = vld [vmem:[%s437 + $0x65] sm:$0xff]
        %v780 = vld [vmem:[%s437 + $0x6d] sm:$0xff]
        %v781 = vld [vmem:[%s437 + $0x75] sm:$0xff]
        %v782 = vld [vmem:[%s437 + $0x7d] sm:$0xff]
        %v783 = vld [vmem:[%s437 + $0x85] sm:$0xff]
        %v784 = vld [vmem:[%s437 + $0x8d] sm:$0xff]
        %v785 = vld [vmem:[%s437 + $0x95] sm:$0xff]
        %v786 = vld [vmem:[%s437 + $0x9d] sm:$0xff]
        %v787 = vld [vmem:[%s437 + $0xa5] sm:$0xff]
        %v788 = vld [vmem:[%s437 + $0xad] sm:$0xff]
        %v789 = vld [vmem:[%s437 + $0xb5] sm:$0xff]
        %v790 = vld [vmem:[%s437 + $0xbd] sm:$0xff]
        %v791 = vld [vmem:[%s437 + $0xc5] sm:$0xff]
        %v792 = vld [vmem:[%s437 + $0xcd] sm:$0xff]
        %v793 = vld [vmem:[%s437 + $0xd5] sm:$0xff]
        %v794 = vld [vmem:[%s437 + $0xdd] sm:$0xff]
        %v795 = vld [vmem:[%s437 + $0xe5] sm:$0xff]
        %v796 = vld [vmem:[%s437 + $0xed] sm:$0xff]
        %v797 = vld [vmem:[%s437 + $0xf5] sm:$0xff]
        %v798 = vld [vmem:[%s437 + $0xfd] sm:$0xff]
        %v799 = vld [vmem:[%s437 + $0x105] sm:$0xff]
        %v800 = vld [vmem:[%s437 + $0x10d] sm:$0xff]
        %v801 = vld [vmem:[%s437 + $0x115] sm:$0xff]
        %v802 = vld [vmem:[%s437 + $0x11d] sm:$0xff]
        %v803 = vld [vmem:[%s437 + $0x125] sm:$0xff]
        %v804 = vld [vmem:[%s437 + $0x12d] sm:$0xff]
        %v805 = vld [vmem:[%s437 + $0x135] sm:$0xff]
        %v806 = vld [vmem:[%s437 + $0x13d] sm:$0xff]
        %v807 = vld [vmem:[%s437 + $0x145] sm:$0xff]
        %v808 = vld [vmem:[%s437 + $0x14d] sm:$0xff]
        %v809 = vld [vmem:[%s437 + $0x155] sm:$0xff]
        %v810 = vld [vmem:[%s437 + $0x15d] sm:$0xff]
        %v811 = vld [vmem:[%s437 + $0x165] sm:$0xff]
        %v812 = vld [vmem:[%s437 + $0x16d] sm:$0xff]
        %v813 = vld [vmem:[%s437 + $0x175] sm:$0xff]
        %v814 = vld [vmem:[%s437 + $0x17d] sm:$0xff]
        %v815 = vld [vmem:[%s437 + $0x185] sm:$0xff]
        %v816 = vld [vmem:[%s437 + $0x18d] sm:$0xff]
        %v817 = vld [vmem:[%s437 + $0x195] sm:$0xff]
        %v818 = vld [vmem:[%s437 + $0x19d] sm:$0xff]
        %v819 = vld [vmem:[%s437 + $0x1a5] sm:$0xff]
        %v820 = vld [vmem:[%s437 + $0x1ad] sm:$0xff]
        %v821 = vld [vmem:[%s437 + $0x1b5] sm:$0xff]
        %v822 = vld [vmem:[%s437 + $0x1bd] sm:$0xff]
        %v823 = vld [vmem:[%s437 + $0x1c5] sm:$0xff]
        %v824 = vld [vmem:[%s437 + $0x1cd] sm:$0xff]
        %v825 = vld [vmem:[%s437 + $0x1d5] sm:$0xff]
        %v826 = vld [vmem:[%s437 + $0x1dd] sm:$0x3f]
        %v827 = vld [vmem:[%s437 + $0x1c6] sm:$0xff]
        %v828 = vld [vmem:[%s437 + $0x1ce] sm:$0xff]
        %v829 = vld [vmem:[%s437 + $0x1d6] sm:$0xff]
        %v830 = vld [vmem:[%s437 + $0x1de] sm:$0x3f]
        %886 = vrot.lane.b32.xlu0 %v493, 3
        %v887 = vpop.permute.xlu0 %886
        %888 = vrot.lane.b32.xlu0 %v494, 3
        %v889 = vpop.permute.xlu0 %888
        %890 = vrot.lane.b32.xlu0 %v495, 3
        %v891 = vpop.permute.xlu0 %890
        %892 = vrot.lane.b32.xlu0 %v496, 3
        %v893 = vpop.permute.xlu0 %892
        %894 = vrot.lane.b32.xlu0 %v497, 3
        %v895 = vpop.permute.xlu0 %894
        %896 = vrot.lane.b32.xlu0 %v498, 3
        %v897 = vpop.permute.xlu0 %896
        %898 = vrot.lane.b32.xlu0 %v499, 3
        %v899 = vpop.permute.xlu0 %898
        %900 = vrot.lane.b32.xlu0 %v500, 3
        %v901 = vpop.permute.xlu0 %900
        %902 = vrot.lane.b32.xlu0 %v501, 3
        %v903 = vpop.permute.xlu0 %902
        %904 = vrot.lane.b32.xlu0 %v502, 3
        %v905 = vpop.permute.xlu0 %904
        %906 = vrot.lane.b32.xlu0 %v503, 3
        %v907 = vpop.permute.xlu0 %906
        %908 = vrot.lane.b32.xlu0 %v504, 3
        %v909 = vpop.permute.xlu0 %908
        %910 = vrot.lane.b32.xlu0 %v505, 3
        %v911 = vpop.permute.xlu0 %910
        %912 = vrot.lane.b32.xlu0 %v506, 3
        %v913 = vpop.permute.xlu0 %912
        %914 = vrot.lane.b32.xlu0 %v507, 3
        %v915 = vpop.permute.xlu0 %914
        %916 = vrot.lane.b32.xlu0 %v508, 3
        %v917 = vpop.permute.xlu0 %916
        %918 = vrot.lane.b32.xlu0 %v509, 3
        %v919 = vpop.permute.xlu0 %918
        %920 = vrot.lane.b32.xlu0 %v510, 3
        %v921 = vpop.permute.xlu0 %920
        %922 = vrot.lane.b32.xlu0 %v511, 3
        %v923 = vpop.permute.xlu0 %922
        %924 = vrot.lane.b32.xlu0 %v512, 3
        %v925 = vpop.permute.xlu0 %924
        %926 = vrot.lane.b32.xlu0 %v513, 3
        %v927 = vpop.permute.xlu0 %926
        %928 = vrot.lane.b32.xlu0 %v514, 3
        %v929 = vpop.permute.xlu0 %928
        %930 = vrot.lane.b32.xlu0 %v515, 3
        %v931 = vpop.permute.xlu0 %930
        %932 = vrot.lane.b32.xlu0 %v516, 3
        %v933 = vpop.permute.xlu0 %932
        %934 = vrot.lane.b32.xlu0 %v517, 3
        %v935 = vpop.permute.xlu0 %934
        %936 = vrot.lane.b32.xlu0 %v518, 3
        %v937 = vpop.permute.xlu0 %936
        %938 = vrot.lane.b32.xlu0 %v519, 3
        %v939 = vpop.permute.xlu0 %938
        %940 = vrot.lane.b32.xlu0 %v520, 3
        %v941 = vpop.permute.xlu0 %940
        %942 = vrot.lane.b32.xlu0 %v521, 3
        %v943 = vpop.permute.xlu0 %942
        %944 = vrot.lane.b32.xlu0 %v522, 3
        %v945 = vpop.permute.xlu0 %944
        %946 = vrot.lane.b32.xlu0 %v523, 3
        %v947 = vpop.permute.xlu0 %946
        %948 = vrot.lane.b32.xlu0 %v524, 3
        %v949 = vpop.permute.xlu0 %948
        %950 = vrot.lane.b32.xlu0 %v525, 3
        %v951 = vpop.permute.xlu0 %950
        %952 = vrot.lane.b32.xlu0 %v526, 3
        %v953 = vpop.permute.xlu0 %952
        %954 = vrot.lane.b32.xlu0 %v527, 3
        %v955 = vpop.permute.xlu0 %954
        %956 = vrot.lane.b32.xlu0 %v528, 3
        %v957 = vpop.permute.xlu0 %956
        %958 = vrot.lane.b32.xlu0 %v529, 3
        %v959 = vpop.permute.xlu0 %958
        %960 = vrot.lane.b32.xlu0 %v530, 3
        %v961 = vpop.permute.xlu0 %960
        %962 = vrot.lane.b32.xlu0 %v531, 3
        %v963 = vpop.permute.xlu0 %962
        %964 = vrot.lane.b32.xlu0 %v532, 3
        %v965 = vpop.permute.xlu0 %964
        %966 = vrot.lane.b32.xlu0 %v533, 3
        %v967 = vpop.permute.xlu0 %966
        %968 = vrot.lane.b32.xlu0 %v534, 3
        %v969 = vpop.permute.xlu0 %968
        %970 = vrot.lane.b32.xlu0 %v535, 3
        %v971 = vpop.permute.xlu0 %970
        %972 = vrot.lane.b32.xlu0 %v536, 3
        %v973 = vpop.permute.xlu0 %972
        %974 = vrot.lane.b32.xlu0 %v537, 3
        %v975 = vpop.permute.xlu0 %974
        %976 = vrot.lane.b32.xlu0 %v538, 3
        %v977 = vpop.permute.xlu0 %976
        %978 = vrot.lane.b32.xlu0 %v539, 3
        %v979 = vpop.permute.xlu0 %978
        %980 = vrot.lane.b32.xlu0 %v540, 3
        %v981 = vpop.permute.xlu0 %980
        %982 = vrot.lane.b32.xlu0 %v541, 3
        %v983 = vpop.permute.xlu0 %982
        %984 = vrot.lane.b32.xlu0 %v542, 3
        %v985 = vpop.permute.xlu0 %984
        %986 = vrot.lane.b32.xlu0 %v543, 3
        %v987 = vpop.permute.xlu0 %986
        %988 = vrot.lane.b32.xlu0 %v544, 3
        %v989 = vpop.permute.xlu0 %988
        %990 = vrot.lane.b32.xlu0 %v545, 3
        %v991 = vpop.permute.xlu0 %990
        %992 = vrot.lane.b32.xlu0 %v546, 3
        %v993 = vpop.permute.xlu0 %992
        %994 = vrot.lane.b32.xlu0 %v547, 3
        %v995 = vpop.permute.xlu0 %994
        %1106 = vrot.lane.b32.xlu0 %v548, 6
        %v1107 = vpop.permute.xlu0 %1106
        %1108 = vrot.lane.b32.xlu0 %v549, 6
        %v1109 = vpop.permute.xlu0 %1108
        %1110 = vrot.lane.b32.xlu0 %v550, 6
        %v1111 = vpop.permute.xlu0 %1110
        %1112 = vrot.lane.b32.xlu0 %v551, 6
        %v1113 = vpop.permute.xlu0 %1112
        %1114 = vrot.lane.b32.xlu0 %v552, 6
        %v1115 = vpop.permute.xlu0 %1114
        %1116 = vrot.lane.b32.xlu0 %v553, 6
        %v1117 = vpop.permute.xlu0 %1116
        %1118 = vrot.lane.b32.xlu0 %v554, 6
        %v1119 = vpop.permute.xlu0 %1118
        %1120 = vrot.lane.b32.xlu0 %v555, 6
        %v1121 = vpop.permute.xlu0 %1120
        %1122 = vrot.lane.b32.xlu0 %v556, 6
        %v1123 = vpop.permute.xlu0 %1122
        %1124 = vrot.lane.b32.xlu0 %v557, 6
        %v1125 = vpop.permute.xlu0 %1124
        %1126 = vrot.lane.b32.xlu0 %v558, 6
        %v1127 = vpop.permute.xlu0 %1126
        %1128 = vrot.lane.b32.xlu0 %v559, 6
        %v1129 = vpop.permute.xlu0 %1128
        %1130 = vrot.lane.b32.xlu0 %v560, 6
        %v1131 = vpop.permute.xlu0 %1130
        %1132 = vrot.lane.b32.xlu0 %v561, 6
        %v1133 = vpop.permute.xlu0 %1132
        %1134 = vrot.lane.b32.xlu0 %v562, 6
        %v1135 = vpop.permute.xlu0 %1134
        %1136 = vrot.lane.b32.xlu0 %v563, 6
        %v1137 = vpop.permute.xlu0 %1136
        %1138 = vrot.lane.b32.xlu0 %v564, 6
        %v1139 = vpop.permute.xlu0 %1138
        %1140 = vrot.lane.b32.xlu0 %v565, 6
        %v1141 = vpop.permute.xlu0 %1140
        %1142 = vrot.lane.b32.xlu0 %v566, 6
        %v1143 = vpop.permute.xlu0 %1142
        %1144 = vrot.lane.b32.xlu0 %v567, 6
        %v1145 = vpop.permute.xlu0 %1144
        %1146 = vrot.lane.b32.xlu0 %v568, 6
        %v1147 = vpop.permute.xlu0 %1146
        %1148 = vrot.lane.b32.xlu0 %v569, 6
        %v1149 = vpop.permute.xlu0 %1148
        %1150 = vrot.lane.b32.xlu0 %v570, 6
        %v1151 = vpop.permute.xlu0 %1150
        %1152 = vrot.lane.b32.xlu0 %v571, 6
        %v1153 = vpop.permute.xlu0 %1152
        %1154 = vrot.lane.b32.xlu0 %v572, 6
        %v1155 = vpop.permute.xlu0 %1154
        %1156 = vrot.lane.b32.xlu0 %v573, 6
        %v1157 = vpop.permute.xlu0 %1156
        %1158 = vrot.lane.b32.xlu0 %v574, 6
        %v1159 = vpop.permute.xlu0 %1158
        %1160 = vrot.lane.b32.xlu0 %v575, 6
        %v1161 = vpop.permute.xlu0 %1160
        %1162 = vrot.lane.b32.xlu0 %v576, 6
        %v1163 = vpop.permute.xlu0 %1162
        %1164 = vrot.lane.b32.xlu0 %v577, 6
        %v1165 = vpop.permute.xlu0 %1164
        %1166 = vrot.lane.b32.xlu0 %v578, 6
        %v1167 = vpop.permute.xlu0 %1166
        %1168 = vrot.lane.b32.xlu0 %v579, 6
        %v1169 = vpop.permute.xlu0 %1168
        %1170 = vrot.lane.b32.xlu0 %v580, 6
        %v1171 = vpop.permute.xlu0 %1170
        %1172 = vrot.lane.b32.xlu0 %v581, 6
        %v1173 = vpop.permute.xlu0 %1172
        %1174 = vrot.lane.b32.xlu0 %v582, 6
        %v1175 = vpop.permute.xlu0 %1174
        %1176 = vrot.lane.b32.xlu0 %v583, 6
        %v1177 = vpop.permute.xlu0 %1176
        %1178 = vrot.lane.b32.xlu0 %v584, 6
        %v1179 = vpop.permute.xlu0 %1178
        %1180 = vrot.lane.b32.xlu0 %v585, 6
        %v1181 = vpop.permute.xlu0 %1180
        %1182 = vrot.lane.b32.xlu0 %v586, 6
        %v1183 = vpop.permute.xlu0 %1182
        %1184 = vrot.lane.b32.xlu0 %v587, 6
        %v1185 = vpop.permute.xlu0 %1184
        %1186 = vrot.lane.b32.xlu0 %v588, 6
        %v1187 = vpop.permute.xlu0 %1186
        %1188 = vrot.lane.b32.xlu0 %v589, 6
        %v1189 = vpop.permute.xlu0 %1188
        %1190 = vrot.lane.b32.xlu0 %v590, 6
        %v1191 = vpop.permute.xlu0 %1190
        %1192 = vrot.lane.b32.xlu0 %v591, 6
        %v1193 = vpop.permute.xlu0 %1192
        %1194 = vrot.lane.b32.xlu0 %v592, 6
        %v1195 = vpop.permute.xlu0 %1194
        %1196 = vrot.lane.b32.xlu0 %v593, 6
        %v1197 = vpop.permute.xlu0 %1196
        %1198 = vrot.lane.b32.xlu0 %v594, 6
        %v1199 = vpop.permute.xlu0 %1198
        %1200 = vrot.lane.b32.xlu0 %v595, 6
        %v1201 = vpop.permute.xlu0 %1200
        %1202 = vrot.lane.b32.xlu0 %v596, 6
        %v1203 = vpop.permute.xlu0 %1202
        %1204 = vrot.lane.b32.xlu0 %v597, 6
        %v1205 = vpop.permute.xlu0 %1204
        %1206 = vrot.lane.b32.xlu0 %v598, 6
        %v1207 = vpop.permute.xlu0 %1206
        %1208 = vrot.lane.b32.xlu0 %v599, 6
        %v1209 = vpop.permute.xlu0 %1208
        %1210 = vrot.lane.b32.xlu0 %v600, 6
        %v1211 = vpop.permute.xlu0 %1210
        %1212 = vrot.lane.b32.xlu0 %v601, 6
        %v1213 = vpop.permute.xlu0 %1212
        %1214 = vrot.lane.b32.xlu0 %v602, 6
        %v1215 = vpop.permute.xlu0 %1214
        %1326 = vrot.lane.b32.xlu0 %v603, 9
        %v1327 = vpop.permute.xlu0 %1326
        %1328 = vrot.lane.b32.xlu0 %v604, 9
        %v1329 = vpop.permute.xlu0 %1328
        %1330 = vrot.lane.b32.xlu0 %v605, 9
        %v1331 = vpop.permute.xlu0 %1330
        %1332 = vrot.lane.b32.xlu0 %v606, 9
        %v1333 = vpop.permute.xlu0 %1332
        %1334 = vrot.lane.b32.xlu0 %v607, 9
        %v1335 = vpop.permute.xlu0 %1334
        %1336 = vrot.lane.b32.xlu0 %v608, 9
        %v1337 = vpop.permute.xlu0 %1336
        %1338 = vrot.lane.b32.xlu0 %v609, 9
        %v1339 = vpop.permute.xlu0 %1338
        %1340 = vrot.lane.b32.xlu0 %v610, 9
        %v1341 = vpop.permute.xlu0 %1340
        %1342 = vrot.lane.b32.xlu0 %v611, 9
        %v1343 = vpop.permute.xlu0 %1342
        %1344 = vrot.lane.b32.xlu0 %v612, 9
        %v1345 = vpop.permute.xlu0 %1344
        %1346 = vrot.lane.b32.xlu0 %v613, 9
        %v1347 = vpop.permute.xlu0 %1346
        %1348 = vrot.lane.b32.xlu0 %v614, 9
        %v1349 = vpop.permute.xlu0 %1348
        %1350 = vrot.lane.b32.xlu0 %v615, 9
        %v1351 = vpop.permute.xlu0 %1350
        %1352 = vrot.lane.b32.xlu0 %v616, 9
        %v1353 = vpop.permute.xlu0 %1352
        %1354 = vrot.lane.b32.xlu0 %v617, 9
        %v1355 = vpop.permute.xlu0 %1354
        %1356 = vrot.lane.b32.xlu0 %v618, 9
        %v1357 = vpop.permute.xlu0 %1356
        %1358 = vrot.lane.b32.xlu0 %v619, 9
        %v1359 = vpop.permute.xlu0 %1358
        %1360 = vrot.lane.b32.xlu0 %v620, 9
        %v1361 = vpop.permute.xlu0 %1360
        %1362 = vrot.lane.b32.xlu0 %v621, 9
        %v1363 = vpop.permute.xlu0 %1362
        %1364 = vrot.lane.b32.xlu0 %v622, 9
        %v1365 = vpop.permute.xlu0 %1364
        %1366 = vrot.lane.b32.xlu0 %v623, 9
        %v1367 = vpop.permute.xlu0 %1366
        %1368 = vrot.lane.b32.xlu0 %v624, 9
        %v1369 = vpop.permute.xlu0 %1368
        %1370 = vrot.lane.b32.xlu0 %v625, 9
        %v1371 = vpop.permute.xlu0 %1370
        %1372 = vrot.lane.b32.xlu0 %v626, 9
        %v1373 = vpop.permute.xlu0 %1372
        %1374 = vrot.lane.b32.xlu0 %v627, 9
        %v1375 = vpop.permute.xlu0 %1374
        %1376 = vrot.lane.b32.xlu0 %v628, 9
        %v1377 = vpop.permute.xlu0 %1376
        %1378 = vrot.lane.b32.xlu0 %v629, 9
        %v1379 = vpop.permute.xlu0 %1378
        %1380 = vrot.lane.b32.xlu0 %v630, 9
        %v1381 = vpop.permute.xlu0 %1380
        %1382 = vrot.lane.b32.xlu0 %v631, 9
        %v1383 = vpop.permute.xlu0 %1382
        %1384 = vrot.lane.b32.xlu0 %v632, 9
        %v1385 = vpop.permute.xlu0 %1384
        %1386 = vrot.lane.b32.xlu0 %v633, 9
        %v1387 = vpop.permute.xlu0 %1386
        %1388 = vrot.lane.b32.xlu0 %v634, 9
        %v1389 = vpop.permute.xlu0 %1388
        %1390 = vrot.lane.b32.xlu0 %v635, 9
        %v1391 = vpop.permute.xlu0 %1390
        %1392 = vrot.lane.b32.xlu0 %v636, 9
        %v1393 = vpop.permute.xlu0 %1392
        %1394 = vrot.lane.b32.xlu0 %v637, 9
        %v1395 = vpop.permute.xlu0 %1394
        %1396 = vrot.lane.b32.xlu0 %v638, 9
        %v1397 = vpop.permute.xlu0 %1396
        %1398 = vrot.lane.b32.xlu0 %v639, 9
        %v1399 = vpop.permute.xlu0 %1398
        %1400 = vrot.lane.b32.xlu0 %v640, 9
        %v1401 = vpop.permute.xlu0 %1400
        %1402 = vrot.lane.b32.xlu0 %v641, 9
        %v1403 = vpop.permute.xlu0 %1402
        %1404 = vrot.lane.b32.xlu0 %v642, 9
        %v1405 = vpop.permute.xlu0 %1404
        %1406 = vrot.lane.b32.xlu0 %v643, 9
        %v1407 = vpop.permute.xlu0 %1406
        %1408 = vrot.lane.b32.xlu0 %v644, 9
        %v1409 = vpop.permute.xlu0 %1408
        %1410 = vrot.lane.b32.xlu0 %v645, 9
        %v1411 = vpop.permute.xlu0 %1410
        %1412 = vrot.lane.b32.xlu0 %v646, 9
        %v1413 = vpop.permute.xlu0 %1412
        %1414 = vrot.lane.b32.xlu0 %v647, 9
        %v1415 = vpop.permute.xlu0 %1414
        %1416 = vrot.lane.b32.xlu0 %v648, 9
        %v1417 = vpop.permute.xlu0 %1416
        %1418 = vrot.lane.b32.xlu0 %v649, 9
        %v1419 = vpop.permute.xlu0 %1418
        %1420 = vrot.lane.b32.xlu0 %v650, 9
        %v1421 = vpop.permute.xlu0 %1420
        %1422 = vrot.lane.b32.xlu0 %v651, 9
        %v1423 = vpop.permute.xlu0 %1422
        %1424 = vrot.lane.b32.xlu0 %v652, 9
        %v1425 = vpop.permute.xlu0 %1424
        %1426 = vrot.lane.b32.xlu0 %v653, 9
        %v1427 = vpop.permute.xlu0 %1426
        %1428 = vrot.lane.b32.xlu0 %v654, 9
        %v1429 = vpop.permute.xlu0 %1428
        %1430 = vrot.lane.b32.xlu0 %v655, 9
        %v1431 = vpop.permute.xlu0 %1430
        %1432 = vrot.lane.b32.xlu0 %v656, 9
        %v1433 = vpop.permute.xlu0 %1432
        %1434 = vrot.lane.b32.xlu0 %v657, 9
        %v1435 = vpop.permute.xlu0 %1434
        %1546 = vrot.lane.b32.xlu0 %v658, 12
        %v1547 = vpop.permute.xlu0 %1546
        %1548 = vrot.lane.b32.xlu0 %v659, 12
        %v1549 = vpop.permute.xlu0 %1548
        %1550 = vrot.lane.b32.xlu0 %v660, 12
        %v1551 = vpop.permute.xlu0 %1550
        %1552 = vrot.lane.b32.xlu0 %v661, 12
        %v1553 = vpop.permute.xlu0 %1552
        %1554 = vrot.lane.b32.xlu0 %v662, 12
        %v1555 = vpop.permute.xlu0 %1554
        %1556 = vrot.lane.b32.xlu0 %v663, 12
        %v1557 = vpop.permute.xlu0 %1556
        %1558 = vrot.lane.b32.xlu0 %v664, 12
        %v1559 = vpop.permute.xlu0 %1558
        %1560 = vrot.lane.b32.xlu0 %v665, 12
        %v1561 = vpop.permute.xlu0 %1560
        %1562 = vrot.lane.b32.xlu0 %v666, 12
        %v1563 = vpop.permute.xlu0 %1562
        %1564 = vrot.lane.b32.xlu0 %v667, 12
        %v1565 = vpop.permute.xlu0 %1564
        %1566 = vrot.lane.b32.xlu0 %v668, 12
        %v1567 = vpop.permute.xlu0 %1566
        %1568 = vrot.lane.b32.xlu0 %v669, 12
        %v1569 = vpop.permute.xlu0 %1568
        %1570 = vrot.lane.b32.xlu0 %v670, 12
        %v1571 = vpop.permute.xlu0 %1570
        %1572 = vrot.lane.b32.xlu0 %v671, 12
        %v1573 = vpop.permute.xlu0 %1572
        %1574 = vrot.lane.b32.xlu0 %v672, 12
        %v1575 = vpop.permute.xlu0 %1574
        %1576 = vrot.lane.b32.xlu0 %v673, 12
        %v1577 = vpop.permute.xlu0 %1576
        %1578 = vrot.lane.b32.xlu0 %v674, 12
        %v1579 = vpop.permute.xlu0 %1578
        %1580 = vrot.lane.b32.xlu0 %v675, 12
        %v1581 = vpop.permute.xlu0 %1580
        %1582 = vrot.lane.b32.xlu0 %v676, 12
        %v1583 = vpop.permute.xlu0 %1582
        %1584 = vrot.lane.b32.xlu0 %v677, 12
        %v1585 = vpop.permute.xlu0 %1584
        %1586 = vrot.lane.b32.xlu0 %v678, 12
        %v1587 = vpop.permute.xlu0 %1586
        %1588 = vrot.lane.b32.xlu0 %v679, 12
        %v1589 = vpop.permute.xlu0 %1588
        %1590 = vrot.lane.b32.xlu0 %v680, 12
        %v1591 = vpop.permute.xlu0 %1590
        %1592 = vrot.lane.b32.xlu0 %v681, 12
        %v1593 = vpop.permute.xlu0 %1592
        %1594 = vrot.lane.b32.xlu0 %v682, 12
        %v1595 = vpop.permute.xlu0 %1594
        %1596 = vrot.lane.b32.xlu0 %v683, 12
        %v1597 = vpop.permute.xlu0 %1596
        %1598 = vrot.lane.b32.xlu0 %v684, 12
        %v1599 = vpop.permute.xlu0 %1598
        %1600 = vrot.lane.b32.xlu0 %v685, 12
        %v1601 = vpop.permute.xlu0 %1600
        %1602 = vrot.lane.b32.xlu0 %v686, 12
        %v1603 = vpop.permute.xlu0 %1602
        %1604 = vrot.lane.b32.xlu0 %v687, 12
        %v1605 = vpop.permute.xlu0 %1604
        %1606 = vrot.lane.b32.xlu0 %v688, 12
        %v1607 = vpop.permute.xlu0 %1606
        %1608 = vrot.lane.b32.xlu0 %v689, 12
        %v1609 = vpop.permute.xlu0 %1608
        %1610 = vrot.lane.b32.xlu0 %v690, 12
        %v1611 = vpop.permute.xlu0 %1610
        %1612 = vrot.lane.b32.xlu0 %v691, 12
        %v1613 = vpop.permute.xlu0 %1612
        %1614 = vrot.lane.b32.xlu0 %v692, 12
        %v1615 = vpop.permute.xlu0 %1614
        %1616 = vrot.lane.b32.xlu0 %v693, 12
        %v1617 = vpop.permute.xlu0 %1616
        %1618 = vrot.lane.b32.xlu0 %v694, 12
        %v1619 = vpop.permute.xlu0 %1618
        %1620 = vrot.lane.b32.xlu0 %v695, 12
        %v1621 = vpop.permute.xlu0 %1620
        %1622 = vrot.lane.b32.xlu0 %v696, 12
        %v1623 = vpop.permute.xlu0 %1622
        %1624 = vrot.lane.b32.xlu0 %v697, 12
        %v1625 = vpop.permute.xlu0 %1624
        %1626 = vrot.lane.b32.xlu0 %v698, 12
        %v1627 = vpop.permute.xlu0 %1626
        %1628 = vrot.lane.b32.xlu0 %v699, 12
        %v1629 = vpop.permute.xlu0 %1628
        %1630 = vrot.lane.b32.xlu0 %v700, 12
        %v1631 = vpop.permute.xlu0 %1630
        %1632 = vrot.lane.b32.xlu0 %v701, 12
        %v1633 = vpop.permute.xlu0 %1632
        %1634 = vrot.lane.b32.xlu0 %v702, 12
        %v1635 = vpop.permute.xlu0 %1634
        %1636 = vrot.lane.b32.xlu0 %v703, 12
        %v1637 = vpop.permute.xlu0 %1636
        %1638 = vrot.lane.b32.xlu0 %v704, 12
        %v1639 = vpop.permute.xlu0 %1638
        %1640 = vrot.lane.b32.xlu0 %v705, 12
        %v1641 = vpop.permute.xlu0 %1640
        %1642 = vrot.lane.b32.xlu0 %v706, 12
        %v1643 = vpop.permute.xlu0 %1642
        %1644 = vrot.lane.b32.xlu0 %v707, 12
        %v1645 = vpop.permute.xlu0 %1644
        %1646 = vrot.lane.b32.xlu0 %v708, 12
        %v1647 = vpop.permute.xlu0 %1646
        %1648 = vrot.lane.b32.xlu0 %v709, 12
        %v1649 = vpop.permute.xlu0 %1648
        %1650 = vrot.lane.b32.xlu0 %v710, 12
        %v1651 = vpop.permute.xlu0 %1650
        %1652 = vrot.lane.b32.xlu0 %v711, 12
        %v1653 = vpop.permute.xlu0 %1652
        %1654 = vrot.lane.b32.xlu0 %v712, 12
        %v1655 = vpop.permute.xlu0 %1654
        %1766 = vrot.lane.b32.xlu0 %v441, 15
        %v1767 = vpop.permute.xlu0 %1766
        %1768 = vrot.lane.b32.xlu0 %v442, 15
        %v1769 = vpop.permute.xlu0 %1768
        %1770 = vrot.lane.b32.xlu0 %v443, 15
        %v1771 = vpop.permute.xlu0 %1770
        %1772 = vrot.lane.b32.xlu0 %v444, 15
        %v1773 = vpop.permute.xlu0 %1772
        %1774 = vrot.lane.b32.xlu0 %v445, 15
        %v1775 = vpop.permute.xlu0 %1774
        %1776 = vrot.lane.b32.xlu0 %v446, 15
        %v1777 = vpop.permute.xlu0 %1776
        %1778 = vrot.lane.b32.xlu0 %v447, 15
        %v1779 = vpop.permute.xlu0 %1778
        %1780 = vrot.lane.b32.xlu0 %v448, 15
        %v1781 = vpop.permute.xlu0 %1780
        %1782 = vrot.lane.b32.xlu0 %v449, 15
        %v1783 = vpop.permute.xlu0 %1782
        %1784 = vrot.lane.b32.xlu0 %v450, 15
        %v1785 = vpop.permute.xlu0 %1784
        %1786 = vrot.lane.b32.xlu0 %v451, 15
        %v1787 = vpop.permute.xlu0 %1786
        %1788 = vrot.lane.b32.xlu0 %v452, 15
        %v1789 = vpop.permute.xlu0 %1788
        %1790 = vrot.lane.b32.xlu0 %v453, 15
        %v1791 = vpop.permute.xlu0 %1790
        %1792 = vrot.lane.b32.xlu0 %v454, 15
        %v1793 = vpop.permute.xlu0 %1792
        %1794 = vrot.lane.b32.xlu0 %v455, 15
        %v1795 = vpop.permute.xlu0 %1794
        %1796 = vrot.lane.b32.xlu0 %v456, 15
        %v1797 = vpop.permute.xlu0 %1796
        %1798 = vrot.lane.b32.xlu0 %v457, 15
        %v1799 = vpop.permute.xlu0 %1798
        %1800 = vrot.lane.b32.xlu0 %v458, 15
        %v1801 = vpop.permute.xlu0 %1800
        %1802 = vrot.lane.b32.xlu0 %v459, 15
        %v1803 = vpop.permute.xlu0 %1802
        %1804 = vrot.lane.b32.xlu0 %v460, 15
        %v1805 = vpop.permute.xlu0 %1804
        %1806 = vrot.lane.b32.xlu0 %v461, 15
        %v1807 = vpop.permute.xlu0 %1806
        %1808 = vrot.lane.b32.xlu0 %v462, 15
        %v1809 = vpop.permute.xlu0 %1808
        %1810 = vrot.lane.b32.xlu0 %v463, 15
        %v1811 = vpop.permute.xlu0 %1810
        %1812 = vrot.lane.b32.xlu0 %v464, 15
        %v1813 = vpop.permute.xlu0 %1812
        %1814 = vrot.lane.b32.xlu0 %v465, 15
        %v1815 = vpop.permute.xlu0 %1814
        %1816 = vrot.lane.b32.xlu0 %v466, 15
        %v1817 = vpop.permute.xlu0 %1816
        %1818 = vrot.lane.b32.xlu0 %v467, 15
        %v1819 = vpop.permute.xlu0 %1818
        %1820 = vrot.lane.b32.xlu0 %v468, 15
        %v1821 = vpop.permute.xlu0 %1820
        %1822 = vrot.lane.b32.xlu0 %v469, 15
        %v1823 = vpop.permute.xlu0 %1822
        %1824 = vrot.lane.b32.xlu0 %v470, 15
        %v1825 = vpop.permute.xlu0 %1824
        %1826 = vrot.lane.b32.xlu0 %v471, 15
        %v1827 = vpop.permute.xlu0 %1826
        %1828 = vrot.lane.b32.xlu0 %v472, 15
        %v1829 = vpop.permute.xlu0 %1828
        %1830 = vrot.lane.b32.xlu0 %v473, 15
        %v1831 = vpop.permute.xlu0 %1830
        %1832 = vrot.lane.b32.xlu0 %v474, 15
        %v1833 = vpop.permute.xlu0 %1832
        %1834 = vrot.lane.b32.xlu0 %v475, 15
        %v1835 = vpop.permute.xlu0 %1834
        %1836 = vrot.lane.b32.xlu0 %v476, 15
        %v1837 = vpop.permute.xlu0 %1836
        %1838 = vrot.lane.b32.xlu0 %v477, 15
        %v1839 = vpop.permute.xlu0 %1838
        %1840 = vrot.lane.b32.xlu0 %v478, 15
        %v1841 = vpop.permute.xlu0 %1840
        %1842 = vrot.lane.b32.xlu0 %v479, 15
        %v1843 = vpop.permute.xlu0 %1842
        %1844 = vrot.lane.b32.xlu0 %v480, 15
        %v1845 = vpop.permute.xlu0 %1844
        %1846 = vrot.lane.b32.xlu0 %v481, 15
        %v1847 = vpop.permute.xlu0 %1846
        %1848 = vrot.lane.b32.xlu0 %v482, 15
        %v1849 = vpop.permute.xlu0 %1848
        %1850 = vrot.lane.b32.xlu0 %v483, 15
        %v1851 = vpop.permute.xlu0 %1850
        %1852 = vrot.lane.b32.xlu0 %v484, 15
        %v1853 = vpop.permute.xlu0 %1852
        %1854 = vrot.lane.b32.xlu0 %v485, 15
        %v1855 = vpop.permute.xlu0 %1854
        %1856 = vrot.lane.b32.xlu0 %v486, 15
        %v1857 = vpop.permute.xlu0 %1856
        %1858 = vrot.lane.b32.xlu0 %v487, 15
        %v1859 = vpop.permute.xlu0 %1858
        %1860 = vrot.lane.b32.xlu0 %v488, 15
        %v1861 = vpop.permute.xlu0 %1860
        %1862 = vrot.lane.b32.xlu0 %v489, 15
        %v1863 = vpop.permute.xlu0 %1862
        %1864 = vrot.lane.b32.xlu0 %v490, 15
        %v1865 = vpop.permute.xlu0 %1864
        %1866 = vrot.lane.b32.xlu0 %v491, 15
        %v1867 = vpop.permute.xlu0 %1866
        %1868 = vrot.lane.b32.xlu0 %v713, 15
        %v1869 = vpop.permute.xlu0 %1868
        %1870 = vrot.lane.b32.xlu0 %v714, 15
        %v1871 = vpop.permute.xlu0 %1870
        %1872 = vrot.lane.b32.xlu0 %v715, 15
        %v1873 = vpop.permute.xlu0 %1872
        %1874 = vrot.lane.b32.xlu0 %v716, 15
        %v1875 = vpop.permute.xlu0 %1874
        %1986 = vrot.lane.b32.xlu0 %v717, 18
        %v1987 = vpop.permute.xlu0 %1986
        %1988 = vrot.lane.b32.xlu0 %v718, 18
        %v1989 = vpop.permute.xlu0 %1988
        %1990 = vrot.lane.b32.xlu0 %v719, 18
        %v1991 = vpop.permute.xlu0 %1990
        %1992 = vrot.lane.b32.xlu0 %v720, 18
        %v1993 = vpop.permute.xlu0 %1992
        %1994 = vrot.lane.b32.xlu0 %v721, 18
        %v1995 = vpop.permute.xlu0 %1994
        %1996 = vrot.lane.b32.xlu0 %v722, 18
        %v1997 = vpop.permute.xlu0 %1996
        %1998 = vrot.lane.b32.xlu0 %v723, 18
        %v1999 = vpop.permute.xlu0 %1998
        %2000 = vrot.lane.b32.xlu0 %v724, 18
        %v2001 = vpop.permute.xlu0 %2000
        %2002 = vrot.lane.b32.xlu0 %v725, 18
        %v2003 = vpop.permute.xlu0 %2002
        %2004 = vrot.lane.b32.xlu0 %v726, 18
        %v2005 = vpop.permute.xlu0 %2004
        %2006 = vrot.lane.b32.xlu0 %v727, 18
        %v2007 = vpop.permute.xlu0 %2006
        %2008 = vrot.lane.b32.xlu0 %v728, 18
        %v2009 = vpop.permute.xlu0 %2008
        %2010 = vrot.lane.b32.xlu0 %v729, 18
        %v2011 = vpop.permute.xlu0 %2010
        %2012 = vrot.lane.b32.xlu0 %v730, 18
        %v2013 = vpop.permute.xlu0 %2012
        %2014 = vrot.lane.b32.xlu0 %v731, 18
        %v2015 = vpop.permute.xlu0 %2014
        %2016 = vrot.lane.b32.xlu0 %v732, 18
        %v2017 = vpop.permute.xlu0 %2016
        %2018 = vrot.lane.b32.xlu0 %v733, 18
        %v2019 = vpop.permute.xlu0 %2018
        %2020 = vrot.lane.b32.xlu0 %v734, 18
        %v2021 = vpop.permute.xlu0 %2020
        %2022 = vrot.lane.b32.xlu0 %v735, 18
        %v2023 = vpop.permute.xlu0 %2022
        %2024 = vrot.lane.b32.xlu0 %v736, 18
        %v2025 = vpop.permute.xlu0 %2024
        %2026 = vrot.lane.b32.xlu0 %v737, 18
        %v2027 = vpop.permute.xlu0 %2026
        %2028 = vrot.lane.b32.xlu0 %v738, 18
        %v2029 = vpop.permute.xlu0 %2028
        %2030 = vrot.lane.b32.xlu0 %v739, 18
        %v2031 = vpop.permute.xlu0 %2030
        %2032 = vrot.lane.b32.xlu0 %v740, 18
        %v2033 = vpop.permute.xlu0 %2032
        %2034 = vrot.lane.b32.xlu0 %v741, 18
        %v2035 = vpop.permute.xlu0 %2034
        %2036 = vrot.lane.b32.xlu0 %v742, 18
        %v2037 = vpop.permute.xlu0 %2036
        %2038 = vrot.lane.b32.xlu0 %v743, 18
        %v2039 = vpop.permute.xlu0 %2038
        %2040 = vrot.lane.b32.xlu0 %v744, 18
        %v2041 = vpop.permute.xlu0 %2040
        %2042 = vrot.lane.b32.xlu0 %v745, 18
        %v2043 = vpop.permute.xlu0 %2042
        %2044 = vrot.lane.b32.xlu0 %v746, 18
        %v2045 = vpop.permute.xlu0 %2044
        %2046 = vrot.lane.b32.xlu0 %v747, 18
        %v2047 = vpop.permute.xlu0 %2046
        %2048 = vrot.lane.b32.xlu0 %v748, 18
        %v2049 = vpop.permute.xlu0 %2048
        %2050 = vrot.lane.b32.xlu0 %v749, 18
        %v2051 = vpop.permute.xlu0 %2050
        %2052 = vrot.lane.b32.xlu0 %v750, 18
        %v2053 = vpop.permute.xlu0 %2052
        %2054 = vrot.lane.b32.xlu0 %v751, 18
        %v2055 = vpop.permute.xlu0 %2054
        %2056 = vrot.lane.b32.xlu0 %v752, 18
        %v2057 = vpop.permute.xlu0 %2056
        %2058 = vrot.lane.b32.xlu0 %v753, 18
        %v2059 = vpop.permute.xlu0 %2058
        %2060 = vrot.lane.b32.xlu0 %v754, 18
        %v2061 = vpop.permute.xlu0 %2060
        %2062 = vrot.lane.b32.xlu0 %v755, 18
        %v2063 = vpop.permute.xlu0 %2062
        %2064 = vrot.lane.b32.xlu0 %v756, 18
        %v2065 = vpop.permute.xlu0 %2064
        %2066 = vrot.lane.b32.xlu0 %v757, 18
        %v2067 = vpop.permute.xlu0 %2066
        %2068 = vrot.lane.b32.xlu0 %v758, 18
        %v2069 = vpop.permute.xlu0 %2068
        %2070 = vrot.lane.b32.xlu0 %v759, 18
        %v2071 = vpop.permute.xlu0 %2070
        %2072 = vrot.lane.b32.xlu0 %v760, 18
        %v2073 = vpop.permute.xlu0 %2072
        %2074 = vrot.lane.b32.xlu0 %v761, 18
        %v2075 = vpop.permute.xlu0 %2074
        %2076 = vrot.lane.b32.xlu0 %v762, 18
        %v2077 = vpop.permute.xlu0 %2076
        %2078 = vrot.lane.b32.xlu0 %v763, 18
        %v2079 = vpop.permute.xlu0 %2078
        %2080 = vrot.lane.b32.xlu0 %v764, 18
        %v2081 = vpop.permute.xlu0 %2080
        %2082 = vrot.lane.b32.xlu0 %v765, 18
        %v2083 = vpop.permute.xlu0 %2082
        %2084 = vrot.lane.b32.xlu0 %v766, 18
        %v2085 = vpop.permute.xlu0 %2084
        %2086 = vrot.lane.b32.xlu0 %v767, 18
        %v2087 = vpop.permute.xlu0 %2086
        %2088 = vrot.lane.b32.xlu0 %v768, 18
        %v2089 = vpop.permute.xlu0 %2088
        %2090 = vrot.lane.b32.xlu0 %v769, 18
        %v2091 = vpop.permute.xlu0 %2090
        %2092 = vrot.lane.b32.xlu0 %v770, 18
        %v2093 = vpop.permute.xlu0 %2092
        %2094 = vrot.lane.b32.xlu0 %v771, 18
        %v2095 = vpop.permute.xlu0 %2094
        %2206 = vrot.lane.b32.xlu0 %v772, 21
        %v2207 = vpop.permute.xlu0 %2206
        %2208 = vrot.lane.b32.xlu0 %v773, 21
        %v2209 = vpop.permute.xlu0 %2208
        %2210 = vrot.lane.b32.xlu0 %v774, 21
        %v2211 = vpop.permute.xlu0 %2210
        %2212 = vrot.lane.b32.xlu0 %v775, 21
        %v2213 = vpop.permute.xlu0 %2212
        %2214 = vrot.lane.b32.xlu0 %v776, 21
        %v2215 = vpop.permute.xlu0 %2214
        %2216 = vrot.lane.b32.xlu0 %v777, 21
        %v2217 = vpop.permute.xlu0 %2216
        %2218 = vrot.lane.b32.xlu0 %v778, 21
        %v2219 = vpop.permute.xlu0 %2218
        %2220 = vrot.lane.b32.xlu0 %v779, 21
        %v2221 = vpop.permute.xlu0 %2220
        %2222 = vrot.lane.b32.xlu0 %v780, 21
        %v2223 = vpop.permute.xlu0 %2222
        %2224 = vrot.lane.b32.xlu0 %v781, 21
        %v2225 = vpop.permute.xlu0 %2224
        %2226 = vrot.lane.b32.xlu0 %v782, 21
        %v2227 = vpop.permute.xlu0 %2226
        %2228 = vrot.lane.b32.xlu0 %v783, 21
        %v2229 = vpop.permute.xlu0 %2228
        %2230 = vrot.lane.b32.xlu0 %v784, 21
        %v2231 = vpop.permute.xlu0 %2230
        %2232 = vrot.lane.b32.xlu0 %v785, 21
        %v2233 = vpop.permute.xlu0 %2232
        %2234 = vrot.lane.b32.xlu0 %v786, 21
        %v2235 = vpop.permute.xlu0 %2234
        %2236 = vrot.lane.b32.xlu0 %v787, 21
        %v2237 = vpop.permute.xlu0 %2236
        %2238 = vrot.lane.b32.xlu0 %v788, 21
        %v2239 = vpop.permute.xlu0 %2238
        %2240 = vrot.lane.b32.xlu0 %v789, 21
        %v2241 = vpop.permute.xlu0 %2240
        %2242 = vrot.lane.b32.xlu0 %v790, 21
        %v2243 = vpop.permute.xlu0 %2242
        %2244 = vrot.lane.b32.xlu0 %v791, 21
        %v2245 = vpop.permute.xlu0 %2244
        %2246 = vrot.lane.b32.xlu0 %v792, 21
        %v2247 = vpop.permute.xlu0 %2246
        %2248 = vrot.lane.b32.xlu0 %v793, 21
        %v2249 = vpop.permute.xlu0 %2248
        %2250 = vrot.lane.b32.xlu0 %v794, 21
        %v2251 = vpop.permute.xlu0 %2250
        %2252 = vrot.lane.b32.xlu0 %v795, 21
        %v2253 = vpop.permute.xlu0 %2252
        %2254 = vrot.lane.b32.xlu0 %v796, 21
        %v2255 = vpop.permute.xlu0 %2254
        %2256 = vrot.lane.b32.xlu0 %v797, 21
        %v2257 = vpop.permute.xlu0 %2256
        %2258 = vrot.lane.b32.xlu0 %v798, 21
        %v2259 = vpop.permute.xlu0 %2258
        %2260 = vrot.lane.b32.xlu0 %v799, 21
        %v2261 = vpop.permute.xlu0 %2260
        %2262 = vrot.lane.b32.xlu0 %v800, 21
        %v2263 = vpop.permute.xlu0 %2262
        %2264 = vrot.lane.b32.xlu0 %v801, 21
        %v2265 = vpop.permute.xlu0 %2264
        %2266 = vrot.lane.b32.xlu0 %v802, 21
        %v2267 = vpop.permute.xlu0 %2266
        %2268 = vrot.lane.b32.xlu0 %v803, 21
        %v2269 = vpop.permute.xlu0 %2268
        %2270 = vrot.lane.b32.xlu0 %v804, 21
        %v2271 = vpop.permute.xlu0 %2270
        %2272 = vrot.lane.b32.xlu0 %v805, 21
        %v2273 = vpop.permute.xlu0 %2272
        %2274 = vrot.lane.b32.xlu0 %v806, 21
        %v2275 = vpop.permute.xlu0 %2274
        %2276 = vrot.lane.b32.xlu0 %v807, 21
        %v2277 = vpop.permute.xlu0 %2276
        %2278 = vrot.lane.b32.xlu0 %v808, 21
        %v2279 = vpop.permute.xlu0 %2278
        %2280 = vrot.lane.b32.xlu0 %v809, 21
        %v2281 = vpop.permute.xlu0 %2280
        %2282 = vrot.lane.b32.xlu0 %v810, 21
        %v2283 = vpop.permute.xlu0 %2282
        %2284 = vrot.lane.b32.xlu0 %v811, 21
        %v2285 = vpop.permute.xlu0 %2284
        %2286 = vrot.lane.b32.xlu0 %v812, 21
        %v2287 = vpop.permute.xlu0 %2286
        %2288 = vrot.lane.b32.xlu0 %v813, 21
        %v2289 = vpop.permute.xlu0 %2288
        %2290 = vrot.lane.b32.xlu0 %v814, 21
        %v2291 = vpop.permute.xlu0 %2290
        %2292 = vrot.lane.b32.xlu0 %v815, 21
        %v2293 = vpop.permute.xlu0 %2292
        %2294 = vrot.lane.b32.xlu0 %v816, 21
        %v2295 = vpop.permute.xlu0 %2294
        %2296 = vrot.lane.b32.xlu0 %v817, 21
        %v2297 = vpop.permute.xlu0 %2296
        %2298 = vrot.lane.b32.xlu0 %v818, 21
        %v2299 = vpop.permute.xlu0 %2298
        %2300 = vrot.lane.b32.xlu0 %v819, 21
        %v2301 = vpop.permute.xlu0 %2300
        %2302 = vrot.lane.b32.xlu0 %v820, 21
        %v2303 = vpop.permute.xlu0 %2302
        %2304 = vrot.lane.b32.xlu0 %v821, 21
        %v2305 = vpop.permute.xlu0 %2304
        %2306 = vrot.lane.b32.xlu0 %v822, 21
        %v2307 = vpop.permute.xlu0 %2306
        %2308 = vrot.lane.b32.xlu0 %v823, 21
        %v2309 = vpop.permute.xlu0 %2308
        %2310 = vrot.lane.b32.xlu0 %v824, 21
        %v2311 = vpop.permute.xlu0 %2310
        %2312 = vrot.lane.b32.xlu0 %v825, 21
        %v2313 = vpop.permute.xlu0 %2312
        %2314 = vrot.lane.b32.xlu0 %v826, 21
        %v2315 = vpop.permute.xlu0 %2314
        %2375 = vrot.lane.b32.xlu0 %v606, 24
        %v2376 = vpop.permute.xlu0 %2375
        %2377 = vrot.lane.b32.xlu0 %v607, 24
        %v2378 = vpop.permute.xlu0 %2377
        %2379 = vrot.lane.b32.xlu0 %v608, 24
        %v2380 = vpop.permute.xlu0 %2379
        %2381 = vrot.lane.b32.xlu0 %v609, 24
        %v2382 = vpop.permute.xlu0 %2381
        %2383 = vrot.lane.b32.xlu0 %v610, 24
        %v2384 = vpop.permute.xlu0 %2383
        %2385 = vrot.lane.b32.xlu0 %v611, 24
        %v2386 = vpop.permute.xlu0 %2385
        %2387 = vrot.lane.b32.xlu0 %v612, 24
        %v2388 = vpop.permute.xlu0 %2387
        %2389 = vrot.lane.b32.xlu0 %v613, 24
        %v2390 = vpop.permute.xlu0 %2389
        %2391 = vrot.lane.b32.xlu0 %v614, 24
        %v2392 = vpop.permute.xlu0 %2391
        %2393 = vrot.lane.b32.xlu0 %v615, 24
        %v2394 = vpop.permute.xlu0 %2393
        %2395 = vrot.lane.b32.xlu0 %v616, 24
        %v2396 = vpop.permute.xlu0 %2395
        %2397 = vrot.lane.b32.xlu0 %v617, 24
        %v2398 = vpop.permute.xlu0 %2397
        %2399 = vrot.lane.b32.xlu0 %v618, 24
        %v2400 = vpop.permute.xlu0 %2399
        %2401 = vrot.lane.b32.xlu0 %v619, 24
        %v2402 = vpop.permute.xlu0 %2401
        %2403 = vrot.lane.b32.xlu0 %v620, 24
        %v2404 = vpop.permute.xlu0 %2403
        %2405 = vrot.lane.b32.xlu0 %v621, 24
        %v2406 = vpop.permute.xlu0 %2405
        %2407 = vrot.lane.b32.xlu0 %v622, 24
        %v2408 = vpop.permute.xlu0 %2407
        %2409 = vrot.lane.b32.xlu0 %v623, 24
        %v2410 = vpop.permute.xlu0 %2409
        %2411 = vrot.lane.b32.xlu0 %v624, 24
        %v2412 = vpop.permute.xlu0 %2411
        %2413 = vrot.lane.b32.xlu0 %v625, 24
        %v2414 = vpop.permute.xlu0 %2413
        %2415 = vrot.lane.b32.xlu0 %v626, 24
        %v2416 = vpop.permute.xlu0 %2415
        %2417 = vrot.lane.b32.xlu0 %v627, 24
        %v2418 = vpop.permute.xlu0 %2417
        %2419 = vrot.lane.b32.xlu0 %v628, 24
        %v2420 = vpop.permute.xlu0 %2419
        %2421 = vrot.lane.b32.xlu0 %v629, 24
        %v2422 = vpop.permute.xlu0 %2421
        %2423 = vrot.lane.b32.xlu0 %v630, 24
        %v2424 = vpop.permute.xlu0 %2423
        %2425 = vrot.lane.b32.xlu0 %v631, 24
        %v2426 = vpop.permute.xlu0 %2425
        %2427 = vrot.lane.b32.xlu0 %v632, 24
        %v2428 = vpop.permute.xlu0 %2427
        %2429 = vrot.lane.b32.xlu0 %v633, 24
        %v2430 = vpop.permute.xlu0 %2429
        %2431 = vrot.lane.b32.xlu0 %v634, 24
        %v2432 = vpop.permute.xlu0 %2431
        %2433 = vrot.lane.b32.xlu0 %v635, 24
        %v2434 = vpop.permute.xlu0 %2433
        %2435 = vrot.lane.b32.xlu0 %v636, 24
        %v2436 = vpop.permute.xlu0 %2435
        %2437 = vrot.lane.b32.xlu0 %v637, 24
        %v2438 = vpop.permute.xlu0 %2437
        %2439 = vrot.lane.b32.xlu0 %v638, 24
        %v2440 = vpop.permute.xlu0 %2439
        %2441 = vrot.lane.b32.xlu0 %v639, 24
        %v2442 = vpop.permute.xlu0 %2441
        %2443 = vrot.lane.b32.xlu0 %v640, 24
        %v2444 = vpop.permute.xlu0 %2443
        %2445 = vrot.lane.b32.xlu0 %v641, 24
        %v2446 = vpop.permute.xlu0 %2445
        %2447 = vrot.lane.b32.xlu0 %v642, 24
        %v2448 = vpop.permute.xlu0 %2447
        %2449 = vrot.lane.b32.xlu0 %v643, 24
        %v2450 = vpop.permute.xlu0 %2449
        %2451 = vrot.lane.b32.xlu0 %v644, 24
        %v2452 = vpop.permute.xlu0 %2451
        %2453 = vrot.lane.b32.xlu0 %v645, 24
        %v2454 = vpop.permute.xlu0 %2453
        %2455 = vrot.lane.b32.xlu0 %v646, 24
        %v2456 = vpop.permute.xlu0 %2455
        %2457 = vrot.lane.b32.xlu0 %v647, 24
        %v2458 = vpop.permute.xlu0 %2457
        %2459 = vrot.lane.b32.xlu0 %v648, 24
        %v2460 = vpop.permute.xlu0 %2459
        %2461 = vrot.lane.b32.xlu0 %v649, 24
        %v2462 = vpop.permute.xlu0 %2461
        %2463 = vrot.lane.b32.xlu0 %v650, 24
        %v2464 = vpop.permute.xlu0 %2463
        %2465 = vrot.lane.b32.xlu0 %v651, 24
        %v2466 = vpop.permute.xlu0 %2465
        %2467 = vrot.lane.b32.xlu0 %v652, 24
        %v2468 = vpop.permute.xlu0 %2467
        %2469 = vrot.lane.b32.xlu0 %v653, 24
        %v2470 = vpop.permute.xlu0 %2469
        %2471 = vrot.lane.b32.xlu0 %v654, 24
        %v2472 = vpop.permute.xlu0 %2471
        %2473 = vrot.lane.b32.xlu0 %v655, 24
        %v2474 = vpop.permute.xlu0 %2473
        %2475 = vrot.lane.b32.xlu0 %v656, 24
        %v2476 = vpop.permute.xlu0 %2475
        %2477 = vrot.lane.b32.xlu0 %v827, 24
        %v2478 = vpop.permute.xlu0 %2477
        %2479 = vrot.lane.b32.xlu0 %v828, 24
        %v2480 = vpop.permute.xlu0 %2479
        %2481 = vrot.lane.b32.xlu0 %v829, 24
        %v2482 = vpop.permute.xlu0 %2481
        %2483 = vrot.lane.b32.xlu0 %v830, 24
        %v2484 = vpop.permute.xlu0 %2483
        %vm2540 = vcmask 23552
        %v2541 = vsel %vm2540, %v438, %v887
        %v2542 = vsel %vm2540, %v439, %v889
        %v2543 = vsel %vm2540, %v440, %v891
        %v2544 = vsel %vm2540, %v441, %v893
        %v2545 = vsel %vm2540, %v442, %v895
        %v2546 = vsel %vm2540, %v443, %v897
        %v2547 = vsel %vm2540, %v444, %v899
        %v2548 = vsel %vm2540, %v445, %v901
        %v2549 = vsel %vm2540, %v446, %v903
        %v2550 = vsel %vm2540, %v447, %v905
        %v2551 = vsel %vm2540, %v448, %v907
        %v2552 = vsel %vm2540, %v449, %v909
        %v2553 = vsel %vm2540, %v450, %v911
        %v2554 = vsel %vm2540, %v451, %v913
        %v2555 = vsel %vm2540, %v452, %v915
        %v2556 = vsel %vm2540, %v453, %v917
        %v2557 = vsel %vm2540, %v454, %v919
        %v2558 = vsel %vm2540, %v455, %v921
        %v2559 = vsel %vm2540, %v456, %v923
        %v2560 = vsel %vm2540, %v457, %v925
        %v2561 = vsel %vm2540, %v458, %v927
        %v2562 = vsel %vm2540, %v459, %v929
        %v2563 = vsel %vm2540, %v460, %v931
        %v2564 = vsel %vm2540, %v461, %v933
        %v2565 = vsel %vm2540, %v462, %v935
        %v2566 = vsel %vm2540, %v463, %v937
        %v2567 = vsel %vm2540, %v464, %v939
        %v2568 = vsel %vm2540, %v465, %v941
        %v2569 = vsel %vm2540, %v466, %v943
        %v2570 = vsel %vm2540, %v467, %v945
        %v2571 = vsel %vm2540, %v468, %v947
        %v2572 = vsel %vm2540, %v469, %v949
        %v2573 = vsel %vm2540, %v470, %v951
        %v2574 = vsel %vm2540, %v471, %v953
        %v2575 = vsel %vm2540, %v472, %v955
        %v2576 = vsel %vm2540, %v473, %v957
        %v2577 = vsel %vm2540, %v474, %v959
        %v2578 = vsel %vm2540, %v475, %v961
        %v2579 = vsel %vm2540, %v476, %v963
        %v2580 = vsel %vm2540, %v477, %v965
        %v2581 = vsel %vm2540, %v478, %v967
        %v2582 = vsel %vm2540, %v479, %v969
        %v2583 = vsel %vm2540, %v480, %v971
        %v2584 = vsel %vm2540, %v481, %v973
        %v2585 = vsel %vm2540, %v482, %v975
        %v2586 = vsel %vm2540, %v483, %v977
        %v2587 = vsel %vm2540, %v484, %v979
        %v2588 = vsel %vm2540, %v485, %v981
        %v2589 = vsel %vm2540, %v486, %v983
        %v2590 = vsel %vm2540, %v487, %v985
        %v2591 = vsel %vm2540, %v488, %v987
        %v2592 = vsel %vm2540, %v489, %v989
        %v2593 = vsel %vm2540, %v490, %v991
        %v2594 = vsel %vm2540, %v491, %v993
        %v2595 = vsel %vm2540, %v492, %v995
        %vm2596 = vcmask 48128
        %v2597 = vsel %vm2596, %v2541, %v1107
        %v2598 = vsel %vm2596, %v2542, %v1109
        %v2599 = vsel %vm2596, %v2543, %v1111
        %v2600 = vsel %vm2596, %v2544, %v1113
        %v2601 = vsel %vm2596, %v2545, %v1115
        %v2602 = vsel %vm2596, %v2546, %v1117
        %v2603 = vsel %vm2596, %v2547, %v1119
        %v2604 = vsel %vm2596, %v2548, %v1121
        %v2605 = vsel %vm2596, %v2549, %v1123
        %v2606 = vsel %vm2596, %v2550, %v1125
        %v2607 = vsel %vm2596, %v2551, %v1127
        %v2608 = vsel %vm2596, %v2552, %v1129
        %v2609 = vsel %vm2596, %v2553, %v1131
        %v2610 = vsel %vm2596, %v2554, %v1133
        %v2611 = vsel %vm2596, %v2555, %v1135
        %v2612 = vsel %vm2596, %v2556, %v1137
        %v2613 = vsel %vm2596, %v2557, %v1139
        %v2614 = vsel %vm2596, %v2558, %v1141
        %v2615 = vsel %vm2596, %v2559, %v1143
        %v2616 = vsel %vm2596, %v2560, %v1145
        %v2617 = vsel %vm2596, %v2561, %v1147
        %v2618 = vsel %vm2596, %v2562, %v1149
        %v2619 = vsel %vm2596, %v2563, %v1151
        %v2620 = vsel %vm2596, %v2564, %v1153
        %v2621 = vsel %vm2596, %v2565, %v1155
        %v2622 = vsel %vm2596, %v2566, %v1157
        %v2623 = vsel %vm2596, %v2567, %v1159
        %v2624 = vsel %vm2596, %v2568, %v1161
        %v2625 = vsel %vm2596, %v2569, %v1163
        %v2626 = vsel %vm2596, %v2570, %v1165
        %v2627 = vsel %vm2596, %v2571, %v1167
        %v2628 = vsel %vm2596, %v2572, %v1169
        %v2629 = vsel %vm2596, %v2573, %v1171
        %v2630 = vsel %vm2596, %v2574, %v1173
        %v2631 = vsel %vm2596, %v2575, %v1175
        %v2632 = vsel %vm2596, %v2576, %v1177
        %v2633 = vsel %vm2596, %v2577, %v1179
        %v2634 = vsel %vm2596, %v2578, %v1181
        %v2635 = vsel %vm2596, %v2579, %v1183
        %v2636 = vsel %vm2596, %v2580, %v1185
        %v2637 = vsel %vm2596, %v2581, %v1187
        %v2638 = vsel %vm2596, %v2582, %v1189
        %v2639 = vsel %vm2596, %v2583, %v1191
        %v2640 = vsel %vm2596, %v2584, %v1193
        %v2641 = vsel %vm2596, %v2585, %v1195
        %v2642 = vsel %vm2596, %v2586, %v1197
        %v2643 = vsel %vm2596, %v2587, %v1199
        %v2644 = vsel %vm2596, %v2588, %v1201
        %v2645 = vsel %vm2596, %v2589, %v1203
        %v2646 = vsel %vm2596, %v2590, %v1205
        %v2647 = vsel %vm2596, %v2591, %v1207
        %v2648 = vsel %vm2596, %v2592, %v1209
        %v2649 = vsel %vm2596, %v2593, %v1211
        %v2650 = vsel %vm2596, %v2594, %v1213
        %v2651 = vsel %vm2596, %v2595, %v1215
        %vm2652 = vcmask 72704
        %v2653 = vsel %vm2652, %v2597, %v1327
        %v2654 = vsel %vm2652, %v2598, %v1329
        %v2655 = vsel %vm2652, %v2599, %v1331
        %v2656 = vsel %vm2652, %v2600, %v1333
        %v2657 = vsel %vm2652, %v2601, %v1335
        %v2658 = vsel %vm2652, %v2602, %v1337
        %v2659 = vsel %vm2652, %v2603, %v1339
        %v2660 = vsel %vm2652, %v2604, %v1341
        %v2661 = vsel %vm2652, %v2605, %v1343
        %v2662 = vsel %vm2652, %v2606, %v1345
        %v2663 = vsel %vm2652, %v2607, %v1347
        %v2664 = vsel %vm2652, %v2608, %v1349
        %v2665 = vsel %vm2652, %v2609, %v1351
        %v2666 = vsel %vm2652, %v2610, %v1353
        %v2667 = vsel %vm2652, %v2611, %v1355
        %v2668 = vsel %vm2652, %v2612, %v1357
        %v2669 = vsel %vm2652, %v2613, %v1359
        %v2670 = vsel %vm2652, %v2614, %v1361
        %v2671 = vsel %vm2652, %v2615, %v1363
        %v2672 = vsel %vm2652, %v2616, %v1365
        %v2673 = vsel %vm2652, %v2617, %v1367
        %v2674 = vsel %vm2652, %v2618, %v1369
        %v2675 = vsel %vm2652, %v2619, %v1371
        %v2676 = vsel %vm2652, %v2620, %v1373
        %v2677 = vsel %vm2652, %v2621, %v1375
        %v2678 = vsel %vm2652, %v2622, %v1377
        %v2679 = vsel %vm2652, %v2623, %v1379
        %v2680 = vsel %vm2652, %v2624, %v1381
        %v2681 = vsel %vm2652, %v2625, %v1383
        %v2682 = vsel %vm2652, %v2626, %v1385
        %v2683 = vsel %vm2652, %v2627, %v1387
        %v2684 = vsel %vm2652, %v2628, %v1389
        %v2685 = vsel %vm2652, %v2629, %v1391
        %v2686 = vsel %vm2652, %v2630, %v1393
        %v2687 = vsel %vm2652, %v2631, %v1395
        %v2688 = vsel %vm2652, %v2632, %v1397
        %v2689 = vsel %vm2652, %v2633, %v1399
        %v2690 = vsel %vm2652, %v2634, %v1401
        %v2691 = vsel %vm2652, %v2635, %v1403
        %v2692 = vsel %vm2652, %v2636, %v1405
        %v2693 = vsel %vm2652, %v2637, %v1407
        %v2694 = vsel %vm2652, %v2638, %v1409
        %v2695 = vsel %vm2652, %v2639, %v1411
        %v2696 = vsel %vm2652, %v2640, %v1413
        %v2697 = vsel %vm2652, %v2641, %v1415
        %v2698 = vsel %vm2652, %v2642, %v1417
        %v2699 = vsel %vm2652, %v2643, %v1419
        %v2700 = vsel %vm2652, %v2644, %v1421
        %v2701 = vsel %vm2652, %v2645, %v1423
        %v2702 = vsel %vm2652, %v2646, %v1425
        %v2703 = vsel %vm2652, %v2647, %v1427
        %v2704 = vsel %vm2652, %v2648, %v1429
        %v2705 = vsel %vm2652, %v2649, %v1431
        %v2706 = vsel %vm2652, %v2650, %v1433
        %v2707 = vsel %vm2652, %v2651, %v1435
        %vm2708 = vcmask 97280
        %v2709 = vsel %vm2708, %v2653, %v1547
        %v2710 = vsel %vm2708, %v2654, %v1549
        %v2711 = vsel %vm2708, %v2655, %v1551
        %v2712 = vsel %vm2708, %v2656, %v1553
        %v2713 = vsel %vm2708, %v2657, %v1555
        %v2714 = vsel %vm2708, %v2658, %v1557
        %v2715 = vsel %vm2708, %v2659, %v1559
        %v2716 = vsel %vm2708, %v2660, %v1561
        %v2717 = vsel %vm2708, %v2661, %v1563
        %v2718 = vsel %vm2708, %v2662, %v1565
        %v2719 = vsel %vm2708, %v2663, %v1567
        %v2720 = vsel %vm2708, %v2664, %v1569
        %v2721 = vsel %vm2708, %v2665, %v1571
        %v2722 = vsel %vm2708, %v2666, %v1573
        %v2723 = vsel %vm2708, %v2667, %v1575
        %v2724 = vsel %vm2708, %v2668, %v1577
        %v2725 = vsel %vm2708, %v2669, %v1579
        %v2726 = vsel %vm2708, %v2670, %v1581
        %v2727 = vsel %vm2708, %v2671, %v1583
        %v2728 = vsel %vm2708, %v2672, %v1585
        %v2729 = vsel %vm2708, %v2673, %v1587
        %v2730 = vsel %vm2708, %v2674, %v1589
        %v2731 = vsel %vm2708, %v2675, %v1591
        %v2732 = vsel %vm2708, %v2676, %v1593
        %v2733 = vsel %vm2708, %v2677, %v1595
        %v2734 = vsel %vm2708, %v2678, %v1597
        %v2735 = vsel %vm2708, %v2679, %v1599
        %v2736 = vsel %vm2708, %v2680, %v1601
        %v2737 = vsel %vm2708, %v2681, %v1603
        %v2738 = vsel %vm2708, %v2682, %v1605
        %v2739 = vsel %vm2708, %v2683, %v1607
        %v2740 = vsel %vm2708, %v2684, %v1609
        %v2741 = vsel %vm2708, %v2685, %v1611
        %v2742 = vsel %vm2708, %v2686, %v1613
        %v2743 = vsel %vm2708, %v2687, %v1615
        %v2744 = vsel %vm2708, %v2688, %v1617
        %v2745 = vsel %vm2708, %v2689, %v1619
        %v2746 = vsel %vm2708, %v2690, %v1621
        %v2747 = vsel %vm2708, %v2691, %v1623
        %v2748 = vsel %vm2708, %v2692, %v1625
        %v2749 = vsel %vm2708, %v2693, %v1627
        %v2750 = vsel %vm2708, %v2694, %v1629
        %v2751 = vsel %vm2708, %v2695, %v1631
        %v2752 = vsel %vm2708, %v2696, %v1633
        %v2753 = vsel %vm2708, %v2697, %v1635
        %v2754 = vsel %vm2708, %v2698, %v1637
        %v2755 = vsel %vm2708, %v2699, %v1639
        %v2756 = vsel %vm2708, %v2700, %v1641
        %v2757 = vsel %vm2708, %v2701, %v1643
        %v2758 = vsel %vm2708, %v2702, %v1645
        %v2759 = vsel %vm2708, %v2703, %v1647
        %v2760 = vsel %vm2708, %v2704, %v1649
        %v2761 = vsel %vm2708, %v2705, %v1651
        %v2762 = vsel %vm2708, %v2706, %v1653
        %v2763 = vsel %vm2708, %v2707, %v1655
        %vm2764 = vcmask 121856
        %v2765 = vsel %vm2764, %v2709, %v1767
        %v2766 = vsel %vm2764, %v2710, %v1769
        %v2767 = vsel %vm2764, %v2711, %v1771
        %v2768 = vsel %vm2764, %v2712, %v1773
        %v2769 = vsel %vm2764, %v2713, %v1775
        %v2770 = vsel %vm2764, %v2714, %v1777
        %v2771 = vsel %vm2764, %v2715, %v1779
        %v2772 = vsel %vm2764, %v2716, %v1781
        %v2773 = vsel %vm2764, %v2717, %v1783
        %v2774 = vsel %vm2764, %v2718, %v1785
        %v2775 = vsel %vm2764, %v2719, %v1787
        %v2776 = vsel %vm2764, %v2720, %v1789
        %v2777 = vsel %vm2764, %v2721, %v1791
        %v2778 = vsel %vm2764, %v2722, %v1793
        %v2779 = vsel %vm2764, %v2723, %v1795
        %v2780 = vsel %vm2764, %v2724, %v1797
        %v2781 = vsel %vm2764, %v2725, %v1799
        %v2782 = vsel %vm2764, %v2726, %v1801
        %v2783 = vsel %vm2764, %v2727, %v1803
        %v2784 = vsel %vm2764, %v2728, %v1805
        %v2785 = vsel %vm2764, %v2729, %v1807
        %v2786 = vsel %vm2764, %v2730, %v1809
        %v2787 = vsel %vm2764, %v2731, %v1811
        %v2788 = vsel %vm2764, %v2732, %v1813
        %v2789 = vsel %vm2764, %v2733, %v1815
        %v2790 = vsel %vm2764, %v2734, %v1817
        %v2791 = vsel %vm2764, %v2735, %v1819
        %v2792 = vsel %vm2764, %v2736, %v1821
        %v2793 = vsel %vm2764, %v2737, %v1823
        %v2794 = vsel %vm2764, %v2738, %v1825
        %v2795 = vsel %vm2764, %v2739, %v1827
        %v2796 = vsel %vm2764, %v2740, %v1829
        %v2797 = vsel %vm2764, %v2741, %v1831
        %v2798 = vsel %vm2764, %v2742, %v1833
        %v2799 = vsel %vm2764, %v2743, %v1835
        %v2800 = vsel %vm2764, %v2744, %v1837
        %v2801 = vsel %vm2764, %v2745, %v1839
        %v2802 = vsel %vm2764, %v2746, %v1841
        %v2803 = vsel %vm2764, %v2747, %v1843
        %v2804 = vsel %vm2764, %v2748, %v1845
        %v2805 = vsel %vm2764, %v2749, %v1847
        %v2806 = vsel %vm2764, %v2750, %v1849
        %v2807 = vsel %vm2764, %v2751, %v1851
        %v2808 = vsel %vm2764, %v2752, %v1853
        %v2809 = vsel %vm2764, %v2753, %v1855
        %v2810 = vsel %vm2764, %v2754, %v1857
        %v2811 = vsel %vm2764, %v2755, %v1859
        %v2812 = vsel %vm2764, %v2756, %v1861
        %v2813 = vsel %vm2764, %v2757, %v1863
        %v2814 = vsel %vm2764, %v2758, %v1865
        %v2815 = vsel %vm2764, %v2759, %v1867
        %v2816 = vsel %vm2764, %v2760, %v1869
        %v2817 = vsel %vm2764, %v2761, %v1871
        %v2818 = vsel %vm2764, %v2762, %v1873
        %v2819 = vsel %vm2764, %v2763, %v1875
        %vm2820 = vcmask 146432
        %v2821 = vsel %vm2820, %v2765, %v1987
        %v2822 = vsel %vm2820, %v2766, %v1989
        %v2823 = vsel %vm2820, %v2767, %v1991
        %v2824 = vsel %vm2820, %v2768, %v1993
        %v2825 = vsel %vm2820, %v2769, %v1995
        %v2826 = vsel %vm2820, %v2770, %v1997
        %v2827 = vsel %vm2820, %v2771, %v1999
        %v2828 = vsel %vm2820, %v2772, %v2001
        %v2829 = vsel %vm2820, %v2773, %v2003
        %v2830 = vsel %vm2820, %v2774, %v2005
        %v2831 = vsel %vm2820, %v2775, %v2007
        %v2832 = vsel %vm2820, %v2776, %v2009
        %v2833 = vsel %vm2820, %v2777, %v2011
        %v2834 = vsel %vm2820, %v2778, %v2013
        %v2835 = vsel %vm2820, %v2779, %v2015
        %v2836 = vsel %vm2820, %v2780, %v2017
        %v2837 = vsel %vm2820, %v2781, %v2019
        %v2838 = vsel %vm2820, %v2782, %v2021
        %v2839 = vsel %vm2820, %v2783, %v2023
        %v2840 = vsel %vm2820, %v2784, %v2025
        %v2841 = vsel %vm2820, %v2785, %v2027
        %v2842 = vsel %vm2820, %v2786, %v2029
        %v2843 = vsel %vm2820, %v2787, %v2031
        %v2844 = vsel %vm2820, %v2788, %v2033
        %v2845 = vsel %vm2820, %v2789, %v2035
        %v2846 = vsel %vm2820, %v2790, %v2037
        %v2847 = vsel %vm2820, %v2791, %v2039
        %v2848 = vsel %vm2820, %v2792, %v2041
        %v2849 = vsel %vm2820, %v2793, %v2043
        %v2850 = vsel %vm2820, %v2794, %v2045
        %v2851 = vsel %vm2820, %v2795, %v2047
        %v2852 = vsel %vm2820, %v2796, %v2049
        %v2853 = vsel %vm2820, %v2797, %v2051
        %v2854 = vsel %vm2820, %v2798, %v2053
        %v2855 = vsel %vm2820, %v2799, %v2055
        %v2856 = vsel %vm2820, %v2800, %v2057
        %v2857 = vsel %vm2820, %v2801, %v2059
        %v2858 = vsel %vm2820, %v2802, %v2061
        %v2859 = vsel %vm2820, %v2803, %v2063
        %v2860 = vsel %vm2820, %v2804, %v2065
        %v2861 = vsel %vm2820, %v2805, %v2067
        %v2862 = vsel %vm2820, %v2806, %v2069
        %v2863 = vsel %vm2820, %v2807, %v2071
        %v2864 = vsel %vm2820, %v2808, %v2073
        %v2865 = vsel %vm2820, %v2809, %v2075
        %v2866 = vsel %vm2820, %v2810, %v2077
        %v2867 = vsel %vm2820, %v2811, %v2079
        %v2868 = vsel %vm2820, %v2812, %v2081
        %v2869 = vsel %vm2820, %v2813, %v2083
        %v2870 = vsel %vm2820, %v2814, %v2085
        %v2871 = vsel %vm2820, %v2815, %v2087
        %v2872 = vsel %vm2820, %v2816, %v2089
        %v2873 = vsel %vm2820, %v2817, %v2091
        %v2874 = vsel %vm2820, %v2818, %v2093
        %v2875 = vsel %vm2820, %v2819, %v2095
        %vm2876 = vcmask 171008
        %v2877 = vsel %vm2876, %v2821, %v2207
        %v2878 = vsel %vm2876, %v2822, %v2209
        %v2879 = vsel %vm2876, %v2823, %v2211
        %v2880 = vsel %vm2876, %v2824, %v2213
        %v2881 = vsel %vm2876, %v2825, %v2215
        %v2882 = vsel %vm2876, %v2826, %v2217
        %v2883 = vsel %vm2876, %v2827, %v2219
        %v2884 = vsel %vm2876, %v2828, %v2221
        %v2885 = vsel %vm2876, %v2829, %v2223
        %v2886 = vsel %vm2876, %v2830, %v2225
        %v2887 = vsel %vm2876, %v2831, %v2227
        %v2888 = vsel %vm2876, %v2832, %v2229
        %v2889 = vsel %vm2876, %v2833, %v2231
        %v2890 = vsel %vm2876, %v2834, %v2233
        %v2891 = vsel %vm2876, %v2835, %v2235
        %v2892 = vsel %vm2876, %v2836, %v2237
        %v2893 = vsel %vm2876, %v2837, %v2239
        %v2894 = vsel %vm2876, %v2838, %v2241
        %v2895 = vsel %vm2876, %v2839, %v2243
        %v2896 = vsel %vm2876, %v2840, %v2245
        %v2897 = vsel %vm2876, %v2841, %v2247
        %v2898 = vsel %vm2876, %v2842, %v2249
        %v2899 = vsel %vm2876, %v2843, %v2251
        %v2900 = vsel %vm2876, %v2844, %v2253
        %v2901 = vsel %vm2876, %v2845, %v2255
        %v2902 = vsel %vm2876, %v2846, %v2257
        %v2903 = vsel %vm2876, %v2847, %v2259
        %v2904 = vsel %vm2876, %v2848, %v2261
        %v2905 = vsel %vm2876, %v2849, %v2263
        %v2906 = vsel %vm2876, %v2850, %v2265
        %v2907 = vsel %vm2876, %v2851, %v2267
        %v2908 = vsel %vm2876, %v2852, %v2269
        %v2909 = vsel %vm2876, %v2853, %v2271
        %v2910 = vsel %vm2876, %v2854, %v2273
        %v2911 = vsel %vm2876, %v2855, %v2275
        %v2912 = vsel %vm2876, %v2856, %v2277
        %v2913 = vsel %vm2876, %v2857, %v2279
        %v2914 = vsel %vm2876, %v2858, %v2281
        %v2915 = vsel %vm2876, %v2859, %v2283
        %v2916 = vsel %vm2876, %v2860, %v2285
        %v2917 = vsel %vm2876, %v2861, %v2287
        %v2918 = vsel %vm2876, %v2862, %v2289
        %v2919 = vsel %vm2876, %v2863, %v2291
        %v2920 = vsel %vm2876, %v2864, %v2293
        %v2921 = vsel %vm2876, %v2865, %v2295
        %v2922 = vsel %vm2876, %v2866, %v2297
        %v2923 = vsel %vm2876, %v2867, %v2299
        %v2924 = vsel %vm2876, %v2868, %v2301
        %v2925 = vsel %vm2876, %v2869, %v2303
        %v2926 = vsel %vm2876, %v2870, %v2305
        %v2927 = vsel %vm2876, %v2871, %v2307
        %v2928 = vsel %vm2876, %v2872, %v2309
        %v2929 = vsel %vm2876, %v2873, %v2311
        %v2930 = vsel %vm2876, %v2874, %v2313
        %v2931 = vsel %vm2876, %v2875, %v2315
        %vm2932 = vcmask 195584
        %v2933 = vsel %vm2932, %v2877, %v2376
        %v2934 = vsel %vm2932, %v2878, %v2378
        %v2935 = vsel %vm2932, %v2879, %v2380
        %v2936 = vsel %vm2932, %v2880, %v2382
        %v2937 = vsel %vm2932, %v2881, %v2384
        %v2938 = vsel %vm2932, %v2882, %v2386
        %v2939 = vsel %vm2932, %v2883, %v2388
        %v2940 = vsel %vm2932, %v2884, %v2390
        %v2941 = vsel %vm2932, %v2885, %v2392
        %v2942 = vsel %vm2932, %v2886, %v2394
        %v2943 = vsel %vm2932, %v2887, %v2396
        %v2944 = vsel %vm2932, %v2888, %v2398
        %v2945 = vsel %vm2932, %v2889, %v2400
        %v2946 = vsel %vm2932, %v2890, %v2402
        %v2947 = vsel %vm2932, %v2891, %v2404
        %v2948 = vsel %vm2932, %v2892, %v2406
        %v2949 = vsel %vm2932, %v2893, %v2408
        %v2950 = vsel %vm2932, %v2894, %v2410
        %v2951 = vsel %vm2932, %v2895, %v2412
        %v2952 = vsel %vm2932, %v2896, %v2414
        %v2953 = vsel %vm2932, %v2897, %v2416
        %v2954 = vsel %vm2932, %v2898, %v2418
        %v2955 = vsel %vm2932, %v2899, %v2420
        %v2956 = vsel %vm2932, %v2900, %v2422
        %v2957 = vsel %vm2932, %v2901, %v2424
        %v2958 = vsel %vm2932, %v2902, %v2426
        %v2959 = vsel %vm2932, %v2903, %v2428
        %v2960 = vsel %vm2932, %v2904, %v2430
        %v2961 = vsel %vm2932, %v2905, %v2432
        %v2962 = vsel %vm2932, %v2906, %v2434
        %v2963 = vsel %vm2932, %v2907, %v2436
        %v2964 = vsel %vm2932, %v2908, %v2438
        %v2965 = vsel %vm2932, %v2909, %v2440
        %v2966 = vsel %vm2932, %v2910, %v2442
        %v2967 = vsel %vm2932, %v2911, %v2444
        %v2968 = vsel %vm2932, %v2912, %v2446
        %v2969 = vsel %vm2932, %v2913, %v2448
        %v2970 = vsel %vm2932, %v2914, %v2450
        %v2971 = vsel %vm2932, %v2915, %v2452
        %v2972 = vsel %vm2932, %v2916, %v2454
        %v2973 = vsel %vm2932, %v2917, %v2456
        %v2974 = vsel %vm2932, %v2918, %v2458
        %v2975 = vsel %vm2932, %v2919, %v2460
        %v2976 = vsel %vm2932, %v2920, %v2462
        %v2977 = vsel %vm2932, %v2921, %v2464
        %v2978 = vsel %vm2932, %v2922, %v2466
        %v2979 = vsel %vm2932, %v2923, %v2468
        %v2980 = vsel %vm2932, %v2924, %v2470
        %v2981 = vsel %vm2932, %v2925, %v2472
        %v2982 = vsel %vm2932, %v2926, %v2474
        %v2983 = vsel %vm2932, %v2927, %v2476
        %v2984 = vsel %vm2932, %v2928, %v2478
        %v2985 = vsel %vm2932, %v2929, %v2480
        %v2986 = vsel %vm2932, %v2930, %v2482
        %v2987 = vsel %vm2932, %v2931, %v2484
        %v2988 = vld [vmem:[%s1] sm:$0xff]
        %v2989 = vld [vmem:[%s1 + $0x8] sm:$0xff]
        %v2990 = vld [vmem:[%s1 + $0x10] sm:$0xff]
        %v2991 = vld [vmem:[%s1 + $0x18] sm:$0x7]
        %v2992 = vld [vmem:[%s2] sm:$0x1]
        %v2994 = vlaneseq
        %v2995 = vshrl.u32 %v2994, 7
        %v2996 = vsub.s32 0, %v2995
        %v2997 = vrot.slane %v2992, %v2996
        %vm2999 = vcmask 220160
        %v3001 = vsel %vm2999, %v2933, 0
        %v3004 = vsel %vm2999, %v2934, 0
        %v3007 = vsel %vm2999, %v2935, 0
        %v3010 = vsel %vm2999, %v2936, 0
        %v3013 = vsel %vm2999, %v2937, 0
        %v3016 = vsel %vm2999, %v2938, 0
        %v3019 = vsel %vm2999, %v2939, 0
        %v3022 = vsel %vm2999, %v2940, 0
        %v3025 = vsel %vm2999, %v2941, 0
        %v3028 = vsel %vm2999, %v2942, 0
        %v3031 = vsel %vm2999, %v2943, 0
        %v3034 = vsel %vm2999, %v2944, 0
        %v3037 = vsel %vm2999, %v2945, 0
        %v3040 = vsel %vm2999, %v2946, 0
        %v3043 = vsel %vm2999, %v2947, 0
        %v3046 = vsel %vm2999, %v2948, 0
        %v3049 = vsel %vm2999, %v2949, 0
        %v3052 = vsel %vm2999, %v2950, 0
        %v3055 = vsel %vm2999, %v2951, 0
        %v3058 = vsel %vm2999, %v2952, 0
        %v3061 = vsel %vm2999, %v2953, 0
        %v3064 = vsel %vm2999, %v2954, 0
        %v3067 = vsel %vm2999, %v2955, 0
        %v3070 = vsel %vm2999, %v2956, 0
        %v3073 = vsel %vm2999, %v2957, 0
        %v3076 = vsel %vm2999, %v2958, 0
        %v3079 = vsel %vm2999, %v2959, 0
        %v3082 = vsel %vm2999, %v2960, 0
        %v3085 = vsel %vm2999, %v2961, 0
        %v3088 = vsel %vm2999, %v2962, 0
        %v3091 = vsel %vm2999, %v2963, 0
        %v3094 = vsel %vm2999, %v2964, 0
        %v3097 = vsel %vm2999, %v2965, 0
        %v3100 = vsel %vm2999, %v2966, 0
        %v3103 = vsel %vm2999, %v2967, 0
        %v3106 = vsel %vm2999, %v2968, 0
        %v3109 = vsel %vm2999, %v2969, 0
        %v3112 = vsel %vm2999, %v2970, 0
        %v3115 = vsel %vm2999, %v2971, 0
        %v3118 = vsel %vm2999, %v2972, 0
        %v3121 = vsel %vm2999, %v2973, 0
        %v3124 = vsel %vm2999, %v2974, 0
        %v3127 = vsel %vm2999, %v2975, 0
        %v3130 = vsel %vm2999, %v2976, 0
        %v3133 = vsel %vm2999, %v2977, 0
        %v3136 = vsel %vm2999, %v2978, 0
        %v3139 = vsel %vm2999, %v2979, 0
        %v3142 = vsel %vm2999, %v2980, 0
        %v3145 = vsel %vm2999, %v2981, 0
        %v3148 = vsel %vm2999, %v2982, 0
        %v3151 = vsel %vm2999, %v2983, 0
        %v3154 = vsel %vm2999, %v2984, 0
        %v3157 = vsel %vm2999, %v2985, 0
        %v3160 = vsel %vm2999, %v2986, 0
        %v3163 = vsel %vm2999, %v2987, 0
        %vm3165 = vcmask 1042432
        %v3167 = vsel %vm3165, %v2991, 0
        %3169 = vmatprep.subr.mxu0 0.0
        %3170 = vmatpush1.msra.mxu0 %v2988
        %3171 = vmatprep.subr.mxu0 0.0
        %3172 = vmatpush1.msra.mxu0 %v2989
        %3173 = vmatprep.subr.mxu0 0.0
        %3174 = vmatpush1.msra.mxu0 %v2990
        %3175 = vmatprep.subr.mxu0 0.0
        %3176 = vmatpush1.msra.mxu0 %v3167
        %3177 = vmatprep.subr.mxu0 0.0
        %3178 = vmatpush1.msra.mxu0 0.0
        %3179 = vmatprep.subr.mxu0 0.0
        %3180 = vmatpush1.msra.mxu0 0.0
        %3181 = vmatprep.subr.mxu0 0.0
        %3182 = vmatpush1.msra.mxu0 0.0
        %3183 = vmatprep.subr.mxu0 0.0
        %3184 = vmatpush1.msra.mxu0 0.0
        %3185 = vmatprep.subr.mxu0 0.0
        %3186 = vmatpush1.msra.mxu0 0.0
        %3187 = vmatprep.subr.mxu0 0.0
        %3188 = vmatpush1.msra.mxu0 0.0
        %3189 = vmatprep.subr.mxu0 0.0
        %3190 = vmatpush1.msra.mxu0 0.0
        %3191 = vmatprep.subr.mxu0 0.0
        %3192 = vmatpush1.msra.mxu0 0.0
        %3193 = vmatprep.subr.mxu0 0.0
        %3194 = vmatpush1.msra.mxu0 0.0
        %3195 = vmatprep.subr.mxu0 0.0
        %3196 = vmatpush1.msra.mxu0 0.0
        %3197 = vmatprep.subr.mxu0 0.0
        %3198 = vmatpush1.msra.mxu0 0.0
        %3199 = vmatprep.subr.mxu0 0.0
        %3200 = vmatpush1.msra.mxu0 0.0
        %3201 = vmatprep.subr.mxu0 0.0
        %3202 = vmatpush1.msra.mxu0 0.0
        %3203 = vmatprep.subr.mxu0 0.0
        %3204 = vmatpush1.msra.mxu0 0.0
        %3205 = vmatprep.subr.mxu0 0.0
        %3206 = vmatpush1.msra.mxu0 0.0
        %3207 = vmatprep.subr.mxu0 0.0
        %3208 = vmatpush1.msra.mxu0 0.0
        %3209 = vmatprep.subr.mxu0 0.0
        %3210 = vmatpush1.msra.mxu0 0.0
        %3211 = vmatprep.subr.mxu0 0.0
        %3212 = vmatpush1.msra.mxu0 0.0
        %3213 = vmatprep.subr.mxu0 0.0
        %3214 = vmatpush1.msra.mxu0 0.0
        %3215 = vmatprep.subr.mxu0 0.0
        %3216 = vmatpush1.msra.mxu0 0.0
        %3217 = vmatprep.subr.mxu0 0.0
        %3218 = vmatpush1.msra.mxu0 0.0
        %3219 = vmatprep.subr.mxu0 0.0
        %3220 = vmatpush1.msra.mxu0 0.0
        %3221 = vmatprep.subr.mxu0 0.0
        %3222 = vmatpush1.msra.mxu0 0.0
        %3223 = vmatprep.subr.mxu0 0.0
        %3224 = vmatpush1.msra.mxu0 0.0
        %3225 = vmatprep.subr.mxu0 0.0
        %3226 = vmatpush1.msra.mxu0 0.0
        %3227 = vmatprep.subr.mxu0 0.0
        %3228 = vmatpush1.msra.mxu0 0.0
        %3229 = vmatprep.subr.mxu0 0.0
        %3230 = vmatpush1.msra.mxu0 0.0
        %3231 = vmatprep.subr.mxu0 0.0
        %3232 = vmatpush1.msra.mxu0 0.0
        %3233 = vmatprep.mubr.f32.mxu0 0.0
        %3234 = vmatmul.mubr.f32.gmra.mrb[0].mxu0 %v3001
        %v3235 = vpop.f32.mrb[0].mxu0
        %v3236 = vadd.f32 %v2997, %v3235
        %v3237 = vpop.f32.mrb[0].mxu0
        %3238 = vmatprep.mubr.f32.mxu0 0.0
        %3239 = vmatmul.mubr.f32.gmra.mrb[0].mxu0 %v3004
        %v3240 = vpop.f32.mrb[0].mxu0
        %v3241 = vadd.f32 %v2997, %v3240
        %v3242 = vpop.f32.mrb[0].mxu0
        %3243 = vmatprep.mubr.f32.mxu0 0.0
        %3244 = vmatmul.mubr.f32.gmra.mrb[0].mxu0 %v3007
        %v3245 = vpop.f32.mrb[0].mxu0
        %v3246 = vadd.f32 %v2997, %v3245
        %v3247 = vpop.f32.mrb[0].mxu0
        %3248 = vmatprep.mubr.f32.mxu0 0.0
        %3249 = vmatmul.mubr.f32.gmra.mrb[0].mxu0 %v3010
        %v3250 = vpop.f32.mrb[0].mxu0
        %v3251 = vadd.f32 %v2997, %v3250
        %v3252 = vpop.f32.mrb[0].mxu0
        %3253 = vmatprep.mubr.f32.mxu0 0.0
        %3254 = vmatmul.mubr.f32.gmra.mrb[0].mxu0 %v3013
        %v3255 = vpop.f32.mrb[0].mxu0
        %v3256 = vadd.f32 %v2997, %v3255
        %v3257 = vpop.f32.mrb[0].mxu0
        %3258 = vmatprep.mubr.f32.mxu0 0.0
        %3259 = vmatmul.mubr.f32.gmra.mrb[0].mxu0 %v3016
        %v3260 = vpop.f32.mrb[0].mxu0
        %v3261 = vadd.f32 %v2997, %v3260
        %v3262 = vpop.f32.mrb[0].mxu0
        %3263 = vmatprep.mubr.f32.mxu0 0.0
        %3264 = vmatmul.mubr.f32.gmra.mrb[0].mxu0 %v3019
        %v3265 = vpop.f32.mrb[0].mxu0
        %v3266 = vadd.f32 %v2997, %v3265
        %v3267 = vpop.f32.mrb[0].mxu0
        %3268 = vmatprep.mubr.f32.mxu0 0.0
        %3269 = vmatmul.mubr.f32.gmra.mrb[0].mxu0 %v3022
        %v3270 = vpop.f32.mrb[0].mxu0
        %v3271 = vadd.f32 %v2997, %v3270
        %v3272 = vpop.f32.mrb[0].mxu0
        %3273 = vmatprep.mubr.f32.mxu0 0.0
        %3274 = vmatmul.mubr.f32.gmra.mrb[0].mxu0 %v3025
        %v3275 = vpop.f32.mrb[0].mxu0
        %v3276 = vadd.f32 %v2997, %v3275
        %v3277 = vpop.f32.mrb[0].mxu0
        %3278 = vmatprep.mubr.f32.mxu0 0.0
        %3279 = vmatmul.mubr.f32.gmra.mrb[0].mxu0 %v3028
        %v3280 = vpop.f32.mrb[0].mxu0
        %v3281 = vadd.f32 %v2997, %v3280
        %v3282 = vpop.f32.mrb[0].mxu0
        %3283 = vmatprep.mubr.f32.mxu0 0.0
        %3284 = vmatmul.mubr.f32.gmra.mrb[0].mxu0 %v3031
        %v3285 = vpop.f32.mrb[0].mxu0
        %v3286 = vadd.f32 %v2997, %v3285
        %v3287 = vpop.f32.mrb[0].mxu0
        %3288 = vmatprep.mubr.f32.mxu0 0.0
        %3289 = vmatmul.mubr.f32.gmra.mrb[0].mxu0 %v3034
        %v3290 = vpop.f32.mrb[0].mxu0
        %v3291 = vadd.f32 %v2997, %v3290
        %v3292 = vpop.f32.mrb[0].mxu0
        %3293 = vmatprep.mubr.f32.mxu0 0.0
        %3294 = vmatmul.mubr.f32.gmra.mrb[0].mxu0 %v3037
        %v3295 = vpop.f32.mrb[0].mxu0
        %v3296 = vadd.f32 %v2997, %v3295
        %v3297 = vpop.f32.mrb[0].mxu0
        %3298 = vmatprep.mubr.f32.mxu0 0.0
        %3299 = vmatmul.mubr.f32.gmra.mrb[0].mxu0 %v3040
        %v3300 = vpop.f32.mrb[0].mxu0
        %v3301 = vadd.f32 %v2997, %v3300
        %v3302 = vpop.f32.mrb[0].mxu0
        %3303 = vmatprep.mubr.f32.mxu0 0.0
        %3304 = vmatmul.mubr.f32.gmra.mrb[0].mxu0 %v3043
        %v3305 = vpop.f32.mrb[0].mxu0
        %v3306 = vadd.f32 %v2997, %v3305
        %v3307 = vpop.f32.mrb[0].mxu0
        %3308 = vmatprep.mubr.f32.mxu0 0.0
        %3309 = vmatmul.mubr.f32.gmra.mrb[0].mxu0 %v3046
        %v3310 = vpop.f32.mrb[0].mxu0
        %v3311 = vadd.f32 %v2997, %v3310
        %v3312 = vpop.f32.mrb[0].mxu0
        %3313 = vmatprep.mubr.f32.mxu0 0.0
        %3314 = vmatmul.mubr.f32.gmra.mrb[0].mxu0 %v3049
        %v3315 = vpop.f32.mrb[0].mxu0
        %v3316 = vadd.f32 %v2997, %v3315
        %v3317 = vpop.f32.mrb[0].mxu0
        %3318 = vmatprep.mubr.f32.mxu0 0.0
        %3319 = vmatmul.mubr.f32.gmra.mrb[0].mxu0 %v3052
        %v3320 = vpop.f32.mrb[0].mxu0
        %v3321 = vadd.f32 %v2997, %v3320
        %v3322 = vpop.f32.mrb[0].mxu0
        %3323 = vmatprep.mubr.f32.mxu0 0.0
        %3324 = vmatmul.mubr.f32.gmra.mrb[0].mxu0 %v3055
        %v3325 = vpop.f32.mrb[0].mxu0
        %v3326 = vadd.f32 %v2997, %v3325
        %v3327 = vpop.f32.mrb[0].mxu0
        %3328 = vmatprep.mubr.f32.mxu0 0.0
        %3329 = vmatmul.mubr.f32.gmra.mrb[0].mxu0 %v3058
        %v3330 = vpop.f32.mrb[0].mxu0
        %v3331 = vadd.f32 %v2997, %v3330
        %v3332 = vpop.f32.mrb[0].mxu0
        %3333 = vmatprep.mubr.f32.mxu0 0.0
        %3334 = vmatmul.mubr.f32.gmra.mrb[0].mxu0 %v3061
        %v3335 = vpop.f32.mrb[0].mxu0
        %v3336 = vadd.f32 %v2997, %v3335
        %v3337 = vpop.f32.mrb[0].mxu0
        %3338 = vmatprep.mubr.f32.mxu0 0.0
        %3339 = vmatmul.mubr.f32.gmra.mrb[0].mxu0 %v3064
        %v3340 = vpop.f32.mrb[0].mxu0
        %v3341 = vadd.f32 %v2997, %v3340
        %v3342 = vpop.f32.mrb[0].mxu0
        %3343 = vmatprep.mubr.f32.mxu0 0.0
        %3344 = vmatmul.mubr.f32.gmra.mrb[0].mxu0 %v3067
        %v3345 = vpop.f32.mrb[0].mxu0
        %v3346 = vadd.f32 %v2997, %v3345
        %v3347 = vpop.f32.mrb[0].mxu0
        %3348 = vmatprep.mubr.f32.mxu0 0.0
        %3349 = vmatmul.mubr.f32.gmra.mrb[0].mxu0 %v3070
        %v3350 = vpop.f32.mrb[0].mxu0
        %v3351 = vadd.f32 %v2997, %v3350
        %v3352 = vpop.f32.mrb[0].mxu0
        %3353 = vmatprep.mubr.f32.mxu0 0.0
        %3354 = vmatmul.mubr.f32.gmra.mrb[0].mxu0 %v3073
        %v3355 = vpop.f32.mrb[0].mxu0
        %v3356 = vadd.f32 %v2997, %v3355
        %v3357 = vpop.f32.mrb[0].mxu0
        %3358 = vmatprep.mubr.f32.mxu0 0.0
        %3359 = vmatmul.mubr.f32.gmra.mrb[0].mxu0 %v3076
        %v3360 = vpop.f32.mrb[0].mxu0
        %v3361 = vadd.f32 %v2997, %v3360
        %v3362 = vpop.f32.mrb[0].mxu0
        %3363 = vmatprep.mubr.f32.mxu0 0.0
        %3364 = vmatmul.mubr.f32.gmra.mrb[0].mxu0 %v3079
        %v3365 = vpop.f32.mrb[0].mxu0
        %v3366 = vadd.f32 %v2997, %v3365
        %v3367 = vpop.f32.mrb[0].mxu0
        %3368 = vmatprep.mubr.f32.mxu0 0.0
        %3369 = vmatmul.mubr.f32.gmra.mrb[0].mxu0 %v3082
        %v3370 = vpop.f32.mrb[0].mxu0
        %v3371 = vadd.f32 %v2997, %v3370
        %v3372 = vpop.f32.mrb[0].mxu0
        %3373 = vmatprep.mubr.f32.mxu0 0.0
        %3374 = vmatmul.mubr.f32.gmra.mrb[0].mxu0 %v3085
        %v3375 = vpop.f32.mrb[0].mxu0
        %v3376 = vadd.f32 %v2997, %v3375
        %v3377 = vpop.f32.mrb[0].mxu0
        %3378 = vmatprep.mubr.f32.mxu0 0.0
        %3379 = vmatmul.mubr.f32.gmra.mrb[0].mxu0 %v3088
        %v3380 = vpop.f32.mrb[0].mxu0
        %v3381 = vadd.f32 %v2997, %v3380
        %v3382 = vpop.f32.mrb[0].mxu0
        %3383 = vmatprep.mubr.f32.mxu0 0.0
        %3384 = vmatmul.mubr.f32.gmra.mrb[0].mxu0 %v3091
        %v3385 = vpop.f32.mrb[0].mxu0
        %v3386 = vadd.f32 %v2997, %v3385
        %v3387 = vpop.f32.mrb[0].mxu0
        %3388 = vmatprep.mubr.f32.mxu0 0.0
        %3389 = vmatmul.mubr.f32.gmra.mrb[0].mxu0 %v3094
        %v3390 = vpop.f32.mrb[0].mxu0
        %v3391 = vadd.f32 %v2997, %v3390
        %v3392 = vpop.f32.mrb[0].mxu0
        %3393 = vmatprep.mubr.f32.mxu0 0.0
        %3394 = vmatmul.mubr.f32.gmra.mrb[0].mxu0 %v3097
        %v3395 = vpop.f32.mrb[0].mxu0
        %v3396 = vadd.f32 %v2997, %v3395
        %v3397 = vpop.f32.mrb[0].mxu0
        %3398 = vmatprep.mubr.f32.mxu0 0.0
        %3399 = vmatmul.mubr.f32.gmra.mrb[0].mxu0 %v3100
        %v3400 = vpop.f32.mrb[0].mxu0
        %v3401 = vadd.f32 %v2997, %v3400
        %v3402 = vpop.f32.mrb[0].mxu0
        %3403 = vmatprep.mubr.f32.mxu0 0.0
        %3404 = vmatmul.mubr.f32.gmra.mrb[0].mxu0 %v3103
        %v3405 = vpop.f32.mrb[0].mxu0
        %v3406 = vadd.f32 %v2997, %v3405
        %v3407 = vpop.f32.mrb[0].mxu0
        %3408 = vmatprep.mubr.f32.mxu0 0.0
        %3409 = vmatmul.mubr.f32.gmra.mrb[0].mxu0 %v3106
        %v3410 = vpop.f32.mrb[0].mxu0
        %v3411 = vadd.f32 %v2997, %v3410
        %v3412 = vpop.f32.mrb[0].mxu0
        %3413 = vmatprep.mubr.f32.mxu0 0.0
        %3414 = vmatmul.mubr.f32.gmra.mrb[0].mxu0 %v3109
        %v3415 = vpop.f32.mrb[0].mxu0
        %v3416 = vadd.f32 %v2997, %v3415
        %v3417 = vpop.f32.mrb[0].mxu0
        %3418 = vmatprep.mubr.f32.mxu0 0.0
        %3419 = vmatmul.mubr.f32.gmra.mrb[0].mxu0 %v3112
        %v3420 = vpop.f32.mrb[0].mxu0
        %v3421 = vadd.f32 %v2997, %v3420
        %v3422 = vpop.f32.mrb[0].mxu0
        %3423 = vmatprep.mubr.f32.mxu0 0.0
        %3424 = vmatmul.mubr.f32.gmra.mrb[0].mxu0 %v3115
        %v3425 = vpop.f32.mrb[0].mxu0
        %v3426 = vadd.f32 %v2997, %v3425
        %v3427 = vpop.f32.mrb[0].mxu0
        %3428 = vmatprep.mubr.f32.mxu0 0.0
        %3429 = vmatmul.mubr.f32.gmra.mrb[0].mxu0 %v3118
        %v3430 = vpop.f32.mrb[0].mxu0
        %v3431 = vadd.f32 %v2997, %v3430
        %v3432 = vpop.f32.mrb[0].mxu0
        %3433 = vmatprep.mubr.f32.mxu0 0.0
        %3434 = vmatmul.mubr.f32.gmra.mrb[0].mxu0 %v3121
        %v3435 = vpop.f32.mrb[0].mxu0
        %v3436 = vadd.f32 %v2997, %v3435
        %v3437 = vpop.f32.mrb[0].mxu0
        %3438 = vmatprep.mubr.f32.mxu0 0.0
        %3439 = vmatmul.mubr.f32.gmra.mrb[0].mxu0 %v3124
        %v3440 = vpop.f32.mrb[0].mxu0
        %v3441 = vadd.f32 %v2997, %v3440
        %v3442 = vpop.f32.mrb[0].mxu0
        %3443 = vmatprep.mubr.f32.mxu0 0.0
        %3444 = vmatmul.mubr.f32.gmra.mrb[0].mxu0 %v3127
        %v3445 = vpop.f32.mrb[0].mxu0
        %v3446 = vadd.f32 %v2997, %v3445
        %v3447 = vpop.f32.mrb[0].mxu0
        %3448 = vmatprep.mubr.f32.mxu0 0.0
        %3449 = vmatmul.mubr.f32.gmra.mrb[0].mxu0 %v3130
        %v3450 = vpop.f32.mrb[0].mxu0
        %v3451 = vadd.f32 %v2997, %v3450
        %v3452 = vpop.f32.mrb[0].mxu0
        %3453 = vmatprep.mubr.f32.mxu0 0.0
        %3454 = vmatmul.mubr.f32.gmra.mrb[0].mxu0 %v3133
        %v3455 = vpop.f32.mrb[0].mxu0
        %v3456 = vadd.f32 %v2997, %v3455
        %v3457 = vpop.f32.mrb[0].mxu0
        %3458 = vmatprep.mubr.f32.mxu0 0.0
        %3459 = vmatmul.mubr.f32.gmra.mrb[0].mxu0 %v3136
        %v3460 = vpop.f32.mrb[0].mxu0
        %v3461 = vadd.f32 %v2997, %v3460
        %v3462 = vpop.f32.mrb[0].mxu0
        %3463 = vmatprep.mubr.f32.mxu0 0.0
        %3464 = vmatmul.mubr.f32.gmra.mrb[0].mxu0 %v3139
        %v3465 = vpop.f32.mrb[0].mxu0
        %v3466 = vadd.f32 %v2997, %v3465
        %v3467 = vpop.f32.mrb[0].mxu0
        %3468 = vmatprep.mubr.f32.mxu0 0.0
        %3469 = vmatmul.mubr.f32.gmra.mrb[0].mxu0 %v3142
        %v3470 = vpop.f32.mrb[0].mxu0
        %v3471 = vadd.f32 %v2997, %v3470
        %v3472 = vpop.f32.mrb[0].mxu0
        %3473 = vmatprep.mubr.f32.mxu0 0.0
        %3474 = vmatmul.mubr.f32.gmra.mrb[0].mxu0 %v3145
        %v3475 = vpop.f32.mrb[0].mxu0
        %v3476 = vadd.f32 %v2997, %v3475
        %v3477 = vpop.f32.mrb[0].mxu0
        %3478 = vmatprep.mubr.f32.mxu0 0.0
        %3479 = vmatmul.mubr.f32.gmra.mrb[0].mxu0 %v3148
        %v3480 = vpop.f32.mrb[0].mxu0
        %v3481 = vadd.f32 %v2997, %v3480
        %v3482 = vpop.f32.mrb[0].mxu0
        %3483 = vmatprep.mubr.f32.mxu0 0.0
        %3484 = vmatmul.mubr.f32.gmra.mrb[0].mxu0 %v3151
        %v3485 = vpop.f32.mrb[0].mxu0
        %v3486 = vadd.f32 %v2997, %v3485
        %v3487 = vpop.f32.mrb[0].mxu0
        %3488 = vmatprep.mubr.f32.mxu0 0.0
        %3489 = vmatmul.mubr.f32.gmra.mrb[0].mxu0 %v3154
        %v3490 = vpop.f32.mrb[0].mxu0
        %v3491 = vadd.f32 %v2997, %v3490
        %v3492 = vpop.f32.mrb[0].mxu0
        %3493 = vmatprep.mubr.f32.mxu0 0.0
        %3494 = vmatmul.mubr.f32.gmra.mrb[0].mxu0 %v3157
        %v3495 = vpop.f32.mrb[0].mxu0
        %v3496 = vadd.f32 %v2997, %v3495
        %v3497 = vpop.f32.mrb[0].mxu0
        %3498 = vmatprep.mubr.f32.mxu0 0.0
        %3499 = vmatmul.mubr.f32.gmra.mrb[0].mxu0 %v3160
        %v3500 = vpop.f32.mrb[0].mxu0
        %v3501 = vadd.f32 %v2997, %v3500
        %v3502 = vpop.f32.mrb[0].mxu0
        %3503 = vmatprep.mubr.f32.mxu0 0.0
        %3504 = vmatmul.mubr.f32.gmra.mrb[0].mxu0 %v3163
        %v3505 = vpop.f32.mrb[0].mxu0
        %v3506 = vadd.f32 %v2997, %v3505
        %v3507 = vpop.f32.mrb[0].mxu0
        %3508 = vdwg.mxu0
        %v3509 = vmax.f32 %v3236, 0.0
        %v3510 = vmax.f32 %v3241, 0.0
        %v3511 = vmax.f32 %v3246, 0.0
        %v3512 = vmax.f32 %v3251, 0.0
        %v3513 = vmax.f32 %v3256, 0.0
        %v3514 = vmax.f32 %v3261, 0.0
        %v3515 = vmax.f32 %v3266, 0.0
        %v3516 = vmax.f32 %v3271, 0.0
        %v3517 = vmax.f32 %v3276, 0.0
        %v3518 = vmax.f32 %v3281, 0.0
        %v3519 = vmax.f32 %v3286, 0.0
        %v3520 = vmax.f32 %v3291, 0.0
        %v3521 = vmax.f32 %v3296, 0.0
        %v3522 = vmax.f32 %v3301, 0.0
        %v3523 = vmax.f32 %v3306, 0.0
        %v3524 = vmax.f32 %v3311, 0.0
        %v3525 = vmax.f32 %v3316, 0.0
        %v3526 = vmax.f32 %v3321, 0.0
        %v3527 = vmax.f32 %v3326, 0.0
        %v3528 = vmax.f32 %v3331, 0.0
        %v3529 = vmax.f32 %v3336, 0.0
        %v3530 = vmax.f32 %v3341, 0.0
        %v3531 = vmax.f32 %v3346, 0.0
        %v3532 = vmax.f32 %v3351, 0.0
        %v3533 = vmax.f32 %v3356, 0.0
        %v3534 = vmax.f32 %v3361, 0.0
        %v3535 = vmax.f32 %v3366, 0.0
        %v3536 = vmax.f32 %v3371, 0.0
        %v3537 = vmax.f32 %v3376, 0.0
        %v3538 = vmax.f32 %v3381, 0.0
        %v3539 = vmax.f32 %v3386, 0.0
        %v3540 = vmax.f32 %v3391, 0.0
        %v3541 = vmax.f32 %v3396, 0.0
        %v3542 = vmax.f32 %v3401, 0.0
        %v3543 = vmax.f32 %v3406, 0.0
        %v3544 = vmax.f32 %v3411, 0.0
        %v3545 = vmax.f32 %v3416, 0.0
        %v3546 = vmax.f32 %v3421, 0.0
        %v3547 = vmax.f32 %v3426, 0.0
        %v3548 = vmax.f32 %v3431, 0.0
        %v3549 = vmax.f32 %v3436, 0.0
        %v3550 = vmax.f32 %v3441, 0.0
        %v3551 = vmax.f32 %v3446, 0.0
        %v3552 = vmax.f32 %v3451, 0.0
        %v3553 = vmax.f32 %v3456, 0.0
        %v3554 = vmax.f32 %v3461, 0.0
        %v3555 = vmax.f32 %v3466, 0.0
        %v3556 = vmax.f32 %v3471, 0.0
        %v3557 = vmax.f32 %v3476, 0.0
        %v3558 = vmax.f32 %v3481, 0.0
        %v3559 = vmax.f32 %v3486, 0.0
        %v3560 = vmax.f32 %v3491, 0.0
        %v3561 = vmax.f32 %v3496, 0.0
        %v3562 = vmax.f32 %v3501, 0.0
        %v3563 = vmax.f32 %v3506, 0.0
        %vm3564 = vcmask 64512
        %3565 = vst.msk [vmem:[#allocation2] sm:$0xff] %vm3564, %v3509
        %3566 = vst.msk [vmem:[#allocation2 + $0x8] sm:$0xff] %vm3564, %v3510
        %3567 = vst.msk [vmem:[#allocation2 + $0x10] sm:$0xff] %vm3564, %v3511
        %3568 = vst.msk [vmem:[#allocation2 + $0x18] sm:$0xff] %vm3564, %v3512
        %3569 = vst.msk [vmem:[#allocation2 + $0x20] sm:$0xff] %vm3564, %v3513
        %3570 = vst.msk [vmem:[#allocation2 + $0x28] sm:$0xff] %vm3564, %v3514
        %3571 = vst.msk [vmem:[#allocation2 + $0x30] sm:$0xff] %vm3564, %v3515
        %3572 = vst.msk [vmem:[#allocation2 + $0x38] sm:$0xff] %vm3564, %v3516
        %3573 = vst.msk [vmem:[#allocation2 + $0x40] sm:$0xff] %vm3564, %v3517
        %3574 = vst.msk [vmem:[#allocation2 + $0x48] sm:$0xff] %vm3564, %v3518
        %3575 = vst.msk [vmem:[#allocation2 + $0x50] sm:$0xff] %vm3564, %v3519
        %3576 = vst.msk [vmem:[#allocation2 + $0x58] sm:$0xff] %vm3564, %v3520
        %3577 = vst.msk [vmem:[#allocation2 + $0x60] sm:$0xff] %vm3564, %v3521
        %3578 = vst.msk [vmem:[#allocation2 + $0x68] sm:$0xff] %vm3564, %v3522
        %3579 = vst.msk [vmem:[#allocation2 + $0x70] sm:$0xff] %vm3564, %v3523
        %3580 = vst.msk [vmem:[#allocation2 + $0x78] sm:$0xff] %vm3564, %v3524
        %3581 = vst.msk [vmem:[#allocation2 + $0x80] sm:$0xff] %vm3564, %v3525
        %3582 = vst.msk [vmem:[#allocation2 + $0x88] sm:$0xff] %vm3564, %v3526
        %3583 = vst.msk [vmem:[#allocation2 + $0x90] sm:$0xff] %vm3564, %v3527
        %3584 = vst.msk [vmem:[#allocation2 + $0x98] sm:$0xff] %vm3564, %v3528
        %3585 = vst.msk [vmem:[#allocation2 + $0xa0] sm:$0xff] %vm3564, %v3529
        %3586 = vst.msk [vmem:[#allocation2 + $0xa8] sm:$0xff] %vm3564, %v3530
        %3587 = vst.msk [vmem:[#allocation2 + $0xb0] sm:$0xff] %vm3564, %v3531
        %3588 = vst.msk [vmem:[#allocation2 + $0xb8] sm:$0xff] %vm3564, %v3532
        %3589 = vst.msk [vmem:[#allocation2 + $0xc0] sm:$0xff] %vm3564, %v3533
        %3590 = vst.msk [vmem:[#allocation2 + $0xc8] sm:$0xff] %vm3564, %v3534
        %3591 = vst.msk [vmem:[#allocation2 + $0xd0] sm:$0xff] %vm3564, %v3535
        %3592 = vst.msk [vmem:[#allocation2 + $0xd8] sm:$0xff] %vm3564, %v3536
        %3593 = vst.msk [vmem:[#allocation2 + $0xe0] sm:$0xff] %vm3564, %v3537
        %3594 = vst.msk [vmem:[#allocation2 + $0xe8] sm:$0xff] %vm3564, %v3538
        %3595 = vst.msk [vmem:[#allocation2 + $0xf0] sm:$0xff] %vm3564, %v3539
        %3596 = vst.msk [vmem:[#allocation2 + $0xf8] sm:$0xff] %vm3564, %v3540
        %3597 = vst.msk [vmem:[#allocation2 + $0x100] sm:$0xff] %vm3564, %v3541
        %3598 = vst.msk [vmem:[#allocation2 + $0x108] sm:$0xff] %vm3564, %v3542
        %3599 = vst.msk [vmem:[#allocation2 + $0x110] sm:$0xff] %vm3564, %v3543
        %3600 = vst.msk [vmem:[#allocation2 + $0x118] sm:$0xff] %vm3564, %v3544
        %3601 = vst.msk [vmem:[#allocation2 + $0x120] sm:$0xff] %vm3564, %v3545
        %3602 = vst.msk [vmem:[#allocation2 + $0x128] sm:$0xff] %vm3564, %v3546
        %3603 = vst.msk [vmem:[#allocation2 + $0x130] sm:$0xff] %vm3564, %v3547
        %3604 = vst.msk [vmem:[#allocation2 + $0x138] sm:$0xff] %vm3564, %v3548
        %3605 = vst.msk [vmem:[#allocation2 + $0x140] sm:$0xff] %vm3564, %v3549
        %3606 = vst.msk [vmem:[#allocation2 + $0x148] sm:$0xff] %vm3564, %v3550
        %3607 = vst.msk [vmem:[#allocation2 + $0x150] sm:$0xff] %vm3564, %v3551
        %3608 = vst.msk [vmem:[#allocation2 + $0x158] sm:$0xff] %vm3564, %v3552
        %3609 = vst.msk [vmem:[#allocation2 + $0x160] sm:$0xff] %vm3564, %v3553
        %3610 = vst.msk [vmem:[#allocation2 + $0x168] sm:$0xff] %vm3564, %v3554
        %3611 = vst.msk [vmem:[#allocation2 + $0x170] sm:$0xff] %vm3564, %v3555
        %3612 = vst.msk [vmem:[#allocation2 + $0x178] sm:$0xff] %vm3564, %v3556
        %3613 = vst.msk [vmem:[#allocation2 + $0x180] sm:$0xff] %vm3564, %v3557
        %3614 = vst.msk [vmem:[#allocation2 + $0x188] sm:$0xff] %vm3564, %v3558
        %3615 = vst.msk [vmem:[#allocation2 + $0x190] sm:$0xff] %vm3564, %v3559
        %3616 = vst.msk [vmem:[#allocation2 + $0x198] sm:$0xff] %vm3564, %v3560
        %3617 = vst.msk [vmem:[#allocation2 + $0x1a0] sm:$0xff] %vm3564, %v3561
        %3618 = vst.msk [vmem:[#allocation2 + $0x1a8] sm:$0xff] %vm3564, %v3562
        %vm3619 = vcmask 62464
        %3620 = vst.msk [vmem:[#allocation2 + $0x1b0] sm:$0x3f] %vm3619, %v3563
        %v3621 = vld [vmem:[#allocation2] sm:$0xff]
        %v3622 = vld [vmem:[#allocation2 + $0x8] sm:$0xff]
        %v3623 = vld [vmem:[#allocation2 + $0x10] sm:$0xff]
        %v3624 = vld [vmem:[#allocation2 + $0x18] sm:$0xff]
        %v3625 = vld [vmem:[#allocation2 + $0x20] sm:$0xff]
        %v3626 = vld [vmem:[#allocation2 + $0x28] sm:$0xff]
        %v3627 = vld [vmem:[#allocation2 + $0x30] sm:$0xff]
        %v3628 = vld [vmem:[#allocation2 + $0x38] sm:$0xff]
        %v3629 = vld [vmem:[#allocation2 + $0x40] sm:$0xff]
        %v3630 = vld [vmem:[#allocation2 + $0x48] sm:$0xff]
        %v3631 = vld [vmem:[#allocation2 + $0x50] sm:$0xff]
        %v3632 = vld [vmem:[#allocation2 + $0x58] sm:$0xff]
        %v3633 = vld [vmem:[#allocation2 + $0x60] sm:$0xff]
        %v3634 = vld [vmem:[#allocation2 + $0x68] sm:$0xff]
        %v3635 = vld [vmem:[#allocation2 + $0x70] sm:$0xff]
        %v3636 = vld [vmem:[#allocation2 + $0x78] sm:$0xff]
        %v3637 = vld [vmem:[#allocation2 + $0x80] sm:$0xff]
        %v3638 = vld [vmem:[#allocation2 + $0x88] sm:$0xff]
        %v3639 = vld [vmem:[#allocation2 + $0x90] sm:$0xff]
        %v3640 = vld [vmem:[#allocation2 + $0x98] sm:$0xff]
        %v3641 = vld [vmem:[#allocation2 + $0xa0] sm:$0xff]
        %v3642 = vld [vmem:[#allocation2 + $0xa8] sm:$0xff]
        %v3643 = vld [vmem:[#allocation2 + $0xb0] sm:$0xff]
        %v3644 = vld [vmem:[#allocation2 + $0xb8] sm:$0xff]
        %v3645 = vld [vmem:[#allocation2 + $0xc0] sm:$0xff]
        %v3646 = vld [vmem:[#allocation2 + $0xc8] sm:$0xff]
        %v3647 = vld [vmem:[#allocation2 + $0xd0] sm:$0xff]
        %v3648 = vld [vmem:[#allocation2 + $0xd8] sm:$0xff]
        %v3649 = vld [vmem:[#allocation2 + $0xe0] sm:$0xff]
        %v3650 = vld [vmem:[#allocation2 + $0xe8] sm:$0xff]
        %v3651 = vld [vmem:[#allocation2 + $0xf0] sm:$0xff]
        %v3652 = vld [vmem:[#allocation2 + $0xf8] sm:$0xff]
        %v3653 = vld [vmem:[#allocation2 + $0x100] sm:$0xff]
        %v3654 = vld [vmem:[#allocation2 + $0x108] sm:$0xff]
        %v3655 = vld [vmem:[#allocation2 + $0x110] sm:$0xff]
        %v3656 = vld [vmem:[#allocation2 + $0x118] sm:$0xff]
        %v3657 = vld [vmem:[#allocation2 + $0x120] sm:$0xff]
        %v3658 = vld [vmem:[#allocation2 + $0x128] sm:$0xff]
        %v3659 = vld [vmem:[#allocation2 + $0x130] sm:$0xff]
        %v3660 = vld [vmem:[#allocation2 + $0x138] sm:$0xff]
        %v3661 = vld [vmem:[#allocation2 + $0x140] sm:$0xff]
        %v3662 = vld [vmem:[#allocation2 + $0x148] sm:$0xff]
        %v3663 = vld [vmem:[#allocation2 + $0x150] sm:$0xff]
        %v3664 = vld [vmem:[#allocation2 + $0x158] sm:$0xff]
        %v3665 = vld [vmem:[#allocation2 + $0x160] sm:$0xff]
        %v3666 = vld [vmem:[#allocation2 + $0x168] sm:$0xff]
        %v3667 = vld [vmem:[#allocation2 + $0x170] sm:$0xff]
        %v3668 = vld [vmem:[#allocation2 + $0x178] sm:$0xff]
        %v3669 = vld [vmem:[#allocation2 + $0x180] sm:$0xff]
        %v3670 = vld [vmem:[#allocation2 + $0x188] sm:$0xff]
        %v3671 = vld [vmem:[#allocation2 + $0x190] sm:$0xff]
        %v3672 = vld [vmem:[#allocation2 + $0x198] sm:$0x7f]
        %v3673 = vld [vmem:[#allocation2 + $0x1] sm:$0xff]
        %v3674 = vld [vmem:[#allocation2 + $0x9] sm:$0xff]
        %v3675 = vld [vmem:[#allocation2 + $0x11] sm:$0xff]
        %v3676 = vld [vmem:[#allocation2 + $0x19] sm:$0xff]
        %v3677 = vld [vmem:[#allocation2 + $0x21] sm:$0xff]
        %v3678 = vld [vmem:[#allocation2 + $0x29] sm:$0xff]
        %v3679 = vld [vmem:[#allocation2 + $0x31] sm:$0xff]
        %v3680 = vld [vmem:[#allocation2 + $0x39] sm:$0xff]
        %v3681 = vld [vmem:[#allocation2 + $0x41] sm:$0xff]
        %v3682 = vld [vmem:[#allocation2 + $0x49] sm:$0xff]
        %v3683 = vld [vmem:[#allocation2 + $0x51] sm:$0xff]
        %v3684 = vld [vmem:[#allocation2 + $0x59] sm:$0xff]
        %v3685 = vld [vmem:[#allocation2 + $0x61] sm:$0xff]
        %v3686 = vld [vmem:[#allocation2 + $0x69] sm:$0xff]
        %v3687 = vld [vmem:[#allocation2 + $0x71] sm:$0xff]
        %v3688 = vld [vmem:[#allocation2 + $0x79] sm:$0xff]
        %v3689 = vld [vmem:[#allocation2 + $0x81] sm:$0xff]
        %v3690 = vld [vmem:[#allocation2 + $0x89] sm:$0xff]
        %v3691 = vld [vmem:[#allocation2 + $0x91] sm:$0xff]
        %v3692 = vld [vmem:[#allocation2 + $0x99] sm:$0xff]
        %v3693 = vld [vmem:[#allocation2 + $0xa1] sm:$0xff]
        %v3694 = vld [vmem:[#allocation2 + $0xa9] sm:$0xff]
        %v3695 = vld [vmem:[#allocation2 + $0xb1] sm:$0xff]
        %v3696 = vld [vmem:[#allocation2 + $0xb9] sm:$0xff]
        %v3697 = vld [vmem:[#allocation2 + $0xc1] sm:$0xff]
        %v3698 = vld [vmem:[#allocation2 + $0xc9] sm:$0xff]
        %v3699 = vld [vmem:[#allocation2 + $0xd1] sm:$0xff]
        %v3700 = vld [vmem:[#allocation2 + $0xd9] sm:$0xff]
        %v3701 = vld [vmem:[#allocation2 + $0xe1] sm:$0xff]
        %v3702 = vld [vmem:[#allocation2 + $0xe9] sm:$0xff]
        %v3703 = vld [vmem:[#allocation2 + $0xf1] sm:$0xff]
        %v3704 = vld [vmem:[#allocation2 + $0xf9] sm:$0xff]
        %v3705 = vld [vmem:[#allocation2 + $0x101] sm:$0xff]
        %v3706 = vld [vmem:[#allocation2 + $0x109] sm:$0xff]
        %v3707 = vld [vmem:[#allocation2 + $0x111] sm:$0xff]
        %v3708 = vld [vmem:[#allocation2 + $0x119] sm:$0xff]
        %v3709 = vld [vmem:[#allocation2 + $0x121] sm:$0xff]
        %v3710 = vld [vmem:[#allocation2 + $0x129] sm:$0xff]
        %v3711 = vld [vmem:[#allocation2 + $0x131] sm:$0xff]
        %v3712 = vld [vmem:[#allocation2 + $0x139] sm:$0xff]
        %v3713 = vld [vmem:[#allocation2 + $0x141] sm:$0xff]
        %v3714 = vld [vmem:[#allocation2 + $0x149] sm:$0xff]
        %v3715 = vld [vmem:[#allocation2 + $0x151] sm:$0xff]
        %v3716 = vld [vmem:[#allocation2 + $0x159] sm:$0xff]
        %v3717 = vld [vmem:[#allocation2 + $0x161] sm:$0xff]
        %v3718 = vld [vmem:[#allocation2 + $0x169] sm:$0xff]
        %v3719 = vld [vmem:[#allocation2 + $0x171] sm:$0xff]
        %v3720 = vld [vmem:[#allocation2 + $0x179] sm:$0xff]
        %v3721 = vld [vmem:[#allocation2 + $0x181] sm:$0xff]
        %v3722 = vld [vmem:[#allocation2 + $0x189] sm:$0xff]
        %v3723 = vld [vmem:[#allocation2 + $0x191] sm:$0xff]
        %v3724 = vld [vmem:[#allocation2 + $0x199] sm:$0x7f]
        %v3725 = vmax.f32 %v3621, %v3673
        %v3726 = vmax.f32 %v3622, %v3674
        %v3727 = vmax.f32 %v3623, %v3675
        %v3728 = vmax.f32 %v3624, %v3676
        %v3729 = vmax.f32 %v3625, %v3677
        %v3730 = vmax.f32 %v3626, %v3678
        %v3731 = vmax.f32 %v3627, %v3679
        %v3732 = vmax.f32 %v3628, %v3680
        %v3733 = vmax.f32 %v3629, %v3681
        %v3734 = vmax.f32 %v3630, %v3682
        %v3735 = vmax.f32 %v3631, %v3683
        %v3736 = vmax.f32 %v3632, %v3684
        %v3737 = vmax.f32 %v3633, %v3685
        %v3738 = vmax.f32 %v3634, %v3686
        %v3739 = vmax.f32 %v3635, %v3687
        %v3740 = vmax.f32 %v3636, %v3688
        %v3741 = vmax.f32 %v3637, %v3689
        %v3742 = vmax.f32 %v3638, %v3690
        %v3743 = vmax.f32 %v3639, %v3691
        %v3744 = vmax.f32 %v3640, %v3692
        %v3745 = vmax.f32 %v3641, %v3693
        %v3746 = vmax.f32 %v3642, %v3694
        %v3747 = vmax.f32 %v3643, %v3695
        %v3748 = vmax.f32 %v3644, %v3696
        %v3749 = vmax.f32 %v3645, %v3697
        %v3750 = vmax.f32 %v3646, %v3698
        %v3751 = vmax.f32 %v3647, %v3699
        %v3752 = vmax.f32 %v3648, %v3700
        %v3753 = vmax.f32 %v3649, %v3701
        %v3754 = vmax.f32 %v3650, %v3702
        %v3755 = vmax.f32 %v3651, %v3703
        %v3756 = vmax.f32 %v3652, %v3704
        %v3757 = vmax.f32 %v3653, %v3705
        %v3758 = vmax.f32 %v3654, %v3706
        %v3759 = vmax.f32 %v3655, %v3707
        %v3760 = vmax.f32 %v3656, %v3708
        %v3761 = vmax.f32 %v3657, %v3709
        %v3762 = vmax.f32 %v3658, %v3710
        %v3763 = vmax.f32 %v3659, %v3711
        %v3764 = vmax.f32 %v3660, %v3712
        %v3765 = vmax.f32 %v3661, %v3713
        %v3766 = vmax.f32 %v3662, %v3714
        %v3767 = vmax.f32 %v3663, %v3715
        %v3768 = vmax.f32 %v3664, %v3716
        %v3769 = vmax.f32 %v3665, %v3717
        %v3770 = vmax.f32 %v3666, %v3718
        %v3771 = vmax.f32 %v3667, %v3719
        %v3772 = vmax.f32 %v3668, %v3720
        %v3773 = vmax.f32 %v3669, %v3721
        %v3774 = vmax.f32 %v3670, %v3722
        %v3775 = vmax.f32 %v3671, %v3723
        %v3776 = vmax.f32 %v3672, %v3724
        %v3777 = vld [vmem:[#allocation2 + $0x16] sm:$0xff]
        %v3778 = vld [vmem:[#allocation2 + $0x1e] sm:$0xff]
        %v3779 = vld [vmem:[#allocation2 + $0x26] sm:$0xff]
        %v3780 = vld [vmem:[#allocation2 + $0x2e] sm:$0xff]
        %v3781 = vld [vmem:[#allocation2 + $0x36] sm:$0xff]
        %v3782 = vld [vmem:[#allocation2 + $0x3e] sm:$0xff]
        %v3783 = vld [vmem:[#allocation2 + $0x46] sm:$0xff]
        %v3784 = vld [vmem:[#allocation2 + $0x4e] sm:$0xff]
        %v3785 = vld [vmem:[#allocation2 + $0x56] sm:$0xff]
        %v3786 = vld [vmem:[#allocation2 + $0x5e] sm:$0xff]
        %v3787 = vld [vmem:[#allocation2 + $0x66] sm:$0xff]
        %v3788 = vld [vmem:[#allocation2 + $0x6e] sm:$0xff]
        %v3789 = vld [vmem:[#allocation2 + $0x76] sm:$0xff]
        %v3790 = vld [vmem:[#allocation2 + $0x7e] sm:$0xff]
        %v3791 = vld [vmem:[#allocation2 + $0x86] sm:$0xff]
        %v3792 = vld [vmem:[#allocation2 + $0x8e] sm:$0xff]
        %v3793 = vld [vmem:[#allocation2 + $0x96] sm:$0xff]
        %v3794 = vld [vmem:[#allocation2 + $0x9e] sm:$0xff]
        %v3795 = vld [vmem:[#allocation2 + $0xa6] sm:$0xff]
        %v3796 = vld [vmem:[#allocation2 + $0xae] sm:$0xff]
        %v3797 = vld [vmem:[#allocation2 + $0xb6] sm:$0xff]
        %v3798 = vld [vmem:[#allocation2 + $0xbe] sm:$0xff]
        %v3799 = vld [vmem:[#allocation2 + $0xc6] sm:$0xff]
        %v3800 = vld [vmem:[#allocation2 + $0xce] sm:$0xff]
        %v3801 = vld [vmem:[#allocation2 + $0xd6] sm:$0xff]
        %v3802 = vld [vmem:[#allocation2 + $0xde] sm:$0xff]
        %v3803 = vld [vmem:[#allocation2 + $0xe6] sm:$0xff]
        %v3804 = vld [vmem:[#allocation2 + $0xee] sm:$0xff]
        %v3805 = vld [vmem:[#allocation2 + $0xf6] sm:$0xff]
        %v3806 = vld [vmem:[#allocation2 + $0xfe] sm:$0xff]
        %v3807 = vld [vmem:[#allocation2 + $0x106] sm:$0xff]
        %v3808 = vld [vmem:[#allocation2 + $0x10e] sm:$0xff]
        %v3809 = vld [vmem:[#allocation2 + $0x116] sm:$0xff]
        %v3810 = vld [vmem:[#allocation2 + $0x11e] sm:$0xff]
        %v3811 = vld [vmem:[#allocation2 + $0x126] sm:$0xff]
        %v3812 = vld [vmem:[#allocation2 + $0x12e] sm:$0xff]
        %v3813 = vld [vmem:[#allocation2 + $0x136] sm:$0xff]
        %v3814 = vld [vmem:[#allocation2 + $0x13e] sm:$0xff]
        %v3815 = vld [vmem:[#allocation2 + $0x146] sm:$0xff]
        %v3816 = vld [vmem:[#allocation2 + $0x14e] sm:$0xff]
        %v3817 = vld [vmem:[#allocation2 + $0x156] sm:$0xff]
        %v3818 = vld [vmem:[#allocation2 + $0x15e] sm:$0xff]
        %v3819 = vld [vmem:[#allocation2 + $0x166] sm:$0xff]
        %v3820 = vld [vmem:[#allocation2 + $0x16e] sm:$0xff]
        %v3821 = vld [vmem:[#allocation2 + $0x176] sm:$0xff]
        %v3822 = vld [vmem:[#allocation2 + $0x17e] sm:$0xff]
        %v3823 = vld [vmem:[#allocation2 + $0x186] sm:$0xff]
        %v3824 = vld [vmem:[#allocation2 + $0x18e] sm:$0xff]
        %v3825 = vld [vmem:[#allocation2 + $0x196] sm:$0xff]
        %v3826 = vld [vmem:[#allocation2 + $0x19e] sm:$0xff]
        %v3827 = vld [vmem:[#allocation2 + $0x1a6] sm:$0xff]
        %v3828 = vld [vmem:[#allocation2 + $0x1ae] sm:$0x7f]
        %v3829 = vld [vmem:[#allocation2 + $0x17] sm:$0xff]
        %v3830 = vld [vmem:[#allocation2 + $0x1f] sm:$0xff]
        %v3831 = vld [vmem:[#allocation2 + $0x27] sm:$0xff]
        %v3832 = vld [vmem:[#allocation2 + $0x2f] sm:$0xff]
        %v3833 = vld [vmem:[#allocation2 + $0x37] sm:$0xff]
        %v3834 = vld [vmem:[#allocation2 + $0x3f] sm:$0xff]
        %v3835 = vld [vmem:[#allocation2 + $0x47] sm:$0xff]
        %v3836 = vld [vmem:[#allocation2 + $0x4f] sm:$0xff]
        %v3837 = vld [vmem:[#allocation2 + $0x57] sm:$0xff]
        %v3838 = vld [vmem:[#allocation2 + $0x5f] sm:$0xff]
        %v3839 = vld [vmem:[#allocation2 + $0x67] sm:$0xff]
        %v3840 = vld [vmem:[#allocation2 + $0x6f] sm:$0xff]
        %v3841 = vld [vmem:[#allocation2 + $0x77] sm:$0xff]
        %v3842 = vld [vmem:[#allocation2 + $0x7f] sm:$0xff]
        %v3843 = vld [vmem:[#allocation2 + $0x87] sm:$0xff]
        %v3844 = vld [vmem:[#allocation2 + $0x8f] sm:$0xff]
        %v3845 = vld [vmem:[#allocation2 + $0x97] sm:$0xff]
        %v3846 = vld [vmem:[#allocation2 + $0x9f] sm:$0xff]
        %v3847 = vld [vmem:[#allocation2 + $0xa7] sm:$0xff]
        %v3848 = vld [vmem:[#allocation2 + $0xaf] sm:$0xff]
        %v3849 = vld [vmem:[#allocation2 + $0xb7] sm:$0xff]
        %v3850 = vld [vmem:[#allocation2 + $0xbf] sm:$0xff]
        %v3851 = vld [vmem:[#allocation2 + $0xc7] sm:$0xff]
        %v3852 = vld [vmem:[#allocation2 + $0xcf] sm:$0xff]
        %v3853 = vld [vmem:[#allocation2 + $0xd7] sm:$0xff]
        %v3854 = vld [vmem:[#allocation2 + $0xdf] sm:$0xff]
        %v3855 = vld [vmem:[#allocation2 + $0xe7] sm:$0xff]
        %v3856 = vld [vmem:[#allocation2 + $0xef] sm:$0xff]
        %v3857 = vld [vmem:[#allocation2 + $0xf7] sm:$0xff]
        %v3858 = vld [vmem:[#allocation2 + $0xff] sm:$0xff]
        %v3859 = vld [vmem:[#allocation2 + $0x107] sm:$0xff]
        %v3860 = vld [vmem:[#allocation2 + $0x10f] sm:$0xff]
        %v3861 = vld [vmem:[#allocation2 + $0x117] sm:$0xff]
        %v3862 = vld [vmem:[#allocation2 + $0x11f] sm:$0xff]
        %v3863 = vld [vmem:[#allocation2 + $0x127] sm:$0xff]
        %v3864 = vld [vmem:[#allocation2 + $0x12f] sm:$0xff]
        %v3865 = vld [vmem:[#allocation2 + $0x137] sm:$0xff]
        %v3866 = vld [vmem:[#allocation2 + $0x13f] sm:$0xff]
        %v3867 = vld [vmem:[#allocation2 + $0x147] sm:$0xff]
        %v3868 = vld [vmem:[#allocation2 + $0x14f] sm:$0xff]
        %v3869 = vld [vmem:[#allocation2 + $0x157] sm:$0xff]
        %v3870 = vld [vmem:[#allocation2 + $0x15f] sm:$0xff]
        %v3871 = vld [vmem:[#allocation2 + $0x167] sm:$0xff]
        %v3872 = vld [vmem:[#allocation2 + $0x16f] sm:$0xff]
        %v3873 = vld [vmem:[#allocation2 + $0x177] sm:$0xff]
        %v3874 = vld [vmem:[#allocation2 + $0x17f] sm:$0xff]
        %v3875 = vld [vmem:[#allocation2 + $0x187] sm:$0xff]
        %v3876 = vld [vmem:[#allocation2 + $0x18f] sm:$0xff]
        %v3877 = vld [vmem:[#allocation2 + $0x197] sm:$0xff]
        %v3878 = vld [vmem:[#allocation2 + $0x19f] sm:$0xff]
        %v3879 = vld [vmem:[#allocation2 + $0x1a7] sm:$0xff]
        %v3880 = vld [vmem:[#allocation2 + $0x1af] sm:$0x7f]
        %v3881 = vmax.f32 %v3777, %v3829
        %v3882 = vmax.f32 %v3778, %v3830
        %v3883 = vmax.f32 %v3779, %v3831
        %v3884 = vmax.f32 %v3780, %v3832
        %v3885 = vmax.f32 %v3781, %v3833
        %v3886 = vmax.f32 %v3782, %v3834
        %v3887 = vmax.f32 %v3783, %v3835
        %v3888 = vmax.f32 %v3784, %v3836
        %v3889 = vmax.f32 %v3785, %v3837
        %v3890 = vmax.f32 %v3786, %v3838
        %v3891 = vmax.f32 %v3787, %v3839
        %v3892 = vmax.f32 %v3788, %v3840
        %v3893 = vmax.f32 %v3789, %v3841
        %v3894 = vmax.f32 %v3790, %v3842
        %v3895 = vmax.f32 %v3791, %v3843
        %v3896 = vmax.f32 %v3792, %v3844
        %v3897 = vmax.f32 %v3793, %v3845
        %v3898 = vmax.f32 %v3794, %v3846
        %v3899 = vmax.f32 %v3795, %v3847
        %v3900 = vmax.f32 %v3796, %v3848
        %v3901 = vmax.f32 %v3797, %v3849
        %v3902 = vmax.f32 %v3798, %v3850
        %v3903 = vmax.f32 %v3799, %v3851
        %v3904 = vmax.f32 %v3800, %v3852
        %v3905 = vmax.f32 %v3801, %v3853
        %v3906 = vmax.f32 %v3802, %v3854
        %v3907 = vmax.f32 %v3803, %v3855
        %v3908 = vmax.f32 %v3804, %v3856
        %v3909 = vmax.f32 %v3805, %v3857
        %v3910 = vmax.f32 %v3806, %v3858
        %v3911 = vmax.f32 %v3807, %v3859
        %v3912 = vmax.f32 %v3808, %v3860
        %v3913 = vmax.f32 %v3809, %v3861
        %v3914 = vmax.f32 %v3810, %v3862
        %v3915 = vmax.f32 %v3811, %v3863
        %v3916 = vmax.f32 %v3812, %v3864
        %v3917 = vmax.f32 %v3813, %v3865
        %v3918 = vmax.f32 %v3814, %v3866
        %v3919 = vmax.f32 %v3815, %v3867
        %v3920 = vmax.f32 %v3816, %v3868
        %v3921 = vmax.f32 %v3817, %v3869
        %v3922 = vmax.f32 %v3818, %v3870
        %v3923 = vmax.f32 %v3819, %v3871
        %v3924 = vmax.f32 %v3820, %v3872
        %v3925 = vmax.f32 %v3821, %v3873
        %v3926 = vmax.f32 %v3822, %v3874
        %v3927 = vmax.f32 %v3823, %v3875
        %v3928 = vmax.f32 %v3824, %v3876
        %v3929 = vmax.f32 %v3825, %v3877
        %v3930 = vmax.f32 %v3826, %v3878
        %v3931 = vmax.f32 %v3827, %v3879
        %v3932 = vmax.f32 %v3828, %v3880
        %v3933 = vmax.f32 %v3725, %v3881
        %v3934 = vmax.f32 %v3726, %v3882
        %v3935 = vmax.f32 %v3727, %v3883
        %v3936 = vmax.f32 %v3728, %v3884
        %v3937 = vmax.f32 %v3729, %v3885
        %v3938 = vmax.f32 %v3730, %v3886
        %v3939 = vmax.f32 %v3731, %v3887
        %v3940 = vmax.f32 %v3732, %v3888
        %v3941 = vmax.f32 %v3733, %v3889
        %v3942 = vmax.f32 %v3734, %v3890
        %v3943 = vmax.f32 %v3735, %v3891
        %v3944 = vmax.f32 %v3736, %v3892
        %v3945 = vmax.f32 %v3737, %v3893
        %v3946 = vmax.f32 %v3738, %v3894
        %v3947 = vmax.f32 %v3739, %v3895
        %v3948 = vmax.f32 %v3740, %v3896
        %v3949 = vmax.f32 %v3741, %v3897
        %v3950 = vmax.f32 %v3742, %v3898
        %v3951 = vmax.f32 %v3743, %v3899
        %v3952 = vmax.f32 %v3744, %v3900
        %v3953 = vmax.f32 %v3745, %v3901
        %v3954 = vmax.f32 %v3746, %v3902
        %v3955 = vmax.f32 %v3747, %v3903
        %v3956 = vmax.f32 %v3748, %v3904
        %v3957 = vmax.f32 %v3749, %v3905
        %v3958 = vmax.f32 %v3750, %v3906
        %v3959 = vmax.f32 %v3751, %v3907
        %v3960 = vmax.f32 %v3752, %v3908
        %v3961 = vmax.f32 %v3753, %v3909
        %v3962 = vmax.f32 %v3754, %v3910
        %v3963 = vmax.f32 %v3755, %v3911
        %v3964 = vmax.f32 %v3756, %v3912
        %v3965 = vmax.f32 %v3757, %v3913
        %v3966 = vmax.f32 %v3758, %v3914
        %v3967 = vmax.f32 %v3759, %v3915
        %v3968 = vmax.f32 %v3760, %v3916
        %v3969 = vmax.f32 %v3761, %v3917
        %v3970 = vmax.f32 %v3762, %v3918
        %v3971 = vmax.f32 %v3763, %v3919
        %v3972 = vmax.f32 %v3764, %v3920
        %v3973 = vmax.f32 %v3765, %v3921
        %v3974 = vmax.f32 %v3766, %v3922
        %v3975 = vmax.f32 %v3767, %v3923
        %v3976 = vmax.f32 %v3768, %v3924
        %v3977 = vmax.f32 %v3769, %v3925
        %v3978 = vmax.f32 %v3770, %v3926
        %v3979 = vmax.f32 %v3771, %v3927
        %v3980 = vmax.f32 %v3772, %v3928
        %v3981 = vmax.f32 %v3773, %v3929
        %v3982 = vmax.f32 %v3774, %v3930
        %v3983 = vmax.f32 %v3775, %v3931
        %v3984 = vmax.f32 %v3776, %v3932
        %v3985 = vld [vmem:[%s3] sm:$0xff]
        %v3986 = vld [vmem:[%s3 + $0x8] sm:$0xff]
        %v3987 = vld [vmem:[%s3 + $0x10] sm:$0xff]
        %v3988 = vld [vmem:[%s3 + $0x18] sm:$0xff]
        %v3989 = vld [vmem:[%s3 + $0x20] sm:$0xff]
        %v3990 = vld [vmem:[%s3 + $0x28] sm:$0xff]
        %v3991 = vld [vmem:[%s3 + $0x30] sm:$0xff]
        %v3992 = vld [vmem:[%s3 + $0x38] sm:$0xff]
        %v3993 = vld [vmem:[%s3 + $0x40] sm:$0xff]
        %v3994 = vld [vmem:[%s3 + $0x48] sm:$0xff]
        %v3995 = vld [vmem:[%s3 + $0x50] sm:$0xff]
        %v3996 = vld [vmem:[%s3 + $0x58] sm:$0xff]
        %v3997 = vld [vmem:[%s3 + $0x60] sm:$0xff]
        %v3998 = vld [vmem:[%s3 + $0x68] sm:$0xff]
        %v3999 = vld [vmem:[%s3 + $0x70] sm:$0xff]
        %v4000 = vld [vmem:[%s3 + $0x78] sm:$0xff]
        %v4001 = vld [vmem:[%s3 + $0x80] sm:$0xff]
        %v4002 = vld [vmem:[%s3 + $0x88] sm:$0xff]
        %v4003 = vld [vmem:[%s3 + $0x90] sm:$0xff]
        %v4004 = vld [vmem:[%s3 + $0x98] sm:$0xff]
        %v4005 = vld [vmem:[%s3 + $0xa0] sm:$0xff]
        %v4006 = vld [vmem:[%s3 + $0xa8] sm:$0xff]
        %v4007 = vld [vmem:[%s3 + $0xb0] sm:$0xff]
        %v4008 = vld [vmem:[%s3 + $0xb8] sm:$0xff]
        %v4009 = vld [vmem:[%s3 + $0xc0] sm:$0xff]
        %v4010 = vld [vmem:[%s3 + $0xc8] sm:$0xff]
        %v4011 = vld [vmem:[%s3 + $0xd0] sm:$0xff]
        %v4012 = vld [vmem:[%s3 + $0xd8] sm:$0xff]
        %v4013 = vld [vmem:[%s3 + $0xe0] sm:$0xff]
        %v4014 = vld [vmem:[%s3 + $0xe8] sm:$0xff]
        %v4015 = vld [vmem:[%s3 + $0xf0] sm:$0xff]
        %v4016 = vld [vmem:[%s3 + $0xf8] sm:$0xff]
        %v4017 = vld [vmem:[%s3 + $0x100] sm:$0xff]
        %v4018 = vld [vmem:[%s3 + $0x108] sm:$0xff]
        %v4019 = vld [vmem:[%s3 + $0x110] sm:$0xff]
        %v4020 = vld [vmem:[%s3 + $0x118] sm:$0xff]
        %v4021 = vld [vmem:[%s3 + $0x120] sm:$0xff]
        %v4022 = vld [vmem:[%s3 + $0x128] sm:$0xff]
        %v4023 = vld [vmem:[%s3 + $0x130] sm:$0xff]
        %v4024 = vld [vmem:[%s3 + $0x138] sm:$0xff]
        %v4025 = vld [vmem:[%s3 + $0x140] sm:$0xff]
        %v4026 = vld [vmem:[%s3 + $0x148] sm:$0xff]
        %v4027 = vld [vmem:[%s3 + $0x150] sm:$0xff]
        %v4028 = vld [vmem:[%s3 + $0x158] sm:$0xff]
        %v4029 = vld [vmem:[%s3 + $0x160] sm:$0xff]
        %v4030 = vld [vmem:[%s3 + $0x168] sm:$0xff]
        %v4031 = vld [vmem:[%s3 + $0x170] sm:$0xff]
        %v4032 = vld [vmem:[%s3 + $0x178] sm:$0xff]
        %v4033 = vld [vmem:[%s3 + $0x180] sm:$0xf]
        %v4034 = vld [vmem:[%s3 + $0x188] sm:$0xf]
        %v4035 = vld [vmem:[%s3 + $0x190] sm:$0xf]
        %v4036 = vld [vmem:[%s3 + $0x198] sm:$0xf]
        %vm4037 = vcmask 252928
        %v4039 = vsel %vm4037, %v3988, 0
        %v4042 = vsel %vm4037, %v3992, 0
        %v4045 = vsel %vm4037, %v3996, 0
        %v4048 = vsel %vm4037, %v4000, 0
        %v4051 = vsel %vm4037, %v4004, 0
        %v4054 = vsel %vm4037, %v4008, 0
        %v4057 = vsel %vm4037, %v4012, 0
        %v4060 = vsel %vm4037, %v4016, 0
        %v4063 = vsel %vm4037, %v4020, 0
        %v4066 = vsel %vm4037, %v4024, 0
        %v4069 = vsel %vm4037, %v4028, 0
        %v4072 = vsel %vm4037, %v4032, 0
        %v4075 = vsel %vm4037, %v4036, 0
        %vm4077 = vcmask 1046528
        %v4079 = vsel %vm4077, %v3984, 0
        %4081 = vmatprep.subr.mxu0 0.0
        %4082 = vmatpush1.msra.mxu0 %v3933
        %4083 = vmatprep.subr.mxu0 0.0
        %4084 = vmatpush1.msra.mxu0 %v3934
        %4085 = vmatprep.subr.mxu0 0.0
        %4086 = vmatpush1.msra.mxu0 %v3935
        %4087 = vmatprep.subr.mxu0 0.0
        %4088 = vmatpush1.msra.mxu0 %v3936
        %4089 = vmatprep.subr.mxu0 0.0
        %4090 = vmatpush1.msra.mxu0 %v3937
        %4091 = vmatprep.subr.mxu0 0.0
        %4092 = vmatpush1.msra.mxu0 %v3938
        %4093 = vmatprep.subr.mxu0 0.0
        %4094 = vmatpush1.msra.mxu0 %v3939
        %4095 = vmatprep.subr.mxu0 0.0
        %4096 = vmatpush1.msra.mxu0 %v3940
        %4097 = vmatprep.subr.mxu0 0.0
        %4098 = vmatpush1.msra.mxu0 %v3941
        %4099 = vmatprep.subr.mxu0 0.0
        %4100 = vmatpush1.msra.mxu0 %v3942
        %4101 = vmatprep.subr.mxu0 0.0
        %4102 = vmatpush1.msra.mxu0 %v3943
        %4103 = vmatprep.subr.mxu0 0.0
        %4104 = vmatpush1.msra.mxu0 %v3944
        %4105 = vmatprep.subr.mxu0 0.0
        %4106 = vmatpush1.msra.mxu0 %v3945
        %4107 = vmatprep.subr.mxu0 0.0
        %4108 = vmatpush1.msra.mxu0 %v3946
        %4109 = vmatprep.subr.mxu0 0.0
        %4110 = vmatpush1.msra.mxu0 %v3947
        %4111 = vmatprep.subr.mxu0 0.0
        %4112 = vmatpush1.msra.mxu0 %v3948
        %4113 = vmatprep.subr.mxu0 0.0
        %4114 = vmatpush1.msra.mxu0 %v3949
        %4115 = vmatprep.subr.mxu0 0.0
        %4116 = vmatpush1.msra.mxu0 %v3950
        %4117 = vmatprep.subr.mxu0 0.0
        %4118 = vmatpush1.msra.mxu0 %v3951
        %4119 = vmatprep.subr.mxu0 0.0
        %4120 = vmatpush1.msra.mxu0 %v3952
        %4121 = vmatprep.subr.mxu0 0.0
        %4122 = vmatpush1.msra.mxu0 %v3953
        %4123 = vmatprep.subr.mxu0 0.0
        %4124 = vmatpush1.msra.mxu0 %v3954
        %4125 = vmatprep.subr.mxu0 0.0
        %4126 = vmatpush1.msra.mxu0 %v3955
        %4127 = vmatprep.subr.mxu0 0.0
        %4128 = vmatpush1.msra.mxu0 %v3956
        %4129 = vmatprep.subr.mxu0 0.0
        %4130 = vmatpush1.msra.mxu0 %v3957
        %4131 = vmatprep.subr.mxu0 0.0
        %4132 = vmatpush1.msra.mxu0 %v3958
        %4133 = vmatprep.subr.mxu0 0.0
        %4134 = vmatpush1.msra.mxu0 %v3959
        %4135 = vmatprep.subr.mxu0 0.0
        %4136 = vmatpush1.msra.mxu0 %v3960
        %4137 = vmatprep.subr.mxu0 0.0
        %4138 = vmatpush1.msra.mxu0 %v3961
        %4139 = vmatprep.subr.mxu0 0.0
        %4140 = vmatpush1.msra.mxu0 %v3962
        %4141 = vmatprep.subr.mxu0 0.0
        %4142 = vmatpush1.msra.mxu0 %v3963
        %4143 = vmatprep.subr.mxu0 0.0
        %4144 = vmatpush1.msra.mxu0 %v3964
        %4145 = vmatprep.mubr.f32.mxu0 %v3986
        %4146 = vmatmul.mubr.f32.gmra.mrb[0].mxu0 %v3985
        %v4147 = vpop.f32.mrb[0].mxu0
        %v4148 = vadd.f32 0.0, %v4147
        %v4149 = vpop.f32.mrb[0].mxu0
        %4150 = vmatprep.mubr.f32.mxu0 %v3990
        %4151 = vmatmul.mubr.f32.gmra.mrb[0].mxu0 %v3989
        %v4152 = vpop.f32.mrb[0].mxu0
        %v4153 = vadd.f32 0.0, %v4152
        %v4154 = vpop.f32.mrb[0].mxu0
        %4155 = vmatprep.mubr.f32.mxu0 %v3994
        %4156 = vmatmul.mubr.f32.gmra.mrb[0].mxu0 %v3993
        %v4157 = vpop.f32.mrb[0].mxu0
        %v4158 = vadd.f32 0.0, %v4157
        %v4159 = vpop.f32.mrb[0].mxu0
        %4160 = vmatprep.mubr.f32.mxu0 %v3998
        %4161 = vmatmul.mubr.f32.gmra.mrb[0].mxu0 %v3997
        %v4162 = vpop.f32.mrb[0].mxu0
        %v4163 = vadd.f32 0.0, %v4162
        %v4164 = vpop.f32.mrb[0].mxu0
        %4165 = vmatprep.mubr.f32.mxu0 %v4002
        %4166 = vmatmul.mubr.f32.gmra.mrb[0].mxu0 %v4001
        %v4167 = vpop.f32.mrb[0].mxu0
        %v4168 = vadd.f32 0.0, %v4167
        %v4169 = vpop.f32.mrb[0].mxu0
        %4170 = vmatprep.mubr.f32.mxu0 %v4006
        %4171 = vmatmul.mubr.f32.gmra.mrb[0].mxu0 %v4005
        %v4172 = vpop.f32.mrb[0].mxu0
        %v4173 = vadd.f32 0.0, %v4172
        %v4174 = vpop.f32.mrb[0].mxu0
        %4175 = vmatprep.mubr.f32.mxu0 %v4010
        %4176 = vmatmul.mubr.f32.gmra.mrb[0].mxu0 %v4009
        %v4177 = vpop.f32.mrb[0].mxu0
        %v4178 = vadd.f32 0.0, %v4177
        %v4179 = vpop.f32.mrb[0].mxu0
        %4180 = vmatprep.mubr.f32.mxu0 %v4014
        %4181 = vmatmul.mubr.f32.gmra.mrb[0].mxu0 %v4013
        %v4182 = vpop.f32.mrb[0].mxu0
        %v4183 = vadd.f32 0.0, %v4182
        %v4184 = vpop.f32.mrb[0].mxu0
        %4185 = vmatprep.mubr.f32.mxu0 %v4018
        %4186 = vmatmul.mubr.f32.gmra.mrb[0].mxu0 %v4017
        %v4187 = vpop.f32.mrb[0].mxu0
        %v4188 = vadd.f32 0.0, %v4187
        %v4189 = vpop.f32.mrb[0].mxu0
        %4190 = vmatprep.mubr.f32.mxu0 %v4022
        %4191 = vmatmul.mubr.f32.gmra.mrb[0].mxu0 %v4021
        %v4192 = vpop.f32.mrb[0].mxu0
        %v4193 = vadd.f32 0.0, %v4192
        %v4194 = vpop.f32.mrb[0].mxu0
        %4195 = vmatprep.mubr.f32.mxu0 %v4026
        %4196 = vmatmul.mubr.f32.gmra.mrb[0].mxu0 %v4025
        %v4197 = vpop.f32.mrb[0].mxu0
        %v4198 = vadd.f32 0.0, %v4197
        %v4199 = vpop.f32.mrb[0].mxu0
        %4200 = vmatprep.mubr.f32.mxu0 %v4030
        %4201 = vmatmul.mubr.f32.gmra.mrb[0].mxu0 %v4029
        %v4202 = vpop.f32.mrb[0].mxu0
        %v4203 = vadd.f32 0.0, %v4202
        %v4204 = vpop.f32.mrb[0].mxu0
        %4205 = vmatprep.mubr.f32.mxu0 %v4034
        %4206 = vmatmul.mubr.f32.gmra.mrb[0].mxu0 %v4033
        %v4207 = vpop.f32.mrb[0].mxu0
        %v4208 = vadd.f32 0.0, %v4207
        %v4209 = vpop.f32.mrb[0].mxu0
        %4210 = vdwg.mxu0
        %4211 = vmatprep.subr.mxu0 0.0
        %4212 = vmatpush1.msra.mxu0 %v3965
        %4213 = vmatprep.subr.mxu0 0.0
        %4214 = vmatpush1.msra.mxu0 %v3966
        %4215 = vmatprep.subr.mxu0 0.0
        %4216 = vmatpush1.msra.mxu0 %v3967
        %4217 = vmatprep.subr.mxu0 0.0
        %4218 = vmatpush1.msra.mxu0 %v3968
        %4219 = vmatprep.subr.mxu0 0.0
        %4220 = vmatpush1.msra.mxu0 %v3969
        %4221 = vmatprep.subr.mxu0 0.0
        %4222 = vmatpush1.msra.mxu0 %v3970
        %4223 = vmatprep.subr.mxu0 0.0
        %4224 = vmatpush1.msra.mxu0 %v3971
        %4225 = vmatprep.subr.mxu0 0.0
        %4226 = vmatpush1.msra.mxu0 %v3972
        %4227 = vmatprep.subr.mxu0 0.0
        %4228 = vmatpush1.msra.mxu0 %v3973
        %4229 = vmatprep.subr.mxu0 0.0
        %4230 = vmatpush1.msra.mxu0 %v3974
        %4231 = vmatprep.subr.mxu0 0.0
        %4232 = vmatpush1.msra.mxu0 %v3975
        %4233 = vmatprep.subr.mxu0 0.0
        %4234 = vmatpush1.msra.mxu0 %v3976
        %4235 = vmatprep.subr.mxu0 0.0
        %4236 = vmatpush1.msra.mxu0 %v3977
        %4237 = vmatprep.subr.mxu0 0.0
        %4238 = vmatpush1.msra.mxu0 %v3978
        %4239 = vmatprep.subr.mxu0 0.0
        %4240 = vmatpush1.msra.mxu0 %v3979
        %4241 = vmatprep.subr.mxu0 0.0
        %4242 = vmatpush1.msra.mxu0 %v3980
        %4243 = vmatprep.subr.mxu0 0.0
        %4244 = vmatpush1.msra.mxu0 %v3981
        %4245 = vmatprep.subr.mxu0 0.0
        %4246 = vmatpush1.msra.mxu0 %v3982
        %4247 = vmatprep.subr.mxu0 0.0
        %4248 = vmatpush1.msra.mxu0 %v3983
        %4249 = vmatprep.subr.mxu0 0.0
        %4250 = vmatpush1.msra.mxu0 %v4079
        %4251 = vmatprep.subr.mxu0 0.0
        %4252 = vmatpush1.msra.mxu0 0.0
        %4253 = vmatprep.subr.mxu0 0.0
        %4254 = vmatpush1.msra.mxu0 0.0
        %4255 = vmatprep.subr.mxu0 0.0
        %4256 = vmatpush1.msra.mxu0 0.0
        %4257 = vmatprep.subr.mxu0 0.0
        %4258 = vmatpush1.msra.mxu0 0.0
        %4259 = vmatprep.subr.mxu0 0.0
        %4260 = vmatpush1.msra.mxu0 0.0
        %4261 = vmatprep.subr.mxu0 0.0
        %4262 = vmatpush1.msra.mxu0 0.0
        %4263 = vmatprep.subr.mxu0 0.0
        %4264 = vmatpush1.msra.mxu0 0.0
        %4265 = vmatprep.subr.mxu0 0.0
        %4266 = vmatpush1.msra.mxu0 0.0
        %4267 = vmatprep.subr.mxu0 0.0
        %4268 = vmatpush1.msra.mxu0 0.0
        %4269 = vmatprep.subr.mxu0 0.0
        %4270 = vmatpush1.msra.mxu0 0.0
        %4271 = vmatprep.subr.mxu0 0.0
        %4272 = vmatpush1.msra.mxu0 0.0
        %4273 = vmatprep.subr.mxu0 0.0
        %4274 = vmatpush1.msra.mxu0 0.0
        %4275 = vmatprep.mubr.f32.mxu0 %v4039
        %4276 = vmatmul.mubr.f32.gmra.mrb[0].mxu0 %v3987
        %v4277 = vpop.f32.mrb[0].mxu0
        %v4278 = vadd.f32 %v4148, %v4277
        %v4279 = vpop.f32.mrb[0].mxu0
        %4280 = vmatprep.mubr.f32.mxu0 %v4042
        %4281 = vmatmul.mubr.f32.gmra.mrb[0].mxu0 %v3991
        %v4282 = vpop.f32.mrb[0].mxu0
        %v4283 = vadd.f32 %v4153, %v4282
        %v4284 = vpop.f32.mrb[0].mxu0
        %4285 = vmatprep.mubr.f32.mxu0 %v4045
        %4286 = vmatmul.mubr.f32.gmra.mrb[0].mxu0 %v3995
        %v4287 = vpop.f32.mrb[0].mxu0
        %v4288 = vadd.f32 %v4158, %v4287
        %v4289 = vpop.f32.mrb[0].mxu0
        %4290 = vmatprep.mubr.f32.mxu0 %v4048
        %4291 = vmatmul.mubr.f32.gmra.mrb[0].mxu0 %v3999
        %v4292 = vpop.f32.mrb[0].mxu0
        %v4293 = vadd.f32 %v4163, %v4292
        %v4294 = vpop.f32.mrb[0].mxu0
        %4295 = vmatprep.mubr.f32.mxu0 %v4051
        %4296 = vmatmul.mubr.f32.gmra.mrb[0].mxu0 %v4003
        %v4297 = vpop.f32.mrb[0].mxu0
        %v4298 = vadd.f32 %v4168, %v4297
        %v4299 = vpop.f32.mrb[0].mxu0
        %4300 = vmatprep.mubr.f32.mxu0 %v4054
        %4301 = vmatmul.mubr.f32.gmra.mrb[0].mxu0 %v4007
        %v4302 = vpop.f32.mrb[0].mxu0
        %v4303 = vadd.f32 %v4173, %v4302
        %v4304 = vpop.f32.mrb[0].mxu0
        %4305 = vmatprep.mubr.f32.mxu0 %v4057
        %4306 = vmatmul.mubr.f32.gmra.mrb[0].mxu0 %v4011
        %v4307 = vpop.f32.mrb[0].mxu0
        %v4308 = vadd.f32 %v4178, %v4307
        %v4309 = vpop.f32.mrb[0].mxu0
        %4310 = vmatprep.mubr.f32.mxu0 %v4060
        %4311 = vmatmul.mubr.f32.gmra.mrb[0].mxu0 %v4015
        %v4312 = vpop.f32.mrb[0].mxu0
        %v4313 = vadd.f32 %v4183, %v4312
        %v4314 = vpop.f32.mrb[0].mxu0
        %4315 = vmatprep.mubr.f32.mxu0 %v4063
        %4316 = vmatmul.mubr.f32.gmra.mrb[0].mxu0 %v4019
        %v4317 = vpop.f32.mrb[0].mxu0
        %v4318 = vadd.f32 %v4188, %v4317
        %v4319 = vpop.f32.mrb[0].mxu0
        %4320 = vmatprep.mubr.f32.mxu0 %v4066
        %4321 = vmatmul.mubr.f32.gmra.mrb[0].mxu0 %v4023
        %v4322 = vpop.f32.mrb[0].mxu0
        %v4323 = vadd.f32 %v4193, %v4322
        %v4324 = vpop.f32.mrb[0].mxu0
        %4325 = vmatprep.mubr.f32.mxu0 %v4069
        %4326 = vmatmul.mubr.f32.gmra.mrb[0].mxu0 %v4027
        %v4327 = vpop.f32.mrb[0].mxu0
        %v4328 = vadd.f32 %v4198, %v4327
        %v4329 = vpop.f32.mrb[0].mxu0
        %4330 = vmatprep.mubr.f32.mxu0 %v4072
        %4331 = vmatmul.mubr.f32.gmra.mrb[0].mxu0 %v4031
        %v4332 = vpop.f32.mrb[0].mxu0
        %v4333 = vadd.f32 %v4203, %v4332
        %v4334 = vpop.f32.mrb[0].mxu0
        %4335 = vmatprep.mubr.f32.mxu0 %v4075
        %4336 = vmatmul.mubr.f32.gmra.mrb[0].mxu0 %v4035
        %v4337 = vpop.f32.mrb[0].mxu0
        %v4338 = vadd.f32 %v4208, %v4337
        %v4339 = vpop.f32.mrb[0].mxu0
        %4340 = vdwg.mxu0
        %4341 = vst.msk [vmem:[#allocation3] sm:$0xff] %vm3564, %v4278
        %4342 = vst.msk [vmem:[#allocation3 + $0x8] sm:$0xff] %vm3564, %v4283
        %4343 = vst.msk [vmem:[#allocation3 + $0x10] sm:$0xff] %vm3564, %v4288
        %4344 = vst.msk [vmem:[#allocation3 + $0x18] sm:$0xff] %vm3564, %v4293
        %4345 = vst.msk [vmem:[#allocation3 + $0x20] sm:$0xff] %vm3564, %v4298
        %4346 = vst.msk [vmem:[#allocation3 + $0x28] sm:$0xff] %vm3564, %v4303
        %4347 = vst.msk [vmem:[#allocation3 + $0x30] sm:$0xff] %vm3564, %v4308
        %4348 = vst.msk [vmem:[#allocation3 + $0x38] sm:$0xff] %vm3564, %v4313
        %4349 = vst.msk [vmem:[#allocation3 + $0x40] sm:$0xff] %vm3564, %v4318
        %4350 = vst.msk [vmem:[#allocation3 + $0x48] sm:$0xff] %vm3564, %v4323
        %4351 = vst.msk [vmem:[#allocation3 + $0x50] sm:$0xff] %vm3564, %v4328
        %4352 = vst.msk [vmem:[#allocation3 + $0x58] sm:$0xff] %vm3564, %v4333
        %vm4353 = vcmask 60416
        %4354 = vst.msk [vmem:[#allocation3 + $0x60] sm:$0xf] %vm4353, %v4338
        %v4355 = vld [vmem:[#allocation3] sm:$0xff]
        %v4356 = vld [vmem:[#allocation3 + $0x8] sm:$0xff]
        %v4357 = vld [vmem:[#allocation3 + $0x10] sm:$0xff]
        %v4358 = vld [vmem:[#allocation3 + $0x18] sm:$0xff]
        %v4359 = vld [vmem:[#allocation3 + $0x20] sm:$0xff]
        %v4360 = vld [vmem:[#allocation3 + $0x28] sm:$0xff]
        %v4361 = vld [vmem:[#allocation3 + $0x30] sm:$0xff]
        %v4362 = vld [vmem:[#allocation3 + $0x38] sm:$0xff]
        %v4363 = vld [vmem:[#allocation3 + $0x40] sm:$0xff]
        %v4364 = vld [vmem:[#allocation3 + $0x48] sm:$0x3f]
        %v4365 = vld [vmem:[#allocation3 + $0x1] sm:$0xff]
        %v4366 = vld [vmem:[#allocation3 + $0x9] sm:$0xff]
        %v4367 = vld [vmem:[#allocation3 + $0x11] sm:$0xff]
        %v4368 = vld [vmem:[#allocation3 + $0x19] sm:$0xff]
        %v4369 = vld [vmem:[#allocation3 + $0x21] sm:$0xff]
        %v4370 = vld [vmem:[#allocation3 + $0x29] sm:$0xff]
        %v4371 = vld [vmem:[#allocation3 + $0x31] sm:$0xff]
        %v4372 = vld [vmem:[#allocation3 + $0x39] sm:$0xff]
        %v4373 = vld [vmem:[#allocation3 + $0x41] sm:$0xff]
        %v4374 = vld [vmem:[#allocation3 + $0x49] sm:$0x3f]
        %v4375 = vld [vmem:[#allocation3 + $0x2] sm:$0xff]
        %v4376 = vld [vmem:[#allocation3 + $0xa] sm:$0xff]
        %v4377 = vld [vmem:[#allocation3 + $0x12] sm:$0xff]
        %v4378 = vld [vmem:[#allocation3 + $0x1a] sm:$0xff]
        %v4379 = vld [vmem:[#allocation3 + $0x22] sm:$0xff]
        %v4380 = vld [vmem:[#allocation3 + $0x2a] sm:$0xff]
        %v4381 = vld [vmem:[#allocation3 + $0x32] sm:$0xff]
        %v4382 = vld [vmem:[#allocation3 + $0x3a] sm:$0xff]
        %v4383 = vld [vmem:[#allocation3 + $0x42] sm:$0xff]
        %v4384 = vld [vmem:[#allocation3 + $0x4a] sm:$0x3f]
        %v4385 = vld [vmem:[#allocation3 + $0x4a] sm:$0xff]
        %v4386 = vld [vmem:[#allocation3 + $0x52] sm:$0x3f]
        %v4387 = vld [vmem:[#allocation3 + $0xb] sm:$0xff]
        %v4388 = vld [vmem:[#allocation3 + $0x13] sm:$0xff]
        %v4389 = vld [vmem:[#allocation3 + $0x1b] sm:$0xff]
        %v4390 = vld [vmem:[#allocation3 + $0x23] sm:$0xff]
        %v4391 = vld [vmem:[#allocation3 + $0x2b] sm:$0xff]
        %v4392 = vld [vmem:[#allocation3 + $0x33] sm:$0xff]
        %v4393 = vld [vmem:[#allocation3 + $0x3b] sm:$0xff]
        %v4394 = vld [vmem:[#allocation3 + $0x43] sm:$0xff]
        %v4395 = vld [vmem:[#allocation3 + $0x4b] sm:$0xff]
        %v4396 = vld [vmem:[#allocation3 + $0x53] sm:$0x3f]
        %v4397 = vld [vmem:[#allocation3 + $0xc] sm:$0xff]
        %v4398 = vld [vmem:[#allocation3 + $0x14] sm:$0xff]
        %v4399 = vld [vmem:[#allocation3 + $0x1c] sm:$0xff]
        %v4400 = vld [vmem:[#allocation3 + $0x24] sm:$0xff]
        %v4401 = vld [vmem:[#allocation3 + $0x2c] sm:$0xff]
        %v4402 = vld [vmem:[#allocation3 + $0x34] sm:$0xff]
        %v4403 = vld [vmem:[#allocation3 + $0x3c] sm:$0xff]
        %v4404 = vld [vmem:[#allocation3 + $0x44] sm:$0xff]
        %v4405 = vld [vmem:[#allocation3 + $0x4c] sm:$0xff]
        %v4406 = vld [vmem:[#allocation3 + $0x54] sm:$0x3f]
        %v4407 = vld [vmem:[#allocation3 + $0x54] sm:$0xff]
        %v4408 = vld [vmem:[#allocation3 + $0x5c] sm:$0x3f]
        %v4409 = vld [vmem:[#allocation3 + $0x15] sm:$0xff]
        %v4410 = vld [vmem:[#allocation3 + $0x1d] sm:$0xff]
        %v4411 = vld [vmem:[#allocation3 + $0x25] sm:$0xff]
        %v4412 = vld [vmem:[#allocation3 + $0x2d] sm:$0xff]
        %v4413 = vld [vmem:[#allocation3 + $0x35] sm:$0xff]
        %v4414 = vld [vmem:[#allocation3 + $0x3d] sm:$0xff]
        %v4415 = vld [vmem:[#allocation3 + $0x45] sm:$0xff]
        %v4416 = vld [vmem:[#allocation3 + $0x4d] sm:$0xff]
        %v4417 = vld [vmem:[#allocation3 + $0x55] sm:$0xff]
        %v4418 = vld [vmem:[#allocation3 + $0x5d] sm:$0x3f]
        %v4419 = vld [vmem:[#allocation3 + $0x16] sm:$0xff]
        %v4420 = vld [vmem:[#allocation3 + $0x1e] sm:$0xff]
        %v4421 = vld [vmem:[#allocation3 + $0x26] sm:$0xff]
        %v4422 = vld [vmem:[#allocation3 + $0x2e] sm:$0xff]
        %v4423 = vld [vmem:[#allocation3 + $0x36] sm:$0xff]
        %v4424 = vld [vmem:[#allocation3 + $0x3e] sm:$0xff]
        %v4425 = vld [vmem:[#allocation3 + $0x46] sm:$0xff]
        %v4426 = vld [vmem:[#allocation3 + $0x4e] sm:$0xff]
        %v4427 = vld [vmem:[#allocation3 + $0x56] sm:$0xff]
        %v4428 = vld [vmem:[#allocation3 + $0x5e] sm:$0x3f]
        %4439 = vrot.lane.b32.xlu0 %v4365, 8
        %v4440 = vpop.permute.xlu0 %4439
        %4441 = vrot.lane.b32.xlu0 %v4366, 8
        %v4442 = vpop.permute.xlu0 %4441
        %4443 = vrot.lane.b32.xlu0 %v4367, 8
        %v4444 = vpop.permute.xlu0 %4443
        %4445 = vrot.lane.b32.xlu0 %v4368, 8
        %v4446 = vpop.permute.xlu0 %4445
        %4447 = vrot.lane.b32.xlu0 %v4369, 8
        %v4448 = vpop.permute.xlu0 %4447
        %4449 = vrot.lane.b32.xlu0 %v4370, 8
        %v4450 = vpop.permute.xlu0 %4449
        %4451 = vrot.lane.b32.xlu0 %v4371, 8
        %v4452 = vpop.permute.xlu0 %4451
        %4453 = vrot.lane.b32.xlu0 %v4372, 8
        %v4454 = vpop.permute.xlu0 %4453
        %4455 = vrot.lane.b32.xlu0 %v4373, 8
        %v4456 = vpop.permute.xlu0 %4455
        %4457 = vrot.lane.b32.xlu0 %v4374, 8
        %v4458 = vpop.permute.xlu0 %4457
        %4479 = vrot.lane.b32.xlu0 %v4375, 16
        %v4480 = vpop.permute.xlu0 %4479
        %4481 = vrot.lane.b32.xlu0 %v4376, 16
        %v4482 = vpop.permute.xlu0 %4481
        %4483 = vrot.lane.b32.xlu0 %v4377, 16
        %v4484 = vpop.permute.xlu0 %4483
        %4485 = vrot.lane.b32.xlu0 %v4378, 16
        %v4486 = vpop.permute.xlu0 %4485
        %4487 = vrot.lane.b32.xlu0 %v4379, 16
        %v4488 = vpop.permute.xlu0 %4487
        %4489 = vrot.lane.b32.xlu0 %v4380, 16
        %v4490 = vpop.permute.xlu0 %4489
        %4491 = vrot.lane.b32.xlu0 %v4381, 16
        %v4492 = vpop.permute.xlu0 %4491
        %4493 = vrot.lane.b32.xlu0 %v4382, 16
        %v4494 = vpop.permute.xlu0 %4493
        %4495 = vrot.lane.b32.xlu0 %v4383, 16
        %v4496 = vpop.permute.xlu0 %4495
        %4497 = vrot.lane.b32.xlu0 %v4384, 16
        %v4498 = vpop.permute.xlu0 %4497
        %4511 = vrot.lane.b32.xlu0 %v4376, 24
        %v4512 = vpop.permute.xlu0 %4511
        %4513 = vrot.lane.b32.xlu0 %v4377, 24
        %v4514 = vpop.permute.xlu0 %4513
        %4515 = vrot.lane.b32.xlu0 %v4378, 24
        %v4516 = vpop.permute.xlu0 %4515
        %4517 = vrot.lane.b32.xlu0 %v4379, 24
        %v4518 = vpop.permute.xlu0 %4517
        %4519 = vrot.lane.b32.xlu0 %v4380, 24
        %v4520 = vpop.permute.xlu0 %4519
        %4521 = vrot.lane.b32.xlu0 %v4381, 24
        %v4522 = vpop.permute.xlu0 %4521
        %4523 = vrot.lane.b32.xlu0 %v4382, 24
        %v4524 = vpop.permute.xlu0 %4523
        %4525 = vrot.lane.b32.xlu0 %v4383, 24
        %v4526 = vpop.permute.xlu0 %4525
        %4527 = vrot.lane.b32.xlu0 %v4385, 24
        %v4528 = vpop.permute.xlu0 %4527
        %4529 = vrot.lane.b32.xlu0 %v4386, 24
        %v4530 = vpop.permute.xlu0 %4529
        %4551 = vrot.lane.b32.xlu0 %v4387, 32
        %v4552 = vpop.permute.xlu0 %4551
        %4553 = vrot.lane.b32.xlu0 %v4388, 32
        %v4554 = vpop.permute.xlu0 %4553
        %4555 = vrot.lane.b32.xlu0 %v4389, 32
        %v4556 = vpop.permute.xlu0 %4555
        %4557 = vrot.lane.b32.xlu0 %v4390, 32
        %v4558 = vpop.permute.xlu0 %4557
        %4559 = vrot.lane.b32.xlu0 %v4391, 32
        %v4560 = vpop.permute.xlu0 %4559
        %4561 = vrot.lane.b32.xlu0 %v4392, 32
        %v4562 = vpop.permute.xlu0 %4561
        %4563 = vrot.lane.b32.xlu0 %v4393, 32
        %v4564 = vpop.permute.xlu0 %4563
        %4565 = vrot.lane.b32.xlu0 %v4394, 32
        %v4566 = vpop.permute.xlu0 %4565
        %4567 = vrot.lane.b32.xlu0 %v4395, 32
        %v4568 = vpop.permute.xlu0 %4567
        %4569 = vrot.lane.b32.xlu0 %v4396, 32
        %v4570 = vpop.permute.xlu0 %4569
        %4591 = vrot.lane.b32.xlu0 %v4397, 40
        %v4592 = vpop.permute.xlu0 %4591
        %4593 = vrot.lane.b32.xlu0 %v4398, 40
        %v4594 = vpop.permute.xlu0 %4593
        %4595 = vrot.lane.b32.xlu0 %v4399, 40
        %v4596 = vpop.permute.xlu0 %4595
        %4597 = vrot.lane.b32.xlu0 %v4400, 40
        %v4598 = vpop.permute.xlu0 %4597
        %4599 = vrot.lane.b32.xlu0 %v4401, 40
        %v4600 = vpop.permute.xlu0 %4599
        %4601 = vrot.lane.b32.xlu0 %v4402, 40
        %v4602 = vpop.permute.xlu0 %4601
        %4603 = vrot.lane.b32.xlu0 %v4403, 40
        %v4604 = vpop.permute.xlu0 %4603
        %4605 = vrot.lane.b32.xlu0 %v4404, 40
        %v4606 = vpop.permute.xlu0 %4605
        %4607 = vrot.lane.b32.xlu0 %v4405, 40
        %v4608 = vpop.permute.xlu0 %4607
        %4609 = vrot.lane.b32.xlu0 %v4406, 40
        %v4610 = vpop.permute.xlu0 %4609
        %4623 = vrot.lane.b32.xlu0 %v4398, 48
        %v4624 = vpop.permute.xlu0 %4623
        %4625 = vrot.lane.b32.xlu0 %v4399, 48
        %v4626 = vpop.permute.xlu0 %4625
        %4627 = vrot.lane.b32.xlu0 %v4400, 48
        %v4628 = vpop.permute.xlu0 %4627
        %4629 = vrot.lane.b32.xlu0 %v4401, 48
        %v4630 = vpop.permute.xlu0 %4629
        %4631 = vrot.lane.b32.xlu0 %v4402, 48
        %v4632 = vpop.permute.xlu0 %4631
        %4633 = vrot.lane.b32.xlu0 %v4403, 48
        %v4634 = vpop.permute.xlu0 %4633
        %4635 = vrot.lane.b32.xlu0 %v4404, 48
        %v4636 = vpop.permute.xlu0 %4635
        %4637 = vrot.lane.b32.xlu0 %v4405, 48
        %v4638 = vpop.permute.xlu0 %4637
        %4639 = vrot.lane.b32.xlu0 %v4407, 48
        %v4640 = vpop.permute.xlu0 %4639
        %4641 = vrot.lane.b32.xlu0 %v4408, 48
        %v4642 = vpop.permute.xlu0 %4641
        %4663 = vrot.lane.b32.xlu0 %v4409, 56
        %v4664 = vpop.permute.xlu0 %4663
        %4665 = vrot.lane.b32.xlu0 %v4410, 56
        %v4666 = vpop.permute.xlu0 %4665
        %4667 = vrot.lane.b32.xlu0 %v4411, 56
        %v4668 = vpop.permute.xlu0 %4667
        %4669 = vrot.lane.b32.xlu0 %v4412, 56
        %v4670 = vpop.permute.xlu0 %4669
        %4671 = vrot.lane.b32.xlu0 %v4413, 56
        %v4672 = vpop.permute.xlu0 %4671
        %4673 = vrot.lane.b32.xlu0 %v4414, 56
        %v4674 = vpop.permute.xlu0 %4673
        %4675 = vrot.lane.b32.xlu0 %v4415, 56
        %v4676 = vpop.permute.xlu0 %4675
        %4677 = vrot.lane.b32.xlu0 %v4416, 56
        %v4678 = vpop.permute.xlu0 %4677
        %4679 = vrot.lane.b32.xlu0 %v4417, 56
        %v4680 = vpop.permute.xlu0 %4679
        %4681 = vrot.lane.b32.xlu0 %v4418, 56
        %v4682 = vpop.permute.xlu0 %4681
        %4703 = vrot.lane.b32.xlu0 %v4419, 64
        %v4704 = vpop.permute.xlu0 %4703
        %4705 = vrot.lane.b32.xlu0 %v4420, 64
        %v4706 = vpop.permute.xlu0 %4705
        %4707 = vrot.lane.b32.xlu0 %v4421, 64
        %v4708 = vpop.permute.xlu0 %4707
        %4709 = vrot.lane.b32.xlu0 %v4422, 64
        %v4710 = vpop.permute.xlu0 %4709
        %4711 = vrot.lane.b32.xlu0 %v4423, 64
        %v4712 = vpop.permute.xlu0 %4711
        %4713 = vrot.lane.b32.xlu0 %v4424, 64
        %v4714 = vpop.permute.xlu0 %4713
        %4715 = vrot.lane.b32.xlu0 %v4425, 64
        %v4716 = vpop.permute.xlu0 %4715
        %4717 = vrot.lane.b32.xlu0 %v4426, 64
        %v4718 = vpop.permute.xlu0 %4717
        %4719 = vrot.lane.b32.xlu0 %v4427, 64
        %v4720 = vpop.permute.xlu0 %4719
        %4721 = vrot.lane.b32.xlu0 %v4428, 64
        %v4722 = vpop.permute.xlu0 %4721
        %v4733 = vsel %vm3564, %v4355, %v4440
        %v4734 = vsel %vm3564, %v4356, %v4442
        %v4735 = vsel %vm3564, %v4357, %v4444
        %v4736 = vsel %vm3564, %v4358, %v4446
        %v4737 = vsel %vm3564, %v4359, %v4448
        %v4738 = vsel %vm3564, %v4360, %v4450
        %v4739 = vsel %vm3564, %v4361, %v4452
        %v4740 = vsel %vm3564, %v4362, %v4454
        %v4741 = vsel %vm3564, %v4363, %v4456
        %v4742 = vsel %vm3564, %v4364, %v4458
        %vm4743 = vcmask 130048
        %v4744 = vsel %vm4743, %v4733, %v4480
        %v4745 = vsel %vm4743, %v4734, %v4482
        %v4746 = vsel %vm4743, %v4735, %v4484
        %v4747 = vsel %vm4743, %v4736, %v4486
        %v4748 = vsel %vm4743, %v4737, %v4488
        %v4749 = vsel %vm4743, %v4738, %v4490
        %v4750 = vsel %vm4743, %v4739, %v4492
        %v4751 = vsel %vm4743, %v4740, %v4494
        %v4752 = vsel %vm4743, %v4741, %v4496
        %v4753 = vsel %vm4743, %v4742, %v4498
        %v4754 = vsel %vm2932, %v4744, %v4512
        %v4755 = vsel %vm2932, %v4745, %v4514
        %v4756 = vsel %vm2932, %v4746, %v4516
        %v4757 = vsel %vm2932, %v4747, %v4518
        %v4758 = vsel %vm2932, %v4748, %v4520
        %v4759 = vsel %vm2932, %v4749, %v4522
        %v4760 = vsel %vm2932, %v4750, %v4524
        %v4761 = vsel %vm2932, %v4751, %v4526
        %v4762 = vsel %vm2932, %v4752, %v4528
        %v4763 = vsel %vm2932, %v4753, %v4530
        %vm4764 = vcmask 261120
        %v4765 = vsel %vm4764, %v4754, %v4552
        %v4766 = vsel %vm4764, %v4755, %v4554
        %v4767 = vsel %vm4764, %v4756, %v4556
        %v4768 = vsel %vm4764, %v4757, %v4558
        %v4769 = vsel %vm4764, %v4758, %v4560
        %v4770 = vsel %vm4764, %v4759, %v4562
        %v4771 = vsel %vm4764, %v4760, %v4564
        %v4772 = vsel %vm4764, %v4761, %v4566
        %v4773 = vsel %vm4764, %v4762, %v4568
        %v4774 = vsel %vm4764, %v4763, %v4570
        %vm4775 = vcmask 326656
        %v4776 = vsel %vm4775, %v4765, %v4592
        %v4777 = vsel %vm4775, %v4766, %v4594
        %v4778 = vsel %vm4775, %v4767, %v4596
        %v4779 = vsel %vm4775, %v4768, %v4598
        %v4780 = vsel %vm4775, %v4769, %v4600
        %v4781 = vsel %vm4775, %v4770, %v4602
        %v4782 = vsel %vm4775, %v4771, %v4604
        %v4783 = vsel %vm4775, %v4772, %v4606
        %v4784 = vsel %vm4775, %v4773, %v4608
        %v4785 = vsel %vm4775, %v4774, %v4610
        %vm4786 = vcmask 392192
        %v4787 = vsel %vm4786, %v4776, %v4624
        %v4788 = vsel %vm4786, %v4777, %v4626
        %v4789 = vsel %vm4786, %v4778, %v4628
        %v4790 = vsel %vm4786, %v4779, %v4630
        %v4791 = vsel %vm4786, %v4780, %v4632
        %v4792 = vsel %vm4786, %v4781, %v4634
        %v4793 = vsel %vm4786, %v4782, %v4636
        %v4794 = vsel %vm4786, %v4783, %v4638
        %v4795 = vsel %vm4786, %v4784, %v4640
        %v4796 = vsel %vm4786, %v4785, %v4642
        %vm4797 = vcmask 457728
        %v4798 = vsel %vm4797, %v4787, %v4664
        %v4799 = vsel %vm4797, %v4788, %v4666
        %v4800 = vsel %vm4797, %v4789, %v4668
        %v4801 = vsel %vm4797, %v4790, %v4670
        %v4802 = vsel %vm4797, %v4791, %v4672
        %v4803 = vsel %vm4797, %v4792, %v4674
        %v4804 = vsel %vm4797, %v4793, %v4676
        %v4805 = vsel %vm4797, %v4794, %v4678
        %v4806 = vsel %vm4797, %v4795, %v4680
        %v4807 = vsel %vm4797, %v4796, %v4682
        %vm4808 = vcmask 523264
        %v4809 = vsel %vm4808, %v4798, %v4704
        %v4810 = vsel %vm4808, %v4799, %v4706
        %v4811 = vsel %vm4808, %v4800, %v4708
        %v4812 = vsel %vm4808, %v4801, %v4710
        %v4813 = vsel %vm4808, %v4802, %v4712
        %v4814 = vsel %vm4808, %v4803, %v4714
        %v4815 = vsel %vm4808, %v4804, %v4716
        %v4816 = vsel %vm4808, %v4805, %v4718
        %v4817 = vsel %vm4808, %v4806, %v4720
        %v4818 = vsel %vm4808, %v4807, %v4722
        %v4819 = vld [vmem:[%s4] sm:$0xff]
        %v4820 = vld [vmem:[%s4 + $0x8] sm:$0xff]
        %v4821 = vld [vmem:[%s4 + $0x10] sm:$0xff]
        %v4822 = vld [vmem:[%s4 + $0x18] sm:$0xff]
        %v4823 = vld [vmem:[%s4 + $0x20] sm:$0xff]
        %v4824 = vld [vmem:[%s4 + $0x28] sm:$0xff]
        %v4825 = vld [vmem:[%s4 + $0x30] sm:$0xff]
        %v4826 = vld [vmem:[%s4 + $0x38] sm:$0xff]
        %v4827 = vld [vmem:[%s4 + $0x40] sm:$0xff]
        %v4828 = vld [vmem:[%s5] sm:$0x1]
        %v4830 = vlaneseq
        %v4831 = vshrl.u32 %v4830, 7
        %v4832 = vsub.s32 0, %v4831
        %v4833 = vrot.slane %v4828, %v4832
        %vm4835 = vcmask 588800
        %v4837 = vsel %vm4835, %v4809, 0
        %v4840 = vsel %vm4835, %v4810, 0
        %v4843 = vsel %vm4835, %v4811, 0
        %v4846 = vsel %vm4835, %v4812, 0
        %v4849 = vsel %vm4835, %v4813, 0
        %v4852 = vsel %vm4835, %v4814, 0
        %v4855 = vsel %vm4835, %v4815, 0
        %v4858 = vsel %vm4835, %v4816, 0
        %v4861 = vsel %vm4835, %v4817, 0
        %v4864 = vsel %vm4835, %v4818, 0
        %4866 = vmatprep.subr.mxu0 0.0
        %4867 = vmatpush1.msra.mxu0 %v4819
        %4868 = vmatprep.subr.mxu0 0.0
        %4869 = vmatpush1.msra.mxu0 %v4820
        %4870 = vmatprep.subr.mxu0 0.0
        %4871 = vmatpush1.msra.mxu0 %v4821
        %4872 = vmatprep.subr.mxu0 0.0
        %4873 = vmatpush1.msra.mxu0 %v4822
        %4874 = vmatprep.subr.mxu0 0.0
        %4875 = vmatpush1.msra.mxu0 %v4823
        %4876 = vmatprep.subr.mxu0 0.0
        %4877 = vmatpush1.msra.mxu0 %v4824
        %4878 = vmatprep.subr.mxu0 0.0
        %4879 = vmatpush1.msra.mxu0 %v4825
        %4880 = vmatprep.subr.mxu0 0.0
        %4881 = vmatpush1.msra.mxu0 %v4826
        %4882 = vmatprep.subr.mxu0 0.0
        %4883 = vmatpush1.msra.mxu0 %v4827
        %4884 = vmatprep.subr.mxu0 0.0
        %4885 = vmatpush1.msra.mxu0 0.0
        %4886 = vmatprep.subr.mxu0 0.0
        %4887 = vmatpush1.msra.mxu0 0.0
        %4888 = vmatprep.subr.mxu0 0.0
        %4889 = vmatpush1.msra.mxu0 0.0
        %4890 = vmatprep.subr.mxu0 0.0
        %4891 = vmatpush1.msra.mxu0 0.0
        %4892 = vmatprep.subr.mxu0 0.0
        %4893 = vmatpush1.msra.mxu0 0.0
        %4894 = vmatprep.subr.mxu0 0.0
        %4895 = vmatpush1.msra.mxu0 0.0
        %4896 = vmatprep.subr.mxu0 0.0
        %4897 = vmatpush1.msra.mxu0 0.0
        %4898 = vmatprep.subr.mxu0 0.0
        %4899 = vmatpush1.msra.mxu0 0.0
        %4900 = vmatprep.subr.mxu0 0.0
        %4901 = vmatpush1.msra.mxu0 0.0
        %4902 = vmatprep.subr.mxu0 0.0
        %4903 = vmatpush1.msra.mxu0 0.0
        %4904 = vmatprep.subr.mxu0 0.0
        %4905 = vmatpush1.msra.mxu0 0.0
        %4906 = vmatprep.subr.mxu0 0.0
        %4907 = vmatpush1.msra.mxu0 0.0
        %4908 = vmatprep.subr.mxu0 0.0
        %4909 = vmatpush1.msra.mxu0 0.0
        %4910 = vmatprep.subr.mxu0 0.0
        %4911 = vmatpush1.msra.mxu0 0.0
        %4912 = vmatprep.subr.mxu0 0.0
        %4913 = vmatpush1.msra.mxu0 0.0
        %4914 = vmatprep.subr.mxu0 0.0
        %4915 = vmatpush1.msra.mxu0 0.0
        %4916 = vmatprep.subr.mxu0 0.0
        %4917 = vmatpush1.msra.mxu0 0.0
        %4918 = vmatprep.subr.mxu0 0.0
        %4919 = vmatpush1.msra.mxu0 0.0
        %4920 = vmatprep.subr.mxu0 0.0
        %4921 = vmatpush1.msra.mxu0 0.0
        %4922 = vmatprep.subr.mxu0 0.0
        %4923 = vmatpush1.msra.mxu0 0.0
        %4924 = vmatprep.subr.mxu0 0.0
        %4925 = vmatpush1.msra.mxu0 0.0
        %4926 = vmatprep.subr.mxu0 0.0
        %4927 = vmatpush1.msra.mxu0 0.0
        %4928 = vmatprep.subr.mxu0 0.0
        %4929 = vmatpush1.msra.mxu0 0.0
        %4930 = vmatprep.mubr.f32.mxu0 0.0
        %4931 = vmatmul.mubr.f32.gmra.mrb[0].mxu0 %v4837
        %v4932 = vpop.f32.mrb[0].mxu0
        %v4933 = vadd.f32 %v4833, %v4932
        %v4934 = vpop.f32.mrb[0].mxu0
        %4935 = vmatprep.mubr.f32.mxu0 0.0
        %4936 = vmatmul.mubr.f32.gmra.mrb[0].mxu0 %v4840
        %v4937 = vpop.f32.mrb[0].mxu0
        %v4938 = vadd.f32 %v4833, %v4937
        %v4939 = vpop.f32.mrb[0].mxu0
        %4940 = vmatprep.mubr.f32.mxu0 0.0
        %4941 = vmatmul.mubr.f32.gmra.mrb[0].mxu0 %v4843
        %v4942 = vpop.f32.mrb[0].mxu0
        %v4943 = vadd.f32 %v4833, %v4942
        %v4944 = vpop.f32.mrb[0].mxu0
        %4945 = vmatprep.mubr.f32.mxu0 0.0
        %4946 = vmatmul.mubr.f32.gmra.mrb[0].mxu0 %v4846
        %v4947 = vpop.f32.mrb[0].mxu0
        %v4948 = vadd.f32 %v4833, %v4947
        %v4949 = vpop.f32.mrb[0].mxu0
        %4950 = vmatprep.mubr.f32.mxu0 0.0
        %4951 = vmatmul.mubr.f32.gmra.mrb[0].mxu0 %v4849
        %v4952 = vpop.f32.mrb[0].mxu0
        %v4953 = vadd.f32 %v4833, %v4952
        %v4954 = vpop.f32.mrb[0].mxu0
        %4955 = vmatprep.mubr.f32.mxu0 0.0
        %4956 = vmatmul.mubr.f32.gmra.mrb[0].mxu0 %v4852
        %v4957 = vpop.f32.mrb[0].mxu0
        %v4958 = vadd.f32 %v4833, %v4957
        %v4959 = vpop.f32.mrb[0].mxu0
        %4960 = vmatprep.mubr.f32.mxu0 0.0
        %4961 = vmatmul.mubr.f32.gmra.mrb[0].mxu0 %v4855
        %v4962 = vpop.f32.mrb[0].mxu0
        %v4963 = vadd.f32 %v4833, %v4962
        %v4964 = vpop.f32.mrb[0].mxu0
        %4965 = vmatprep.mubr.f32.mxu0 0.0
        %4966 = vmatmul.mubr.f32.gmra.mrb[0].mxu0 %v4858
        %v4967 = vpop.f32.mrb[0].mxu0
        %v4968 = vadd.f32 %v4833, %v4967
        %v4969 = vpop.f32.mrb[0].mxu0
        %4970 = vmatprep.mubr.f32.mxu0 0.0
        %4971 = vmatmul.mubr.f32.gmra.mrb[0].mxu0 %v4861
        %v4972 = vpop.f32.mrb[0].mxu0
        %v4973 = vadd.f32 %v4833, %v4972
        %v4974 = vpop.f32.mrb[0].mxu0
        %4975 = vmatprep.mubr.f32.mxu0 0.0
        %4976 = vmatmul.mubr.f32.gmra.mrb[0].mxu0 %v4864
        %v4977 = vpop.f32.mrb[0].mxu0
        %v4978 = vadd.f32 %v4833, %v4977
        %v4979 = vpop.f32.mrb[0].mxu0
        %4980 = vdwg.mxu0
        %v4981 = vmax.f32 %v4933, 0.0
        %v4982 = vmax.f32 %v4938, 0.0
        %v4983 = vmax.f32 %v4943, 0.0
        %v4984 = vmax.f32 %v4948, 0.0
        %v4985 = vmax.f32 %v4953, 0.0
        %v4986 = vmax.f32 %v4958, 0.0
        %v4987 = vmax.f32 %v4963, 0.0
        %v4988 = vmax.f32 %v4968, 0.0
        %v4989 = vmax.f32 %v4973, 0.0
        %v4990 = vmax.f32 %v4978, 0.0
        %4991 = vst.msk [vmem:[#allocation4] sm:$0xff] %vm4743, %v4981
        %4992 = vst.msk [vmem:[#allocation4 + $0x8] sm:$0xff] %vm4743, %v4982
        %4993 = vst.msk [vmem:[#allocation4 + $0x10] sm:$0xff] %vm4743, %v4983
        %4994 = vst.msk [vmem:[#allocation4 + $0x18] sm:$0xff] %vm4743, %v4984
        %4995 = vst.msk [vmem:[#allocation4 + $0x20] sm:$0xff] %vm4743, %v4985
        %4996 = vst.msk [vmem:[#allocation4 + $0x28] sm:$0xff] %vm4743, %v4986
        %4997 = vst.msk [vmem:[#allocation4 + $0x30] sm:$0xff] %vm4743, %v4987
        %4998 = vst.msk [vmem:[#allocation4 + $0x38] sm:$0xff] %vm4743, %v4988
        %4999 = vst.msk [vmem:[#allocation4 + $0x40] sm:$0xff] %vm4743, %v4989
        %vm5000 = vcmask 128000
        %5001 = vst.msk [vmem:[#allocation4 + $0x48] sm:$0x3f] %vm5000, %v4990
        %v5002 = vld [vmem:[#allocation4] sm:$0xff]
        %v5003 = vld [vmem:[#allocation4 + $0x8] sm:$0xff]
        %v5004 = vld [vmem:[#allocation4 + $0x10] sm:$0xff]
        %v5005 = vld [vmem:[#allocation4 + $0x18] sm:$0xff]
        %v5006 = vld [vmem:[#allocation4 + $0x20] sm:$0xff]
        %v5007 = vld [vmem:[#allocation4 + $0x28] sm:$0xff]
        %v5008 = vld [vmem:[#allocation4 + $0x30] sm:$0xff]
        %v5009 = vld [vmem:[#allocation4 + $0x38] sm:$0xff]
        %v5010 = vld [vmem:[#allocation4 + $0x40] sm:$0x7]
        %v5011 = vld [vmem:[#allocation4 + $0x1] sm:$0xff]
        %v5012 = vld [vmem:[#allocation4 + $0x9] sm:$0xff]
        %v5013 = vld [vmem:[#allocation4 + $0x11] sm:$0xff]
        %v5014 = vld [vmem:[#allocation4 + $0x19] sm:$0xff]
        %v5015 = vld [vmem:[#allocation4 + $0x21] sm:$0xff]
        %v5016 = vld [vmem:[#allocation4 + $0x29] sm:$0xff]
        %v5017 = vld [vmem:[#allocation4 + $0x31] sm:$0xff]
        %v5018 = vld [vmem:[#allocation4 + $0x39] sm:$0xff]
        %v5019 = vld [vmem:[#allocation4 + $0x41] sm:$0x7]
        %v5020 = vmax.f32 %v5002, %v5011
        %v5021 = vmax.f32 %v5003, %v5012
        %v5022 = vmax.f32 %v5004, %v5013
        %v5023 = vmax.f32 %v5005, %v5014
        %v5024 = vmax.f32 %v5006, %v5015
        %v5025 = vmax.f32 %v5007, %v5016
        %v5026 = vmax.f32 %v5008, %v5017
        %v5027 = vmax.f32 %v5009, %v5018
        %v5028 = vmax.f32 %v5010, %v5019
        %v5029 = vld [vmem:[#allocation4 + $0xa] sm:$0xff]
        %v5030 = vld [vmem:[#allocation4 + $0x12] sm:$0xff]
        %v5031 = vld [vmem:[#allocation4 + $0x1a] sm:$0xff]
        %v5032 = vld [vmem:[#allocation4 + $0x22] sm:$0xff]
        %v5033 = vld [vmem:[#allocation4 + $0x2a] sm:$0xff]
        %v5034 = vld [vmem:[#allocation4 + $0x32] sm:$0xff]
        %v5035 = vld [vmem:[#allocation4 + $0x3a] sm:$0xff]
        %v5036 = vld [vmem:[#allocation4 + $0x42] sm:$0xff]
        %v5037 = vld [vmem:[#allocation4 + $0x4a] sm:$0x7]
        %v5038 = vld [vmem:[#allocation4 + $0xb] sm:$0xff]
        %v5039 = vld [vmem:[#allocation4 + $0x13] sm:$0xff]
        %v5040 = vld [vmem:[#allocation4 + $0x1b] sm:$0xff]
        %v5041 = vld [vmem:[#allocation4 + $0x23] sm:$0xff]
        %v5042 = vld [vmem:[#allocation4 + $0x2b] sm:$0xff]
        %v5043 = vld [vmem:[#allocation4 + $0x33] sm:$0xff]
        %v5044 = vld [vmem:[#allocation4 + $0x3b] sm:$0xff]
        %v5045 = vld [vmem:[#allocation4 + $0x43] sm:$0xff]
        %v5046 = vld [vmem:[#allocation4 + $0x4b] sm:$0x7]
        %v5047 = vmax.f32 %v5029, %v5038
        %v5048 = vmax.f32 %v5030, %v5039
        %v5049 = vmax.f32 %v5031, %v5040
        %v5050 = vmax.f32 %v5032, %v5041
        %v5051 = vmax.f32 %v5033, %v5042
        %v5052 = vmax.f32 %v5034, %v5043
        %v5053 = vmax.f32 %v5035, %v5044
        %v5054 = vmax.f32 %v5036, %v5045
        %v5055 = vmax.f32 %v5037, %v5046
        %v5056 = vmax.f32 %v5020, %v5047
        %v5057 = vmax.f32 %v5021, %v5048
        %v5058 = vmax.f32 %v5022, %v5049
        %v5059 = vmax.f32 %v5023, %v5050
        %v5060 = vmax.f32 %v5024, %v5051
        %v5061 = vmax.f32 %v5025, %v5052
        %v5062 = vmax.f32 %v5026, %v5053
        %v5063 = vmax.f32 %v5027, %v5054
        %v5064 = vmax.f32 %v5028, %v5055
        %v5065 = vld [vmem:[%s6] sm:$0xff]
        %v5066 = vld [vmem:[%s6 + $0x8] sm:$0xff]
        %vm5067 = vcmask 547840
        %v5069 = vsel %vm5067, %v5065, 0
        %v5072 = vsel %vm5067, %v5066, 0
        %v5075 = vsel %vm3165, %v5064, 0
        %5077 = vmatprep.subr.mxu0 0.0
        %5078 = vmatpush1.msra.mxu0 %v5056
        %5079 = vmatprep.subr.mxu0 0.0
        %5080 = vmatpush1.msra.mxu0 %v5057
        %5081 = vmatprep.subr.mxu0 0.0
        %5082 = vmatpush1.msra.mxu0 %v5058
        %5083 = vmatprep.subr.mxu0 0.0
        %5084 = vmatpush1.msra.mxu0 %v5059
        %5085 = vmatprep.subr.mxu0 0.0
        %5086 = vmatpush1.msra.mxu0 %v5060
        %5087 = vmatprep.subr.mxu0 0.0
        %5088 = vmatpush1.msra.mxu0 %v5061
        %5089 = vmatprep.subr.mxu0 0.0
        %5090 = vmatpush1.msra.mxu0 %v5062
        %5091 = vmatprep.subr.mxu0 0.0
        %5092 = vmatpush1.msra.mxu0 %v5063
        %5093 = vmatprep.subr.mxu0 0.0
        %5094 = vmatpush1.msra.mxu0 %v5075
        %5095 = vmatprep.subr.mxu0 0.0
        %5096 = vmatpush1.msra.mxu0 0.0
        %5097 = vmatprep.subr.mxu0 0.0
        %5098 = vmatpush1.msra.mxu0 0.0
        %5099 = vmatprep.subr.mxu0 0.0
        %5100 = vmatpush1.msra.mxu0 0.0
        %5101 = vmatprep.subr.mxu0 0.0
        %5102 = vmatpush1.msra.mxu0 0.0
        %5103 = vmatprep.subr.mxu0 0.0
        %5104 = vmatpush1.msra.mxu0 0.0
        %5105 = vmatprep.subr.mxu0 0.0
        %5106 = vmatpush1.msra.mxu0 0.0
        %5107 = vmatprep.subr.mxu0 0.0
        %5108 = vmatpush1.msra.mxu0 0.0
        %5109 = vmatprep.subr.mxu0 0.0
        %5110 = vmatpush1.msra.mxu0 0.0
        %5111 = vmatprep.subr.mxu0 0.0
        %5112 = vmatpush1.msra.mxu0 0.0
        %5113 = vmatprep.subr.mxu0 0.0
        %5114 = vmatpush1.msra.mxu0 0.0
        %5115 = vmatprep.subr.mxu0 0.0
        %5116 = vmatpush1.msra.mxu0 0.0
        %5117 = vmatprep.subr.mxu0 0.0
        %5118 = vmatpush1.msra.mxu0 0.0
        %5119 = vmatprep.subr.mxu0 0.0
        %5120 = vmatpush1.msra.mxu0 0.0
        %5121 = vmatprep.subr.mxu0 0.0
        %5122 = vmatpush1.msra.mxu0 0.0
        %5123 = vmatprep.subr.mxu0 0.0
        %5124 = vmatpush1.msra.mxu0 0.0
        %5125 = vmatprep.subr.mxu0 0.0
        %5126 = vmatpush1.msra.mxu0 0.0
        %5127 = vmatprep.subr.mxu0 0.0
        %5128 = vmatpush1.msra.mxu0 0.0
        %5129 = vmatprep.subr.mxu0 0.0
        %5130 = vmatpush1.msra.mxu0 0.0
        %5131 = vmatprep.subr.mxu0 0.0
        %5132 = vmatpush1.msra.mxu0 0.0
        %5133 = vmatprep.subr.mxu0 0.0
        %5134 = vmatpush1.msra.mxu0 0.0
        %5135 = vmatprep.subr.mxu0 0.0
        %5136 = vmatpush1.msra.mxu0 0.0
        %5137 = vmatprep.subr.mxu0 0.0
        %5138 = vmatpush1.msra.mxu0 0.0
        %5139 = vmatprep.subr.mxu0 0.0
        %5140 = vmatpush1.msra.mxu0 0.0
        %5141 = vmatprep.mubr.f32.mxu0 0.0
        %5142 = vmatmul.mubr.f32.gmra.mrb[0].mxu0 %v5069
        %v5143 = vpop.f32.mrb[0].mxu0
        %v5144 = vadd.f32 0.0, %v5143
        %v5145 = vpop.f32.mrb[0].mxu0
        %5146 = vmatprep.mubr.f32.mxu0 0.0
        %5147 = vmatmul.mubr.f32.gmra.mrb[0].mxu0 %v5072
        %v5148 = vpop.f32.mrb[0].mxu0
        %v5149 = vadd.f32 0.0, %v5148
        %v5150 = vpop.f32.mrb[0].mxu0
        %5151 = vdwg.mxu0
        %5152 = vst.msk [vmem:[#allocation5] sm:$0xff] %vm4743, %v5144
        %5153 = vst.msk [vmem:[#allocation5 + $0x8] sm:$0xff] %vm4743, %v5149
        %v5154 = vld [vmem:[#allocation5] sm:$0x3f]
        %v5155 = vld [vmem:[#allocation5 + $0x1] sm:$0x3f]
        %v5156 = vld [vmem:[#allocation5 + $0x2] sm:$0x3f]
        %v5157 = vld [vmem:[#allocation5 + $0x4] sm:$0x3f]
        %v5158 = vld [vmem:[#allocation5 + $0x5] sm:$0x3f]
        %v5159 = vld [vmem:[#allocation5 + $0x6] sm:$0x3f]
        %v5160 = vld [vmem:[#allocation5 + $0x8] sm:$0x3f]
        %v5161 = vld [vmem:[#allocation5 + $0x9] sm:$0x3f]
        %v5162 = vld [vmem:[#allocation5 + $0xa] sm:$0x3f]
        %5164 = vrot.lane.b32.xlu0 %v5155, 16
        %v5165 = vpop.permute.xlu0 %5164
        %5168 = vrot.lane.b32.xlu0 %v5156, 32
        %v5169 = vpop.permute.xlu0 %5168
        %5172 = vrot.lane.b32.xlu0 %v5157, 48
        %v5173 = vpop.permute.xlu0 %5172
        %5176 = vrot.lane.b32.xlu0 %v5158, 64
        %v5177 = vpop.permute.xlu0 %5176
        %5180 = vrot.lane.b32.xlu0 %v5159, 80
        %v5181 = vpop.permute.xlu0 %5180
        %5184 = vrot.lane.b32.xlu0 %v5160, 96
        %v5185 = vpop.permute.xlu0 %5184
        %5188 = vrot.lane.b32.xlu0 %v5161, 112
        %v5189 = vpop.permute.xlu0 %5188
        %v5191 = vsel %vm4743, %v5154, %v5165
        %v5192 = vsel %vm4764, %v5191, %v5169
        %v5193 = vsel %vm4786, %v5192, %v5173
        %v5194 = vsel %vm4808, %v5193, %v5177
        %vm5195 = vcmask 654336
        %v5196 = vsel %vm5195, %v5194, %v5181
        %vm5197 = vcmask 785408
        %v5198 = vsel %vm5197, %v5196, %v5185
        %vm5199 = vcmask 916480
        %v5200 = vsel %vm5199, %v5198, %v5189
        %v5201 = vld [vmem:[%s7] sm:$0xff]
        %v5202 = vld [vmem:[%s7 + $0x8] sm:$0xff]
        %v5203 = vld [vmem:[%s7 + $0x10] sm:$0xff]
        %v5204 = vld [vmem:[%s7 + $0x18] sm:$0xff]
        %v5205 = vld [vmem:[%s7 + $0x20] sm:$0xff]
        %v5206 = vld [vmem:[%s7 + $0x28] sm:$0xff]
        %v5207 = vld [vmem:[%s7 + $0x30] sm:$0xff]
        %v5208 = vld [vmem:[%s7 + $0x38] sm:$0xff]
        %v5209 = vld [vmem:[%s7 + $0x40] sm:$0xff]
        %v5210 = vld [vmem:[%s7 + $0x48] sm:$0xff]
        %v5211 = vld [vmem:[%s7 + $0x50] sm:$0xff]
        %v5212 = vld [vmem:[%s7 + $0x58] sm:$0xff]
        %v5213 = vld [vmem:[%s7 + $0x60] sm:$0xff]
        %v5214 = vld [vmem:[%s7 + $0x68] sm:$0xff]
        %v5215 = vld [vmem:[%s7 + $0x70] sm:$0xff]
        %v5216 = vld [vmem:[%s7 + $0x78] sm:$0xff]
        %v5217 = vld [vmem:[%s7 + $0x80] sm:$0xff]
        %v5218 = vld [vmem:[%s7 + $0x88] sm:$0xff]
        %v5219 = vld [vmem:[%s8] sm:$0x1]
        %v5221 = vlaneseq
        %v5222 = vshrl.u32 %v5221, 7
        %v5223 = vsub.s32 0, %v5222
        %v5224 = vrot.slane %v5219, %v5223
        %v5227 = vsel %vm4743, %v5162, 0
        %5229 = vmatprep.subr.mxu0 0.0
        %5230 = vmatpush1.msra.mxu0 %v5201
        %5231 = vmatprep.subr.mxu0 0.0
        %5232 = vmatpush1.msra.mxu0 %v5202
        %5233 = vmatprep.subr.mxu0 0.0
        %5234 = vmatpush1.msra.mxu0 %v5203
        %5235 = vmatprep.subr.mxu0 0.0
        %5236 = vmatpush1.msra.mxu0 %v5204
        %5237 = vmatprep.subr.mxu0 0.0
        %5238 = vmatpush1.msra.mxu0 %v5205
        %5239 = vmatprep.subr.mxu0 0.0
        %5240 = vmatpush1.msra.mxu0 %v5206
        %5241 = vmatprep.subr.mxu0 0.0
        %5242 = vmatpush1.msra.mxu0 %v5207
        %5243 = vmatprep.subr.mxu0 0.0
        %5244 = vmatpush1.msra.mxu0 %v5208
        %5245 = vmatprep.subr.mxu0 0.0
        %5246 = vmatpush1.msra.mxu0 %v5209
        %5247 = vmatprep.subr.mxu0 0.0
        %5248 = vmatpush1.msra.mxu0 %v5210
        %5249 = vmatprep.subr.mxu0 0.0
        %5250 = vmatpush1.msra.mxu0 %v5211
        %5251 = vmatprep.subr.mxu0 0.0
        %5252 = vmatpush1.msra.mxu0 %v5212
        %5253 = vmatprep.subr.mxu0 0.0
        %5254 = vmatpush1.msra.mxu0 %v5213
        %5255 = vmatprep.subr.mxu0 0.0
        %5256 = vmatpush1.msra.mxu0 %v5214
        %5257 = vmatprep.subr.mxu0 0.0
        %5258 = vmatpush1.msra.mxu0 %v5215
        %5259 = vmatprep.subr.mxu0 0.0
        %5260 = vmatpush1.msra.mxu0 %v5216
        %5261 = vmatprep.subr.mxu0 0.0
        %5262 = vmatpush1.msra.mxu0 %v5217
        %5263 = vmatprep.subr.mxu0 0.0
        %5264 = vmatpush1.msra.mxu0 %v5218
        %5265 = vmatprep.subr.mxu0 0.0
        %5266 = vmatpush1.msra.mxu0 0.0
        %5267 = vmatprep.subr.mxu0 0.0
        %5268 = vmatpush1.msra.mxu0 0.0
        %5269 = vmatprep.subr.mxu0 0.0
        %5270 = vmatpush1.msra.mxu0 0.0
        %5271 = vmatprep.subr.mxu0 0.0
        %5272 = vmatpush1.msra.mxu0 0.0
        %5273 = vmatprep.subr.mxu0 0.0
        %5274 = vmatpush1.msra.mxu0 0.0
        %5275 = vmatprep.subr.mxu0 0.0
        %5276 = vmatpush1.msra.mxu0 0.0
        %5277 = vmatprep.subr.mxu0 0.0
        %5278 = vmatpush1.msra.mxu0 0.0
        %5279 = vmatprep.subr.mxu0 0.0
        %5280 = vmatpush1.msra.mxu0 0.0
        %5281 = vmatprep.subr.mxu0 0.0
        %5282 = vmatpush1.msra.mxu0 0.0
        %5283 = vmatprep.subr.mxu0 0.0
        %5284 = vmatpush1.msra.mxu0 0.0
        %5285 = vmatprep.subr.mxu0 0.0
        %5286 = vmatpush1.msra.mxu0 0.0
        %5287 = vmatprep.subr.mxu0 0.0
        %5288 = vmatpush1.msra.mxu0 0.0
        %5289 = vmatprep.subr.mxu0 0.0
        %5290 = vmatpush1.msra.mxu0 0.0
        %5291 = vmatprep.subr.mxu0 0.0
        %5292 = vmatpush1.msra.mxu0 0.0
        %5293 = vmatprep.mubr.f32.mxu0 %v5227
        %5294 = vmatmul.mubr.f32.gmra.mrb[0].mxu0 %v5200
        %v5295 = vpop.f32.mrb[0].mxu0
        %v5296 = vadd.f32 %v5224, %v5295
        %v5297 = vpop.f32.mrb[0].mxu0
        %5298 = vdwg.mxu0
        %v5299 = vmax.f32 %v5296, 0.0
        %5300 = vst.msk [vmem:[#allocation6] sm:$0x3f] %vm5000, %v5299
        %v5301 = vld [vmem:[#allocation6] sm:$0x1]
        %v5302 = vld [vmem:[#allocation6 + $0x1] sm:$0x1]
        %v5303 = vld [vmem:[#allocation6 + $0x4] sm:$0x1]
        %v5304 = vld [vmem:[#allocation6 + $0x5] sm:$0x1]
        %5306 = vrot.lane.b32.xlu0 %v5302, 16
        %v5307 = vpop.permute.xlu0 %5306
        %5310 = vrot.lane.b32.xlu0 %v5303, 32
        %v5311 = vpop.permute.xlu0 %5310
        %5314 = vrot.lane.b32.xlu0 %v5304, 48
        %v5315 = vpop.permute.xlu0 %5314
        %v5317 = vsel %vm4743, %v5301, %v5307
        %v5318 = vsel %vm4764, %v5317, %v5311
        %v5319 = vsel %vm4786, %v5318, %v5315
        %v5320 = vld [vmem:[%s9] sm:$0xff]
        %v5321 = vld [vmem:[%s9 + $0x8] sm:$0xff]
        %v5322 = vld [vmem:[%s9 + $0x10] sm:$0xff]
        %v5323 = vld [vmem:[%s9 + $0x18] sm:$0xff]
        %v5324 = vld [vmem:[%s9 + $0x20] sm:$0xff]
        %v5325 = vld [vmem:[%s9 + $0x28] sm:$0xff]
        %v5326 = vld [vmem:[%s9 + $0x30] sm:$0xff]
        %v5327 = vld [vmem:[%s9 + $0x38] sm:$0xff]
        %v5328 = vld [vmem:[%s10] sm:$0x1]
        %v5330 = vsel %vm4808, %v5319, 0
        %5332 = vmatprep.subr.mxu0 0.0
        %5333 = vmatpush1.msra.mxu0 %v5320
        %5334 = vmatprep.subr.mxu0 0.0
        %5335 = vmatpush1.msra.mxu0 %v5321
        %5336 = vmatprep.subr.mxu0 0.0
        %5337 = vmatpush1.msra.mxu0 %v5322
        %5338 = vmatprep.subr.mxu0 0.0
        %5339 = vmatpush1.msra.mxu0 %v5323
        %5340 = vmatprep.subr.mxu0 0.0
        %5341 = vmatpush1.msra.mxu0 %v5324
        %5342 = vmatprep.subr.mxu0 0.0
        %5343 = vmatpush1.msra.mxu0 %v5325
        %5344 = vmatprep.subr.mxu0 0.0
        %5345 = vmatpush1.msra.mxu0 %v5326
        %5346 = vmatprep.subr.mxu0 0.0
        %5347 = vmatpush1.msra.mxu0 %v5327
        %5348 = vmatprep.subr.mxu0 0.0
        %5349 = vmatpush1.msra.mxu0 0.0
        %5350 = vmatprep.subr.mxu0 0.0
        %5351 = vmatpush1.msra.mxu0 0.0
        %5352 = vmatprep.subr.mxu0 0.0
        %5353 = vmatpush1.msra.mxu0 0.0
        %5354 = vmatprep.subr.mxu0 0.0
        %5355 = vmatpush1.msra.mxu0 0.0
        %5356 = vmatprep.subr.mxu0 0.0
        %5357 = vmatpush1.msra.mxu0 0.0
        %5358 = vmatprep.subr.mxu0 0.0
        %5359 = vmatpush1.msra.mxu0 0.0
        %5360 = vmatprep.subr.mxu0 0.0
        %5361 = vmatpush1.msra.mxu0 0.0
        %5362 = vmatprep.subr.mxu0 0.0
        %5363 = vmatpush1.msra.mxu0 0.0
        %5364 = vmatprep.subr.mxu0 0.0
        %5365 = vmatpush1.msra.mxu0 0.0
        %5366 = vmatprep.subr.mxu0 0.0
        %5367 = vmatpush1.msra.mxu0 0.0
        %5368 = vmatprep.subr.mxu0 0.0
        %5369 = vmatpush1.msra.mxu0 0.0
        %5370 = vmatprep.subr.mxu0 0.0
        %5371 = vmatpush1.msra.mxu0 0.0
        %5372 = vmatprep.subr.mxu0 0.0
        %5373 = vmatpush1.msra.mxu0 0.0
        %5374 = vmatprep.subr.mxu0 0.0
        %5375 = vmatpush1.msra.mxu0 0.0
        %5376 = vmatprep.subr.mxu0 0.0
        %5377 = vmatpush1.msra.mxu0 0.0
        %5378 = vmatprep.subr.mxu0 0.0
        %5379 = vmatpush1.msra.mxu0 0.0
        %5380 = vmatprep.subr.mxu0 0.0
        %5381 = vmatpush1.msra.mxu0 0.0
        %5382 = vmatprep.subr.mxu0 0.0
        %5383 = vmatpush1.msra.mxu0 0.0
        %5384 = vmatprep.subr.mxu0 0.0
        %5385 = vmatpush1.msra.mxu0 0.0
        %5386 = vmatprep.subr.mxu0 0.0
        %5387 = vmatpush1.msra.mxu0 0.0
        %5388 = vmatprep.subr.mxu0 0.0
        %5389 = vmatpush1.msra.mxu0 0.0
        %5390 = vmatprep.subr.mxu0 0.0
        %5391 = vmatpush1.msra.mxu0 0.0
        %5392 = vmatprep.subr.mxu0 0.0
        %5393 = vmatpush1.msra.mxu0 0.0
        %5394 = vmatprep.subr.mxu0 0.0
        %5395 = vmatpush1.msra.mxu0 0.0
        %5396 = vmatprep.mubr.f32.mxu0 0.0
        %5397 = vmatmul.mubr.f32.gmra.mrb[0].mxu0 %v5330
        %v5398 = vpop.f32.mrb[0].mxu0
        %v5399 = vadd.f32 %v5328, %v5398
        %v5400 = vpop.f32.mrb[0].mxu0
        %5401 = vdwg.mxu0
        %v5402 = vmax.f32 %v5399, 0.0
        %v5403 = vld [vmem:[%s11] sm:$0xff]
        %v5404 = vld [vmem:[%s11 + $0x8] sm:$0xff]
        %v5405 = vld [vmem:[%s11 + $0x10] sm:$0xff]
        %v5406 = vld [vmem:[%s11 + $0x18] sm:$0xff]
        %v5407 = vld [vmem:[%s11 + $0x20] sm:$0xff]
        %v5408 = vld [vmem:[%s11 + $0x28] sm:$0xff]
        %v5409 = vld [vmem:[%s11 + $0x30] sm:$0xff]
        %v5410 = vld [vmem:[%s11 + $0x38] sm:$0xff]
        %v5411 = vld [vmem:[%s12] sm:$0x1]
        %v5413 = vsel %vm4808, %v5402, 0
        %5415 = vmatprep.subr.mxu0 0.0
        %5416 = vmatpush1.msra.mxu0 %v5403
        %5417 = vmatprep.subr.mxu0 0.0
        %5418 = vmatpush1.msra.mxu0 %v5404
        %5419 = vmatprep.subr.mxu0 0.0
        %5420 = vmatpush1.msra.mxu0 %v5405
        %5421 = vmatprep.subr.mxu0 0.0
        %5422 = vmatpush1.msra.mxu0 %v5406
        %5423 = vmatprep.subr.mxu0 0.0
        %5424 = vmatpush1.msra.mxu0 %v5407
        %5425 = vmatprep.subr.mxu0 0.0
        %5426 = vmatpush1.msra.mxu0 %v5408
        %5427 = vmatprep.subr.mxu0 0.0
        %5428 = vmatpush1.msra.mxu0 %v5409
        %5429 = vmatprep.subr.mxu0 0.0
        %5430 = vmatpush1.msra.mxu0 %v5410
        %5431 = vmatprep.subr.mxu0 0.0
        %5432 = vmatpush1.msra.mxu0 0.0
        %5433 = vmatprep.subr.mxu0 0.0
        %5434 = vmatpush1.msra.mxu0 0.0
        %5435 = vmatprep.subr.mxu0 0.0
        %5436 = vmatpush1.msra.mxu0 0.0
        %5437 = vmatprep.subr.mxu0 0.0
        %5438 = vmatpush1.msra.mxu0 0.0
        %5439 = vmatprep.subr.mxu0 0.0
        %5440 = vmatpush1.msra.mxu0 0.0
        %5441 = vmatprep.subr.mxu0 0.0
        %5442 = vmatpush1.msra.mxu0 0.0
        %5443 = vmatprep.subr.mxu0 0.0
        %5444 = vmatpush1.msra.mxu0 0.0
        %5445 = vmatprep.subr.mxu0 0.0
        %5446 = vmatpush1.msra.mxu0 0.0
        %5447 = vmatprep.subr.mxu0 0.0
        %5448 = vmatpush1.msra.mxu0 0.0
        %5449 = vmatprep.subr.mxu0 0.0
        %5450 = vmatpush1.msra.mxu0 0.0
        %5451 = vmatprep.subr.mxu0 0.0
        %5452 = vmatpush1.msra.mxu0 0.0
        %5453 = vmatprep.subr.mxu0 0.0
        %5454 = vmatpush1.msra.mxu0 0.0
        %5455 = vmatprep.subr.mxu0 0.0
        %5456 = vmatpush1.msra.mxu0 0.0
        %5457 = vmatprep.subr.mxu0 0.0
        %5458 = vmatpush1.msra.mxu0 0.0
        %5459 = vmatprep.subr.mxu0 0.0
        %5460 = vmatpush1.msra.mxu0 0.0
        %5461 = vmatprep.subr.mxu0 0.0
        %5462 = vmatpush1.msra.mxu0 0.0
        %5463 = vmatprep.subr.mxu0 0.0
        %5464 = vmatpush1.msra.mxu0 0.0
        %5465 = vmatprep.subr.mxu0 0.0
        %5466 = vmatpush1.msra.mxu0 0.0
        %5467 = vmatprep.subr.mxu0 0.0
        %5468 = vmatpush1.msra.mxu0 0.0
        %5469 = vmatprep.subr.mxu0 0.0
        %5470 = vmatpush1.msra.mxu0 0.0
        %5471 = vmatprep.subr.mxu0 0.0
        %5472 = vmatpush1.msra.mxu0 0.0
        %5473 = vmatprep.subr.mxu0 0.0
        %5474 = vmatpush1.msra.mxu0 0.0
        %5475 = vmatprep.subr.mxu0 0.0
        %5476 = vmatpush1.msra.mxu0 0.0
        %5477 = vmatprep.subr.mxu0 0.0
        %5478 = vmatpush1.msra.mxu0 0.0
        %5479 = vmatprep.mubr.f32.mxu0 0.0
        %5480 = vmatmul.mubr.f32.gmra.mrb[0].mxu0 %v5413
        %v5481 = vpop.f32.mrb[0].mxu0
        %v5482 = vadd.f32 %v5411, %v5481
        %v5483 = vpop.f32.mrb[0].mxu0
        %5484 = vdwg.mxu0
        %5485 = vst [vmem:[%s432] sm:$0x1] %v5482
        %s5486 = sand.u32 %s313, 1
        %s5487 = scalar_lea.sflag [#allocation8], %s5486
        %s5488 = sand.u32 %s313, 1
        %s5489 = scalar_lea.vmem [#allocation7], %s5488
        // Predicated region
        $region73: #{conv3net_forward.1} parent=71 // pred_check
          %p5490 = pneg %p323
        $region74: #{conv3net_forward.1} parent=71 // pred_check_branch
          %5492 = sbr.rel (%p5490) target = $region76
        $region75: #{conv3net_forward.1} parent=71 // pred_region
          %s5494 = ssub.s32 16, 16
          %5495 = vsyncadd %s5487, %s5494
          %s5496 = smul.addr %s27, 16
          %s5497 = scalar_lea.hbm %s13, %s5496
          %s5499 = sshll.u32 %s5489, 4
          %s5500 = int_to_ptr.vmem [resolvable:$true] %s5499
          %5502 = dma.vmem_to_hbm [thread:$0]  %s5500, 16, %s5497, %s5487
        $region76: #{conv3net_forward.1} parent=71 // pred_fallthru
          _
      $region72: #{conv3net_forward.1} parent=5 // pred_fallthru
        _
      %p5503 = scmp.le.s32.totalorder 2, %s22
      // Predicated region
      $region77: #{conv3net_forward.1} parent=5 // pred_check
        %p5504 = pneg %p5503
      $region78: #{conv3net_forward.1} parent=5 // pred_check_branch
        %5506 = sbr.rel (%p5504) target = $region80
      $region79: #{conv3net_forward.1} parent=5 // pred_region
        %s5507 = ssub.s32 %s22, 2
        // Predicated region
        $region81: #{conv3net_forward.1} parent=79 // pred_check
          %p5508 = pneg %p329
        $region82: #{conv3net_forward.1} parent=79 // pred_check_branch
          %5510 = sbr.rel (%p5508) target = $region84
        $region83: #{conv3net_forward.1} parent=79 // pred_region
          %s5511 = sand.u32 %s314, 1
          %s5512 = scalar_lea.sflag [#allocation8], %s5511
          %s5513 = sand.u32 %s314, 1
          %s5514 = scalar_lea.vmem [#allocation7], %s5513
          %5515 = dma.done %s5512, 16
        $region84: #{conv3net_forward.1} parent=79 // pred_fallthru
          _
      $region80: #{conv3net_forward.1} parent=5 // pred_fallthru
        _
    $region6: #{conv3net_forward.1} parent=1 // loop_footer
      %s26 = sadd.s32 1, %s22
    $region7: #{conv3net_forward.1} parent=1 // loop_footer_branch
      %21 = sbr.rel target = $region3
    $region8: #{conv3net_forward.1} parent=1 // loop_exit
      _
    %5516 = vsyncpa [#allocation8], 1
    %s5517 = scalar_lea.sflag [#allocation8], 1
    %5518 = vsyncpa %s5517, 1

</llo_original>
